<compile_context>
chip_gen: v7x
topology: tpu7x:2x2x1
jax: 0.10.0
libtpu: 0.0.40
codegen_flags: <defaults>
</compile_context>

<pallas_src>
import functools

import jax
import jax.numpy as jnp
from jax.experimental import pallas as pl
from jax.experimental.pallas import tpu as pltpu


def _endown_taps_kernel(w_ref, b_ref, p_ref, o_ref, *, lout, stride_d, stride_h):
    """Fused 3x3x3 / stride-2 conv over one sample.

    w_ref: (27, Cout, Cin)   bf16 tap-major weights (resident across grid)
    b_ref: (Cout, 1)         f32 bias (resident)
    p_ref: (1, 8, Cin, L_in) bf16 phase-split padded input for sample n
    o_ref: (1, Cout, Lout)   output for sample n, padded-spatial lane layout
    """
    cout = w_ref.shape[1]
    acc = jnp.zeros((cout, lout), jnp.float32)
    for kd in range(3):
        for kh in range(3):
            for kw in range(3):
                tap = kd * 9 + kh * 3 + kw
                phase = 4 * (kd % 2) + 2 * (kh % 2) + (kw % 2)
                off = (kd // 2) * stride_d + (kh // 2) * stride_h + (kw // 2)
                x_t = p_ref[0, phase, :, pl.ds(off, lout)]        # (Cin, Lout) bf16
                acc = acc + jnp.dot(w_ref[tap], x_t,
                                    preferred_element_type=jnp.float32)
    o_ref[0] = (acc + b_ref[...]).astype(o_ref.dtype)


@functools.partial(jax.jit, static_argnames=("compute_dtype",))
def endown_forward(x, weight, bias, *, compute_dtype=jnp.bfloat16):
    """EnDown.forward: y = Conv3d(k=3, s=2, p=1, groups=1)(x), NCDHW in/out."""
    N, Cin, D, H, W = x.shape
    Cout = weight.shape[0]
    Do = (D - 1) // 2 + 1
    Ho = (H - 1) // 2 + 1
    Wo = (W - 1) // 2 + 1
    Dp2, Hp2, Wp2 = Do + 1, Ho + 1, Wo + 1          # per-phase grid (incl. +1 halo)
    stride_d, stride_h = Hp2 * Wp2, Wp2
    lout = Do * stride_d                            # padded-spatial output lanes
    max_off = stride_d + stride_h + 1               # largest tap offset (1,1,1)
    l_in = lout + max_off                           # lanes needed per phase row
    l_nat = Dp2 * stride_d

    out_dtype = x.dtype

    # --- stride-2 handled ONCE in XLA: 8-way space-to-depth phase split --------
    # P[n, 4*pd+2*ph+pw, c, d2*stride_d + h2*stride_h + w2] = x_pad[n, c, 2d2+pd, 2h2+ph, 2w2+pw]
    xb = x.astype(compute_dtype)
    xp = jnp.pad(xb, ((0, 0), (0, 0),
                      (1, 2 * Dp2 - D - 1),
                      (1, 2 * Hp2 - H - 1),
                      (1, 2 * Wp2 - W - 1)))
    xr = xp.reshape(N, Cin, Dp2, 2, Hp2, 2, Wp2, 2)
    phases = jnp.transpose(xr, (0, 3, 5, 7, 1, 2, 4, 6)).reshape(N, 8, Cin, l_nat)
    phases = jnp.pad(phases, ((0, 0), (0, 0), (0, 0), (0, l_in - l_nat)))

    # Tap-major weights: w_taps[kd*9+kh*3+kw, o, c] = weight[o, c, kd, kh, kw]
    w_taps = jnp.transpose(weight, (2, 3, 4, 0, 1)).reshape(27, Cout, Cin)
    w_taps = w_taps.astype(compute_dtype)
    b_mat = bias.astype(jnp.float32).reshape(Cout, 1)

    # --- footprint-derived VMEM budget / cost hint ------------------------------
    bpe = jnp.dtype(compute_dtype).itemsize
    p_block = 8 * Cin * l_in * bpe
    o_block = Cout * lout * jnp.dtype(out_dtype).itemsize
    w_bytes = 27 * Cout * Cin * bpe
    b_bytes = Cout * 4
    vmem_limit = int(min(112 << 20,
                         max(16 << 20,
                             2 * (p_block + o_block) + w_bytes + b_bytes + (2 << 20))))
    cost = pl.CostEstimate(
        flops=2 * N * 27 * Cin * Cout * lout,
        transcendentals=0,
        bytes_accessed=N * (p_block + o_block) + w_bytes + b_bytes,
    )

    out_padded = pl.pallas_call(
        functools.partial(_endown_taps_kernel, lout=lout,
                          stride_d=stride_d, stride_h=stride_h),
        out_shape=jax.ShapeDtypeStruct((N, Cout, lout), out_dtype),
        grid_spec=pltpu.PrefetchScalarGridSpec(
            num_scalar_prefetch=0,
            grid=(N,),
            in_specs=[
                pl.BlockSpec((27, Cout, Cin), lambda n: (0, 0, 0)),      # resident weights
                pl.BlockSpec((Cout, 1), lambda n: (0, 0)),               # resident bias
                pl.BlockSpec((1, 8, Cin, l_in), lambda n: (n, 0, 0, 0)),  # phase slab, sample n
            ],
            out_specs=pl.BlockSpec((1, Cout, lout), lambda n: (n, 0, 0)),
        ),
        compiler_params=pltpu.CompilerParams(
            dimension_semantics=("parallel",),
            vmem_limit_bytes=vmem_limit,
        ),
        cost_estimate=cost,
    )(w_taps, b_mat, phases)

    # Padded-spatial lanes -> final (N, Cout, Do, Ho, Wo): a cheap slice, no transpose.
    y = out_padded.reshape(N, Cout, Do, Hp2, Wp2)[:, :, :, :Ho, :Wo]
    return y


if __name__ == "__main__":
    # Small shapes consistent with EnDown(in_channels=4, out_channels=8).
    N, Cin, Cout = 2, 4, 8
    D = H = W = 16

    key = jax.random.PRNGKey(0)
    kx, kw, kb = jax.random.split(key, 3)
    x = jax.random.normal(kx, (N, Cin, D, H, W), dtype=jnp.float32)
    fan_in = Cin * 27
    bound = 1.0 / (fan_in ** 0.5)
    weight = jax.random.uniform(kw, (Cout, Cin, 3, 3, 3), jnp.float32, -bound, bound)
    bias = jax.random.uniform(kb, (Cout,), jnp.float32, -bound, bound)

    y = endown_forward(x, weight, bias)
    y = jax.block_until_ready(y)

    # Reference: XLA conv in f32 (same semantics as torch Conv3d forward).
    ref = jax.lax.conv_general_dilated(
        x, weight, window_strides=(2, 2, 2),
        padding=((1, 1), (1, 1), (1, 1)),
        dimension_numbers=("NCDHW", "OIDHW", "NCDHW"),
    ) + bias.reshape(1, Cout, 1, 1, 1)

    assert y.shape == (N, Cout, 8, 8, 8), y.shape
    # bf16 tap data with f32 accumulation vs. the f32 reference.
    assert jnp.allclose(y, ref, atol=5e-2, rtol=5e-2), float(jnp.max(jnp.abs(y - ref)))

    print("KERNEL_OK")
</pallas_src>

<mosaic_0001>
module attributes {stable_mosaic.version = 11 : i64} {
  func.func @_endown_taps_kernel(%arg0: i32, %arg1: memref<27x8x4xbf16, #tpu.memory_space<vmem>>, %arg2: memref<8x1xf32, #tpu.memory_space<vmem>>, %arg3: memref<1x8x4x739xbf16, #tpu.memory_space<vmem>>, %arg4: memref<1x8x648xf32, #tpu.memory_space<vmem>>) attributes {dimension_semantics = [#tpu.dimension_semantics<parallel>], iteration_bounds = array<i64: 2>, scalar_prefetch = 0 : i64, scratch_operands = 0 : i64, tpu.core_type = #tpu.core_type<tc>, window_params = [{pipeline_mode = #tpu.pipeline_mode<synchronous>, transform_indices = @transform_0, window_bounds = array<i64: 27, 8, 4>}, {pipeline_mode = #tpu.pipeline_mode<synchronous>, transform_indices = @transform_1, window_bounds = array<i64: 8, 1>}, {transform_indices = @transform_2, window_bounds = array<i64: 1, 8, 4, 739>}, {transform_indices = @transform_3, window_bounds = array<i64: 1, 8, 648>}]} {
    %cst = arith.constant 0.000000e+00 : f32
    %0 = vector.broadcast %cst : f32 to vector<8x648xf32>
    %c0 = arith.constant 0 : index
    %c0_0 = arith.constant 0 : index
    %c0_1 = arith.constant 0 : index
    %c0_2 = arith.constant 0 : index
    %1 = vector.load %arg3[%c0, %c0_0, %c0_1, %c0_2] : memref<1x8x4x739xbf16, #tpu.memory_space<vmem>>, vector<1x1x4x648xbf16>
    %2 = vector.shape_cast %1 : vector<1x1x4x648xbf16> to vector<4x648xbf16>
    %c0_3 = arith.constant 0 : index
    %c0_4 = arith.constant 0 : index
    %c0_5 = arith.constant 0 : index
    %3 = vector.load %arg1[%c0_3, %c0_4, %c0_5] : memref<27x8x4xbf16, #tpu.memory_space<vmem>>, vector<1x8x4xbf16>
    %4 = vector.shape_cast %3 : vector<1x8x4xbf16> to vector<8x4xbf16>
    %cst_6 = arith.constant dense<0.000000e+00> : vector<8x648xf32>
    %5 = tpu.matmul %4, %2, %cst_6 {dimension_numbers = #tpu.dot_dimension_numbers<[1], [0], [0], [1], [0, 0, 1, 1], [], []>} : vector<8x4xbf16>, vector<4x648xbf16>, vector<8x648xf32> -> vector<8x648xf32>
    %6 = arith.addf %0, %5 : vector<8x648xf32>
    %c0_7 = arith.constant 0 : index
    %c1 = arith.constant 1 : index
    %c0_8 = arith.constant 0 : index
    %c0_9 = arith.constant 0 : index
    %7 = vector.load %arg3[%c0_7, %c1, %c0_8, %c0_9] : memref<1x8x4x739xbf16, #tpu.memory_space<vmem>>, vector<1x1x4x648xbf16>
    %8 = vector.shape_cast %7 : vector<1x1x4x648xbf16> to vector<4x648xbf16>
    %c1_10 = arith.constant 1 : index
    %c0_11 = arith.constant 0 : index
    %c0_12 = arith.constant 0 : index
    %9 = vector.load %arg1[%c1_10, %c0_11, %c0_12] : memref<27x8x4xbf16, #tpu.memory_space<vmem>>, vector<1x8x4xbf16>
    %10 = vector.shape_cast %9 : vector<1x8x4xbf16> to vector<8x4xbf16>
    %cst_13 = arith.constant dense<0.000000e+00> : vector<8x648xf32>
    %11 = tpu.matmul %10, %8, %cst_13 {dimension_numbers = #tpu.dot_dimension_numbers<[1], [0], [0], [1], [0, 0, 1, 1], [], []>} : vector<8x4xbf16>, vector<4x648xbf16>, vector<8x648xf32> -> vector<8x648xf32>
    %12 = arith.addf %6, %11 : vector<8x648xf32>
    %c0_14 = arith.constant 0 : index
    %c0_15 = arith.constant 0 : index
    %c0_16 = arith.constant 0 : index
    %c1_17 = arith.constant 1 : index
    %13 = vector.load %arg3[%c0_14, %c0_15, %c0_16, %c1_17] : memref<1x8x4x739xbf16, #tpu.memory_space<vmem>>, vector<1x1x4x648xbf16>
    %14 = vector.shape_cast %13 : vector<1x1x4x648xbf16> to vector<4x648xbf16>
    %c2 = arith.constant 2 : index
    %c0_18 = arith.constant 0 : index
    %c0_19 = arith.constant 0 : index
    %15 = vector.load %arg1[%c2, %c0_18, %c0_19] : memref<27x8x4xbf16, #tpu.memory_space<vmem>>, vector<1x8x4xbf16>
    %16 = vector.shape_cast %15 : vector<1x8x4xbf16> to vector<8x4xbf16>
    %cst_20 = arith.constant dense<0.000000e+00> : vector<8x648xf32>
    %17 = tpu.matmul %16, %14, %cst_20 {dimension_numbers = #tpu.dot_dimension_numbers<[1], [0], [0], [1], [0, 0, 1, 1], [], []>} : vector<8x4xbf16>, vector<4x648xbf16>, vector<8x648xf32> -> vector<8x648xf32>
    %18 = arith.addf %12, %17 : vector<8x648xf32>
    %c0_21 = arith.constant 0 : index
    %c2_22 = arith.constant 2 : index
    %c0_23 = arith.constant 0 : index
    %c0_24 = arith.constant 0 : index
    %19 = vector.load %arg3[%c0_21, %c2_22, %c0_23, %c0_24] : memref<1x8x4x739xbf16, #tpu.memory_space<vmem>>, vector<1x1x4x648xbf16>
    %20 = vector.shape_cast %19 : vector<1x1x4x648xbf16> to vector<4x648xbf16>
    %c3 = arith.constant 3 : index
    %c0_25 = arith.constant 0 : index
    %c0_26 = arith.constant 0 : index
    %21 = vector.load %arg1[%c3, %c0_25, %c0_26] : memref<27x8x4xbf16, #tpu.memory_space<vmem>>, vector<1x8x4xbf16>
    %22 = vector.shape_cast %21 : vector<1x8x4xbf16> to vector<8x4xbf16>
    %cst_27 = arith.constant dense<0.000000e+00> : vector<8x648xf32>
    %23 = tpu.matmul %22, %20, %cst_27 {dimension_numbers = #tpu.dot_dimension_numbers<[1], [0], [0], [1], [0, 0, 1, 1], [], []>} : vector<8x4xbf16>, vector<4x648xbf16>, vector<8x648xf32> -> vector<8x648xf32>
    %24 = arith.addf %18, %23 : vector<8x648xf32>
    %c0_28 = arith.constant 0 : index
    %c3_29 = arith.constant 3 : index
    %c0_30 = arith.constant 0 : index
    %c0_31 = arith.constant 0 : index
    %25 = vector.load %arg3[%c0_28, %c3_29, %c0_30, %c0_31] : memref<1x8x4x739xbf16, #tpu.memory_space<vmem>>, vector<1x1x4x648xbf16>
    %26 = vector.shape_cast %25 : vector<1x1x4x648xbf16> to vector<4x648xbf16>
    %c4 = arith.constant 4 : index
    %c0_32 = arith.constant 0 : index
    %c0_33 = arith.constant 0 : index
    %27 = vector.load %arg1[%c4, %c0_32, %c0_33] : memref<27x8x4xbf16, #tpu.memory_space<vmem>>, vector<1x8x4xbf16>
    %28 = vector.shape_cast %27 : vector<1x8x4xbf16> to vector<8x4xbf16>
    %cst_34 = arith.constant dense<0.000000e+00> : vector<8x648xf32>
    %29 = tpu.matmul %28, %26, %cst_34 {dimension_numbers = #tpu.dot_dimension_numbers<[1], [0], [0], [1], [0, 0, 1, 1], [], []>} : vector<8x4xbf16>, vector<4x648xbf16>, vector<8x648xf32> -> vector<8x648xf32>
    %30 = arith.addf %24, %29 : vector<8x648xf32>
    %c0_35 = arith.constant 0 : index
    %c2_36 = arith.constant 2 : index
    %c0_37 = arith.constant 0 : index
    %c1_38 = arith.constant 1 : index
    %31 = vector.load %arg3[%c0_35, %c2_36, %c0_37, %c1_38] : memref<1x8x4x739xbf16, #tpu.memory_space<vmem>>, vector<1x1x4x648xbf16>
    %32 = vector.shape_cast %31 : vector<1x1x4x648xbf16> to vector<4x648xbf16>
    %c5 = arith.constant 5 : index
    %c0_39 = arith.constant 0 : index
    %c0_40 = arith.constant 0 : index
    %33 = vector.load %arg1[%c5, %c0_39, %c0_40] : memref<27x8x4xbf16, #tpu.memory_space<vmem>>, vector<1x8x4xbf16>
    %34 = vector.shape_cast %33 : vector<1x8x4xbf16> to vector<8x4xbf16>
    %cst_41 = arith.constant dense<0.000000e+00> : vector<8x648xf32>
    %35 = tpu.matmul %34, %32, %cst_41 {dimension_numbers = #tpu.dot_dimension_numbers<[1], [0], [0], [1], [0, 0, 1, 1], [], []>} : vector<8x4xbf16>, vector<4x648xbf16>, vector<8x648xf32> -> vector<8x648xf32>
    %36 = arith.addf %30, %35 : vector<8x648xf32>
    %c0_42 = arith.constant 0 : index
    %c0_43 = arith.constant 0 : index
    %c0_44 = arith.constant 0 : index
    %c9 = arith.constant 9 : index
    %37 = vector.load %arg3[%c0_42, %c0_43, %c0_44, %c9] : memref<1x8x4x739xbf16, #tpu.memory_space<vmem>>, vector<1x1x4x648xbf16>
    %38 = vector.shape_cast %37 : vector<1x1x4x648xbf16> to vector<4x648xbf16>
    %c6 = arith.constant 6 : index
    %c0_45 = arith.constant 0 : index
    %c0_46 = arith.constant 0 : index
    %39 = vector.load %arg1[%c6, %c0_45, %c0_46] : memref<27x8x4xbf16, #tpu.memory_space<vmem>>, vector<1x8x4xbf16>
    %40 = vector.shape_cast %39 : vector<1x8x4xbf16> to vector<8x4xbf16>
    %cst_47 = arith.constant dense<0.000000e+00> : vector<8x648xf32>
    %41 = tpu.matmul %40, %38, %cst_47 {dimension_numbers = #tpu.dot_dimension_numbers<[1], [0], [0], [1], [0, 0, 1, 1], [], []>} : vector<8x4xbf16>, vector<4x648xbf16>, vector<8x648xf32> -> vector<8x648xf32>
    %42 = arith.addf %36, %41 : vector<8x648xf32>
    %c0_48 = arith.constant 0 : index
    %c1_49 = arith.constant 1 : index
    %c0_50 = arith.constant 0 : index
    %c9_51 = arith.constant 9 : index
    %43 = vector.load %arg3[%c0_48, %c1_49, %c0_50, %c9_51] : memref<1x8x4x739xbf16, #tpu.memory_space<vmem>>, vector<1x1x4x648xbf16>
    %44 = vector.shape_cast %43 : vector<1x1x4x648xbf16> to vector<4x648xbf16>
    %c7 = arith.constant 7 : index
    %c0_52 = arith.constant 0 : index
    %c0_53 = arith.constant 0 : index
    %45 = vector.load %arg1[%c7, %c0_52, %c0_53] : memref<27x8x4xbf16, #tpu.memory_space<vmem>>, vector<1x8x4xbf16>
    %46 = vector.shape_cast %45 : vector<1x8x4xbf16> to vector<8x4xbf16>
    %cst_54 = arith.constant dense<0.000000e+00> : vector<8x648xf32>
    %47 = tpu.matmul %46, %44, %cst_54 {dimension_numbers = #tpu.dot_dimension_numbers<[1], [0], [0], [1], [0, 0, 1, 1], [], []>} : vector<8x4xbf16>, vector<4x648xbf16>, vector<8x648xf32> -> vector<8x648xf32>
    %48 = arith.addf %42, %47 : vector<8x648xf32>
    %c0_55 = arith.constant 0 : index
    %c0_56 = arith.constant 0 : index
    %c0_57 = arith.constant 0 : index
    %c10 = arith.constant 10 : index
    %49 = vector.load %arg3[%c0_55, %c0_56, %c0_57, %c10] : memref<1x8x4x739xbf16, #tpu.memory_space<vmem>>, vector<1x1x4x648xbf16>
    %50 = vector.shape_cast %49 : vector<1x1x4x648xbf16> to vector<4x648xbf16>
    %c8 = arith.constant 8 : index
    %c0_58 = arith.constant 0 : index
    %c0_59 = arith.constant 0 : index
    %51 = vector.load %arg1[%c8, %c0_58, %c0_59] : memref<27x8x4xbf16, #tpu.memory_space<vmem>>, vector<1x8x4xbf16>
    %52 = vector.shape_cast %51 : vector<1x8x4xbf16> to vector<8x4xbf16>
    %cst_60 = arith.constant dense<0.000000e+00> : vector<8x648xf32>
    %53 = tpu.matmul %52, %50, %cst_60 {dimension_numbers = #tpu.dot_dimension_numbers<[1], [0], [0], [1], [0, 0, 1, 1], [], []>} : vector<8x4xbf16>, vector<4x648xbf16>, vector<8x648xf32> -> vector<8x648xf32>
    %54 = arith.addf %48, %53 : vector<8x648xf32>
    %c0_61 = arith.constant 0 : index
    %c4_62 = arith.constant 4 : index
    %c0_63 = arith.constant 0 : index
    %c0_64 = arith.constant 0 : index
    %55 = vector.load %arg3[%c0_61, %c4_62, %c0_63, %c0_64] : memref<1x8x4x739xbf16, #tpu.memory_space<vmem>>, vector<1x1x4x648xbf16>
    %56 = vector.shape_cast %55 : vector<1x1x4x648xbf16> to vector<4x648xbf16>
    %c9_65 = arith.constant 9 : index
    %c0_66 = arith.constant 0 : index
    %c0_67 = arith.constant 0 : index
    %57 = vector.load %arg1[%c9_65, %c0_66, %c0_67] : memref<27x8x4xbf16, #tpu.memory_space<vmem>>, vector<1x8x4xbf16>
    %58 = vector.shape_cast %57 : vector<1x8x4xbf16> to vector<8x4xbf16>
    %cst_68 = arith.constant dense<0.000000e+00> : vector<8x648xf32>
    %59 = tpu.matmul %58, %56, %cst_68 {dimension_numbers = #tpu.dot_dimension_numbers<[1], [0], [0], [1], [0, 0, 1, 1], [], []>} : vector<8x4xbf16>, vector<4x648xbf16>, vector<8x648xf32> -> vector<8x648xf32>
    %60 = arith.addf %54, %59 : vector<8x648xf32>
    %c0_69 = arith.constant 0 : index
    %c5_70 = arith.constant 5 : index
    %c0_71 = arith.constant 0 : index
    %c0_72 = arith.constant 0 : index
    %61 = vector.load %arg3[%c0_69, %c5_70, %c0_71, %c0_72] : memref<1x8x4x739xbf16, #tpu.memory_space<vmem>>, vector<1x1x4x648xbf16>
    %62 = vector.shape_cast %61 : vector<1x1x4x648xbf16> to vector<4x648xbf16>
    %c10_73 = arith.constant 10 : index
    %c0_74 = arith.constant 0 : index
    %c0_75 = arith.constant 0 : index
    %63 = vector.load %arg1[%c10_73, %c0_74, %c0_75] : memref<27x8x4xbf16, #tpu.memory_space<vmem>>, vector<1x8x4xbf16>
    %64 = vector.shape_cast %63 : vector<1x8x4xbf16> to vector<8x4xbf16>
    %cst_76 = arith.constant dense<0.000000e+00> : vector<8x648xf32>
    %65 = tpu.matmul %64, %62, %cst_76 {dimension_numbers = #tpu.dot_dimension_numbers<[1], [0], [0], [1], [0, 0, 1, 1], [], []>} : vector<8x4xbf16>, vector<4x648xbf16>, vector<8x648xf32> -> vector<8x648xf32>
    %66 = arith.addf %60, %65 : vector<8x648xf32>
    %c0_77 = arith.constant 0 : index
    %c4_78 = arith.constant 4 : index
    %c0_79 = arith.constant 0 : index
    %c1_80 = arith.constant 1 : index
    %67 = vector.load %arg3[%c0_77, %c4_78, %c0_79, %c1_80] : memref<1x8x4x739xbf16, #tpu.memory_space<vmem>>, vector<1x1x4x648xbf16>
    %68 = vector.shape_cast %67 : vector<1x1x4x648xbf16> to vector<4x648xbf16>
    %c11 = arith.constant 11 : index
    %c0_81 = arith.constant 0 : index
    %c0_82 = arith.constant 0 : index
    %69 = vector.load %arg1[%c11, %c0_81, %c0_82] : memref<27x8x4xbf16, #tpu.memory_space<vmem>>, vector<1x8x4xbf16>
    %70 = vector.shape_cast %69 : vector<1x8x4xbf16> to vector<8x4xbf16>
    %cst_83 = arith.constant dense<0.000000e+00> : vector<8x648xf32>
    %71 = tpu.matmul %70, %68, %cst_83 {dimension_numbers = #tpu.dot_dimension_numbers<[1], [0], [0], [1], [0, 0, 1, 1], [], []>} : vector<8x4xbf16>, vector<4x648xbf16>, vector<8x648xf32> -> vector<8x648xf32>
    %72 = arith.addf %66, %71 : vector<8x648xf32>
    %c0_84 = arith.constant 0 : index
    %c6_85 = arith.constant 6 : index
    %c0_86 = arith.constant 0 : index
    %c0_87 = arith.constant 0 : index
    %73 = vector.load %arg3[%c0_84, %c6_85, %c0_86, %c0_87] : memref<1x8x4x739xbf16, #tpu.memory_space<vmem>>, vector<1x1x4x648xbf16>
    %74 = vector.shape_cast %73 : vector<1x1x4x648xbf16> to vector<4x648xbf16>
    %c12 = arith.constant 12 : index
    %c0_88 = arith.constant 0 : index
    %c0_89 = arith.constant 0 : index
    %75 = vector.load %arg1[%c12, %c0_88, %c0_89] : memref<27x8x4xbf16, #tpu.memory_space<vmem>>, vector<1x8x4xbf16>
    %76 = vector.shape_cast %75 : vector<1x8x4xbf16> to vector<8x4xbf16>
    %cst_90 = arith.constant dense<0.000000e+00> : vector<8x648xf32>
    %77 = tpu.matmul %76, %74, %cst_90 {dimension_numbers = #tpu.dot_dimension_numbers<[1], [0], [0], [1], [0, 0, 1, 1], [], []>} : vector<8x4xbf16>, vector<4x648xbf16>, vector<8x648xf32> -> vector<8x648xf32>
    %78 = arith.addf %72, %77 : vector<8x648xf32>
    %c0_91 = arith.constant 0 : index
    %c7_92 = arith.constant 7 : index
    %c0_93 = arith.constant 0 : index
    %c0_94 = arith.constant 0 : index
    %79 = vector.load %arg3[%c0_91, %c7_92, %c0_93, %c0_94] : memref<1x8x4x739xbf16, #tpu.memory_space<vmem>>, vector<1x1x4x648xbf16>
    %80 = vector.shape_cast %79 : vector<1x1x4x648xbf16> to vector<4x648xbf16>
    %c13 = arith.constant 13 : index
    %c0_95 = arith.constant 0 : index
    %c0_96 = arith.constant 0 : index
    %81 = vector.load %arg1[%c13, %c0_95, %c0_96] : memref<27x8x4xbf16, #tpu.memory_space<vmem>>, vector<1x8x4xbf16>
    %82 = vector.shape_cast %81 : vector<1x8x4xbf16> to vector<8x4xbf16>
    %cst_97 = arith.constant dense<0.000000e+00> : vector<8x648xf32>
    %83 = tpu.matmul %82, %80, %cst_97 {dimension_numbers = #tpu.dot_dimension_numbers<[1], [0], [0], [1], [0, 0, 1, 1], [], []>} : vector<8x4xbf16>, vector<4x648xbf16>, vector<8x648xf32> -> vector<8x648xf32>
    %84 = arith.addf %78, %83 : vector<8x648xf32>
    %c0_98 = arith.constant 0 : index
    %c6_99 = arith.constant 6 : index
    %c0_100 = arith.constant 0 : index
    %c1_101 = arith.constant 1 : index
    %85 = vector.load %arg3[%c0_98, %c6_99, %c0_100, %c1_101] : memref<1x8x4x739xbf16, #tpu.memory_space<vmem>>, vector<1x1x4x648xbf16>
    %86 = vector.shape_cast %85 : vector<1x1x4x648xbf16> to vector<4x648xbf16>
    %c14 = arith.constant 14 : index
    %c0_102 = arith.constant 0 : index
    %c0_103 = arith.constant 0 : index
    %87 = vector.load %arg1[%c14, %c0_102, %c0_103] : memref<27x8x4xbf16, #tpu.memory_space<vmem>>, vector<1x8x4xbf16>
    %88 = vector.shape_cast %87 : vector<1x8x4xbf16> to vector<8x4xbf16>
    %cst_104 = arith.constant dense<0.000000e+00> : vector<8x648xf32>
    %89 = tpu.matmul %88, %86, %cst_104 {dimension_numbers = #tpu.dot_dimension_numbers<[1], [0], [0], [1], [0, 0, 1, 1], [], []>} : vector<8x4xbf16>, vector<4x648xbf16>, vector<8x648xf32> -> vector<8x648xf32>
    %90 = arith.addf %84, %89 : vector<8x648xf32>
    %c0_105 = arith.constant 0 : index
    %c4_106 = arith.constant 4 : index
    %c0_107 = arith.constant 0 : index
    %c9_108 = arith.constant 9 : index
    %91 = vector.load %arg3[%c0_105, %c4_106, %c0_107, %c9_108] : memref<1x8x4x739xbf16, #tpu.memory_space<vmem>>, vector<1x1x4x648xbf16>
    %92 = vector.shape_cast %91 : vector<1x1x4x648xbf16> to vector<4x648xbf16>
    %c15 = arith.constant 15 : index
    %c0_109 = arith.constant 0 : index
    %c0_110 = arith.constant 0 : index
    %93 = vector.load %arg1[%c15, %c0_109, %c0_110] : memref<27x8x4xbf16, #tpu.memory_space<vmem>>, vector<1x8x4xbf16>
    %94 = vector.shape_cast %93 : vector<1x8x4xbf16> to vector<8x4xbf16>
    %cst_111 = arith.constant dense<0.000000e+00> : vector<8x648xf32>
    %95 = tpu.matmul %94, %92, %cst_111 {dimension_numbers = #tpu.dot_dimension_numbers<[1], [0], [0], [1], [0, 0, 1, 1], [], []>} : vector<8x4xbf16>, vector<4x648xbf16>, vector<8x648xf32> -> vector<8x648xf32>
    %96 = arith.addf %90, %95 : vector<8x648xf32>
    %c0_112 = arith.constant 0 : index
    %c5_113 = arith.constant 5 : index
    %c0_114 = arith.constant 0 : index
    %c9_115 = arith.constant 9 : index
    %97 = vector.load %arg3[%c0_112, %c5_113, %c0_114, %c9_115] : memref<1x8x4x739xbf16, #tpu.memory_space<vmem>>, vector<1x1x4x648xbf16>
    %98 = vector.shape_cast %97 : vector<1x1x4x648xbf16> to vector<4x648xbf16>
    %c16 = arith.constant 16 : index
    %c0_116 = arith.constant 0 : index
    %c0_117 = arith.constant 0 : index
    %99 = vector.load %arg1[%c16, %c0_116, %c0_117] : memref<27x8x4xbf16, #tpu.memory_space<vmem>>, vector<1x8x4xbf16>
    %100 = vector.shape_cast %99 : vector<1x8x4xbf16> to vector<8x4xbf16>
    %cst_118 = arith.constant dense<0.000000e+00> : vector<8x648xf32>
    %101 = tpu.matmul %100, %98, %cst_118 {dimension_numbers = #tpu.dot_dimension_numbers<[1], [0], [0], [1], [0, 0, 1, 1], [], []>} : vector<8x4xbf16>, vector<4x648xbf16>, vector<8x648xf32> -> vector<8x648xf32>
    %102 = arith.addf %96, %101 : vector<8x648xf32>
    %c0_119 = arith.constant 0 : index
    %c4_120 = arith.constant 4 : index
    %c0_121 = arith.constant 0 : index
    %c10_122 = arith.constant 10 : index
    %103 = vector.load %arg3[%c0_119, %c4_120, %c0_121, %c10_122] : memref<1x8x4x739xbf16, #tpu.memory_space<vmem>>, vector<1x1x4x648xbf16>
    %104 = vector.shape_cast %103 : vector<1x1x4x648xbf16> to vector<4x648xbf16>
    %c17 = arith.constant 17 : index
    %c0_123 = arith.constant 0 : index
    %c0_124 = arith.constant 0 : index
    %105 = vector.load %arg1[%c17, %c0_123, %c0_124] : memref<27x8x4xbf16, #tpu.memory_space<vmem>>, vector<1x8x4xbf16>
    %106 = vector.shape_cast %105 : vector<1x8x4xbf16> to vector<8x4xbf16>
    %cst_125 = arith.constant dense<0.000000e+00> : vector<8x648xf32>
    %107 = tpu.matmul %106, %104, %cst_125 {dimension_numbers = #tpu.dot_dimension_numbers<[1], [0], [0], [1], [0, 0, 1, 1], [], []>} : vector<8x4xbf16>, vector<4x648xbf16>, vector<8x648xf32> -> vector<8x648xf32>
    %108 = arith.addf %102, %107 : vector<8x648xf32>
    %c0_126 = arith.constant 0 : index
    %c0_127 = arith.constant 0 : index
    %c0_128 = arith.constant 0 : index
    %c81 = arith.constant 81 : index
    %109 = vector.load %arg3[%c0_126, %c0_127, %c0_128, %c81] : memref<1x8x4x739xbf16, #tpu.memory_space<vmem>>, vector<1x1x4x648xbf16>
    %110 = vector.shape_cast %109 : vector<1x1x4x648xbf16> to vector<4x648xbf16>
    %c18 = arith.constant 18 : index
    %c0_129 = arith.constant 0 : index
    %c0_130 = arith.constant 0 : index
    %111 = vector.load %arg1[%c18, %c0_129, %c0_130] : memref<27x8x4xbf16, #tpu.memory_space<vmem>>, vector<1x8x4xbf16>
    %112 = vector.shape_cast %111 : vector<1x8x4xbf16> to vector<8x4xbf16>
    %cst_131 = arith.constant dense<0.000000e+00> : vector<8x648xf32>
    %113 = tpu.matmul %112, %110, %cst_131 {dimension_numbers = #tpu.dot_dimension_numbers<[1], [0], [0], [1], [0, 0, 1, 1], [], []>} : vector<8x4xbf16>, vector<4x648xbf16>, vector<8x648xf32> -> vector<8x648xf32>
    %114 = arith.addf %108, %113 : vector<8x648xf32>
    %c0_132 = arith.constant 0 : index
    %c1_133 = arith.constant 1 : index
    %c0_134 = arith.constant 0 : index
    %c81_135 = arith.constant 81 : index
    %115 = vector.load %arg3[%c0_132, %c1_133, %c0_134, %c81_135] : memref<1x8x4x739xbf16, #tpu.memory_space<vmem>>, vector<1x1x4x648xbf16>
    %116 = vector.shape_cast %115 : vector<1x1x4x648xbf16> to vector<4x648xbf16>
    %c19 = arith.constant 19 : index
    %c0_136 = arith.constant 0 : index
    %c0_137 = arith.constant 0 : index
    %117 = vector.load %arg1[%c19, %c0_136, %c0_137] : memref<27x8x4xbf16, #tpu.memory_space<vmem>>, vector<1x8x4xbf16>
    %118 = vector.shape_cast %117 : vector<1x8x4xbf16> to vector<8x4xbf16>
    %cst_138 = arith.constant dense<0.000000e+00> : vector<8x648xf32>
    %119 = tpu.matmul %118, %116, %cst_138 {dimension_numbers = #tpu.dot_dimension_numbers<[1], [0], [0], [1], [0, 0, 1, 1], [], []>} : vector<8x4xbf16>, vector<4x648xbf16>, vector<8x648xf32> -> vector<8x648xf32>
    %120 = arith.addf %114, %119 : vector<8x648xf32>
    %c0_139 = arith.constant 0 : index
    %c0_140 = arith.constant 0 : index
    %c0_141 = arith.constant 0 : index
    %c82 = arith.constant 82 : index
    %121 = vector.load %arg3[%c0_139, %c0_140, %c0_141, %c82] : memref<1x8x4x739xbf16, #tpu.memory_space<vmem>>, vector<1x1x4x648xbf16>
    %122 = vector.shape_cast %121 : vector<1x1x4x648xbf16> to vector<4x648xbf16>
    %c20 = arith.constant 20 : index
    %c0_142 = arith.constant 0 : index
    %c0_143 = arith.constant 0 : index
    %123 = vector.load %arg1[%c20, %c0_142, %c0_143] : memref<27x8x4xbf16, #tpu.memory_space<vmem>>, vector<1x8x4xbf16>
    %124 = vector.shape_cast %123 : vector<1x8x4xbf16> to vector<8x4xbf16>
    %cst_144 = arith.constant dense<0.000000e+00> : vector<8x648xf32>
    %125 = tpu.matmul %124, %122, %cst_144 {dimension_numbers = #tpu.dot_dimension_numbers<[1], [0], [0], [1], [0, 0, 1, 1], [], []>} : vector<8x4xbf16>, vector<4x648xbf16>, vector<8x648xf32> -> vector<8x648xf32>
    %126 = arith.addf %120, %125 : vector<8x648xf32>
    %c0_145 = arith.constant 0 : index
    %c2_146 = arith.constant 2 : index
    %c0_147 = arith.constant 0 : index
    %c81_148 = arith.constant 81 : index
    %127 = vector.load %arg3[%c0_145, %c2_146, %c0_147, %c81_148] : memref<1x8x4x739xbf16, #tpu.memory_space<vmem>>, vector<1x1x4x648xbf16>
    %128 = vector.shape_cast %127 : vector<1x1x4x648xbf16> to vector<4x648xbf16>
    %c21 = arith.constant 21 : index
    %c0_149 = arith.constant 0 : index
    %c0_150 = arith.constant 0 : index
    %129 = vector.load %arg1[%c21, %c0_149, %c0_150] : memref<27x8x4xbf16, #tpu.memory_space<vmem>>, vector<1x8x4xbf16>
    %130 = vector.shape_cast %129 : vector<1x8x4xbf16> to vector<8x4xbf16>
    %cst_151 = arith.constant dense<0.000000e+00> : vector<8x648xf32>
    %131 = tpu.matmul %130, %128, %cst_151 {dimension_numbers = #tpu.dot_dimension_numbers<[1], [0], [0], [1], [0, 0, 1, 1], [], []>} : vector<8x4xbf16>, vector<4x648xbf16>, vector<8x648xf32> -> vector<8x648xf32>
    %132 = arith.addf %126, %131 : vector<8x648xf32>
    %c0_152 = arith.constant 0 : index
    %c3_153 = arith.constant 3 : index
    %c0_154 = arith.constant 0 : index
    %c81_155 = arith.constant 81 : index
    %133 = vector.load %arg3[%c0_152, %c3_153, %c0_154, %c81_155] : memref<1x8x4x739xbf16, #tpu.memory_space<vmem>>, vector<1x1x4x648xbf16>
    %134 = vector.shape_cast %133 : vector<1x1x4x648xbf16> to vector<4x648xbf16>
    %c22 = arith.constant 22 : index
    %c0_156 = arith.constant 0 : index
    %c0_157 = arith.constant 0 : index
    %135 = vector.load %arg1[%c22, %c0_156, %c0_157] : memref<27x8x4xbf16, #tpu.memory_space<vmem>>, vector<1x8x4xbf16>
    %136 = vector.shape_cast %135 : vector<1x8x4xbf16> to vector<8x4xbf16>
    %cst_158 = arith.constant dense<0.000000e+00> : vector<8x648xf32>
    %137 = tpu.matmul %136, %134, %cst_158 {dimension_numbers = #tpu.dot_dimension_numbers<[1], [0], [0], [1], [0, 0, 1, 1], [], []>} : vector<8x4xbf16>, vector<4x648xbf16>, vector<8x648xf32> -> vector<8x648xf32>
    %138 = arith.addf %132, %137 : vector<8x648xf32>
    %c0_159 = arith.constant 0 : index
    %c2_160 = arith.constant 2 : index
    %c0_161 = arith.constant 0 : index
    %c82_162 = arith.constant 82 : index
    %139 = vector.load %arg3[%c0_159, %c2_160, %c0_161, %c82_162] : memref<1x8x4x739xbf16, #tpu.memory_space<vmem>>, vector<1x1x4x648xbf16>
    %140 = vector.shape_cast %139 : vector<1x1x4x648xbf16> to vector<4x648xbf16>
    %c23 = arith.constant 23 : index
    %c0_163 = arith.constant 0 : index
    %c0_164 = arith.constant 0 : index
    %141 = vector.load %arg1[%c23, %c0_163, %c0_164] : memref<27x8x4xbf16, #tpu.memory_space<vmem>>, vector<1x8x4xbf16>
    %142 = vector.shape_cast %141 : vector<1x8x4xbf16> to vector<8x4xbf16>
    %cst_165 = arith.constant dense<0.000000e+00> : vector<8x648xf32>
    %143 = tpu.matmul %142, %140, %cst_165 {dimension_numbers = #tpu.dot_dimension_numbers<[1], [0], [0], [1], [0, 0, 1, 1], [], []>} : vector<8x4xbf16>, vector<4x648xbf16>, vector<8x648xf32> -> vector<8x648xf32>
    %144 = arith.addf %138, %143 : vector<8x648xf32>
    %c0_166 = arith.constant 0 : index
    %c0_167 = arith.constant 0 : index
    %c0_168 = arith.constant 0 : index
    %c90 = arith.constant 90 : index
    %145 = vector.load %arg3[%c0_166, %c0_167, %c0_168, %c90] : memref<1x8x4x739xbf16, #tpu.memory_space<vmem>>, vector<1x1x4x648xbf16>
    %146 = vector.shape_cast %145 : vector<1x1x4x648xbf16> to vector<4x648xbf16>
    %c24 = arith.constant 24 : index
    %c0_169 = arith.constant 0 : index
    %c0_170 = arith.constant 0 : index
    %147 = vector.load %arg1[%c24, %c0_169, %c0_170] : memref<27x8x4xbf16, #tpu.memory_space<vmem>>, vector<1x8x4xbf16>
    %148 = vector.shape_cast %147 : vector<1x8x4xbf16> to vector<8x4xbf16>
    %cst_171 = arith.constant dense<0.000000e+00> : vector<8x648xf32>
    %149 = tpu.matmul %148, %146, %cst_171 {dimension_numbers = #tpu.dot_dimension_numbers<[1], [0], [0], [1], [0, 0, 1, 1], [], []>} : vector<8x4xbf16>, vector<4x648xbf16>, vector<8x648xf32> -> vector<8x648xf32>
    %150 = arith.addf %144, %149 : vector<8x648xf32>
    %c0_172 = arith.constant 0 : index
    %c1_173 = arith.constant 1 : index
    %c0_174 = arith.constant 0 : index
    %c90_175 = arith.constant 90 : index
    %151 = vector.load %arg3[%c0_172, %c1_173, %c0_174, %c90_175] : memref<1x8x4x739xbf16, #tpu.memory_space<vmem>>, vector<1x1x4x648xbf16>
    %152 = vector.shape_cast %151 : vector<1x1x4x648xbf16> to vector<4x648xbf16>
    %c25 = arith.constant 25 : index
    %c0_176 = arith.constant 0 : index
    %c0_177 = arith.constant 0 : index
    %153 = vector.load %arg1[%c25, %c0_176, %c0_177] : memref<27x8x4xbf16, #tpu.memory_space<vmem>>, vector<1x8x4xbf16>
    %154 = vector.shape_cast %153 : vector<1x8x4xbf16> to vector<8x4xbf16>
    %cst_178 = arith.constant dense<0.000000e+00> : vector<8x648xf32>
    %155 = tpu.matmul %154, %152, %cst_178 {dimension_numbers = #tpu.dot_dimension_numbers<[1], [0], [0], [1], [0, 0, 1, 1], [], []>} : vector<8x4xbf16>, vector<4x648xbf16>, vector<8x648xf32> -> vector<8x648xf32>
    %156 = arith.addf %150, %155 : vector<8x648xf32>
    %c0_179 = arith.constant 0 : index
    %c0_180 = arith.constant 0 : index
    %c0_181 = arith.constant 0 : index
    %c91 = arith.constant 91 : index
    %157 = vector.load %arg3[%c0_179, %c0_180, %c0_181, %c91] : memref<1x8x4x739xbf16, #tpu.memory_space<vmem>>, vector<1x1x4x648xbf16>
    %158 = vector.shape_cast %157 : vector<1x1x4x648xbf16> to vector<4x648xbf16>
    %c26 = arith.constant 26 : index
    %c0_182 = arith.constant 0 : index
    %c0_183 = arith.constant 0 : index
    %159 = vector.load %arg1[%c26, %c0_182, %c0_183] : memref<27x8x4xbf16, #tpu.memory_space<vmem>>, vector<1x8x4xbf16>
    %160 = vector.shape_cast %159 : vector<1x8x4xbf16> to vector<8x4xbf16>
    %cst_184 = arith.constant dense<0.000000e+00> : vector<8x648xf32>
    %161 = tpu.matmul %160, %158, %cst_184 {dimension_numbers = #tpu.dot_dimension_numbers<[1], [0], [0], [1], [0, 0, 1, 1], [], []>} : vector<8x4xbf16>, vector<4x648xbf16>, vector<8x648xf32> -> vector<8x648xf32>
    %162 = arith.addf %156, %161 : vector<8x648xf32>
    %c0_185 = arith.constant 0 : index
    %c0_186 = arith.constant 0 : index
    %163 = vector.load %arg2[%c0_185, %c0_186] : memref<8x1xf32, #tpu.memory_space<vmem>>, vector<8x1xf32>
    %164 = vector.broadcast %163 : vector<8x1xf32> to vector<8x648xf32>
    %165 = arith.addf %162, %164 : vector<8x648xf32>
    %c0_187 = arith.constant 0 : index
    %c0_188 = arith.constant 0 : index
    %c0_189 = arith.constant 0 : index
    %166 = vector.load %arg4[%c0_187, %c0_188, %c0_189] : memref<1x8x648xf32, #tpu.memory_space<vmem>>, vector<1x8x648xf32>
    %167 = vector.shape_cast %166 : vector<1x8x648xf32> to vector<8x648xf32>
    %168 = vector.shape_cast %165 : vector<8x648xf32> to vector<1x8x648xf32>
    tpu.vector_store %arg4[%c0_187, %c0_188, %c0_189], %168 {strides = array<i32>} : memref<1x8x648xf32, #tpu.memory_space<vmem>>, vector<1x8x648xf32>,
    return
  }
  func.func @transform_0(%arg0: i32) -> (i32, i32, i32) {
    %c0_i32 = arith.constant 0 : i32
    %c0_i32_0 = arith.constant 0 : i32
    %c0_i32_1 = arith.constant 0 : i32
    %c0_i32_2 = arith.constant 0 : i32
    return %c0_i32, %c0_i32_0, %c0_i32_1 : i32, i32, i32
  }
  func.func @transform_1(%arg0: i32) -> (i32, i32) {
    %c0_i32 = arith.constant 0 : i32
    %c0_i32_0 = arith.constant 0 : i32
    %c0_i32_1 = arith.constant 0 : i32
    return %c0_i32, %c0_i32_0 : i32, i32
  }
  func.func @transform_2(%arg0: i32) -> (i32, i32, i32, i32) {
    %c0_i32 = arith.constant 0 : i32
    %c0_i32_0 = arith.constant 0 : i32
    %c0_i32_1 = arith.constant 0 : i32
    %c0_i32_2 = arith.constant 0 : i32
    return %arg0, %c0_i32, %c0_i32_0, %c0_i32_1 : i32, i32, i32, i32
  }
  func.func @transform_3(%arg0: i32) -> (i32, i32, i32) {
    %c0_i32 = arith.constant 0 : i32
    %c0_i32_0 = arith.constant 0 : i32
    %c0_i32_1 = arith.constant 0 : i32
    return %arg0, %c0_i32, %c0_i32_0 : i32, i32, i32
  }
}

</mosaic_0001>

<llo_original>
// kernel: endown_forward.1
$region0: #{endown_forward.1}
  #allocation0 [shape = 'u32[]', space=smem, size = 0x4, offset = 0x4, fixed_abs, tag = 'smem constant byte address 0x4 - core index']
  #allocation1 [shape = 'u32[144,128]{1,0:T(1,128)}', space=vmem, size = 0x12000, scoped, tag = 'internal scratch']
  %s0 = inlined_call_operand.vmem [shape: bf16[27,8,4], index: 0, kind: input, shape index: {}]
  %s1 = inlined_call_operand.vmem [shape: f32[8,1], index: 1, kind: input, shape index: {}]
  %s2 = inlined_call_operand.vmem [shape: bf16[2,8,4,739], index: 2, kind: input, shape index: {}]
  %s3 = inlined_call_operand.vmem [shape: f32[2,8,648], index: 3, kind: output, shape index: {}]
  %s4 = sld [smem:[#allocation0]]
  $region45: #{endown_forward.1} parent=0
    _
  %s6 = ssub.s32 1, %s4
  %s7 = scalar_select 0, %s6, %s4
  loop: start=0, step=1, limit=4
  $region2: #{endown_forward.1} parent=0 // loop_pre_header
    _
  $region3: #{endown_forward.1} parent=0 // loop_header
    %s9 = sphi 0, %s13
    %p10 = scmp.ge.s32.totalorder %s9, 4
    %s17 = sphi 0, %s17
    %s19 = sphi 0, %s17
    %s20 = sphi 0, %s19
    %s34 = sphi 0, %s20
    %s38 = sphi 0, %s38
    %s40 = sphi 0, %s38
    %s41 = sphi 0, %s40
    %s55 = sphi 0, %s41
    %s61 = sphi 0, %s63
    %s64 = sphi 0, %s61
    %s65 = sphi 0, %s64
    %s81 = sphi 0, %s65
    %s87 = sphi 0, %s89
    %s90 = sphi 0, %s87
    %s91 = sphi 0, %s90
    %s107 = sphi 0, %s91
  $region4: #{endown_forward.1} parent=0 // loop_header_branch
    %12 = sbr.rel (%p10) target = $region8
  $region5: #{endown_forward.1} parent=0 // loop_body
    %s14 = ssub.s32 %s9, 1
    %s15 = ssub.s32 %s9, 2
    %s16 = sadd.s32 %s9, 1
    %s18 = sadd.s32 %s17, 1
    %p21 = scmp.eq.s32.totalorder %s9, 1
    %p22 = scmp.ne.s32.totalorder %s17, %s19
    %p23 = scmp.eq.s32.totalorder %s9, 0
    %p24 = por %p22, %p23
    %p25 = scmp.ne.s32.totalorder %s17, %s19
    %p26 = scmp.eq.s32.totalorder %s14, 1
    %p27 = por %p25, %p26
    %p28 = scmp.ne.s32.totalorder %s19, %s20
    %p29 = scmp.eq.s32.totalorder %s14, 0
    %p30 = por %p28, %p29
    %p31 = scmp.ne.s32.totalorder %s19, %s20
    %p32 = scmp.eq.s32.totalorder %s15, 1
    %p33 = por %p31, %p32
    %p35 = scmp.ne.s32.totalorder %s20, %s34
    %p36 = scmp.eq.s32.totalorder %s15, 0
    %p37 = por %p35, %p36
    %s39 = sadd.s32 %s38, 1
    %p42 = scmp.eq.s32.totalorder %s9, 1
    %p43 = scmp.ne.s32.totalorder %s38, %s40
    %p44 = scmp.eq.s32.totalorder %s9, 0
    %p45 = por %p43, %p44
    %p46 = scmp.ne.s32.totalorder %s38, %s40
    %p47 = scmp.eq.s32.totalorder %s14, 1
    %p48 = por %p46, %p47
    %p49 = scmp.ne.s32.totalorder %s40, %s41
    %p50 = scmp.eq.s32.totalorder %s14, 0
    %p51 = por %p49, %p50
    %p52 = scmp.ne.s32.totalorder %s40, %s41
    %p53 = scmp.eq.s32.totalorder %s15, 1
    %p54 = por %p52, %p53
    %p56 = scmp.ne.s32.totalorder %s41, %s55
    %p57 = scmp.eq.s32.totalorder %s15, 0
    %p58 = por %p56, %p57
    %s59 = ssub.s32 %s9, %s16
    %p60 = scmp.eq.s32.totalorder %s59, 0
    %s62 = sadd.s32 %s61, 1
    %s63 = scalar_select %p60, %s61, %s62
    %p66 = pneg %p60
    %p67 = scmp.eq.s32.totalorder %s9, 1
    %p68 = por %p66, %p67
    %p69 = scmp.ne.s32.totalorder %s61, %s64
    %p70 = scmp.eq.s32.totalorder %s9, 0
    %p71 = por %p69, %p70
    %p72 = scmp.ne.s32.totalorder %s61, %s64
    %p73 = scmp.eq.s32.totalorder %s14, 1
    %p74 = por %p72, %p73
    %p75 = scmp.ne.s32.totalorder %s64, %s65
    %p76 = scmp.eq.s32.totalorder %s14, 0
    %p77 = por %p75, %p76
    %p78 = scmp.ne.s32.totalorder %s64, %s65
    %p79 = scmp.eq.s32.totalorder %s15, 1
    %p80 = por %p78, %p79
    %p82 = scmp.ne.s32.totalorder %s65, %s81
    %p83 = scmp.eq.s32.totalorder %s15, 0
    %p84 = por %p82, %p83
    %s85 = ssub.s32 %s9, %s16
    %p86 = scmp.eq.s32.totalorder %s85, 0
    %s88 = sadd.s32 %s87, 1
    %s89 = scalar_select %p86, %s87, %s88
    %p92 = pneg %p86
    %p93 = scmp.eq.s32.totalorder %s9, 1
    %p94 = por %p92, %p93
    %p95 = scmp.ne.s32.totalorder %s87, %s90
    %p96 = scmp.eq.s32.totalorder %s9, 0
    %p97 = por %p95, %p96
    %p98 = scmp.ne.s32.totalorder %s87, %s90
    %p99 = scmp.eq.s32.totalorder %s14, 1
    %p100 = por %p98, %p99
    %p101 = scmp.ne.s32.totalorder %s90, %s91
    %p102 = scmp.eq.s32.totalorder %s14, 0
    %p103 = por %p101, %p102
    %p104 = scmp.ne.s32.totalorder %s90, %s91
    %p105 = scmp.eq.s32.totalorder %s15, 1
    %p106 = por %p104, %p105
    %p108 = scmp.ne.s32.totalorder %s91, %s107
    %p109 = scmp.eq.s32.totalorder %s15, 0
    %p110 = por %p108, %p109
    %p111 = scmp.le.s32.totalorder 1, %s9
    %p112 = scmp.lt.s32.totalorder %s9, 3
    %p113 = pnand %p111, %p112
    %p114 = pneg %p113
    // Predicated region
    $region9: #{endown_forward.1} parent=5 // pred_check
      _
    $region10: #{endown_forward.1} parent=5 // pred_check_branch
      %116 = sbr.rel (%p113) target = $region12
    $region11: #{endown_forward.1} parent=5 // pred_region
      %s117 = ssub.s32 %s9, 1
      // Predicated region
      $region13: #{endown_forward.1} parent=11 // pred_check
        %p118 = pneg %p30
      $region14: #{endown_forward.1} parent=11 // pred_check_branch
        %120 = sbr.rel (%p118) target = $region16
      $region15: #{endown_forward.1} parent=11 // pred_region
        _
      $region16: #{endown_forward.1} parent=11 // pred_fallthru
        _
      // Predicated region
      $region17: #{endown_forward.1} parent=11 // pred_check
        %p121 = pneg %p51
      $region18: #{endown_forward.1} parent=11 // pred_check_branch
        %123 = sbr.rel (%p121) target = $region20
      $region19: #{endown_forward.1} parent=11 // pred_region
        _
      $region20: #{endown_forward.1} parent=11 // pred_fallthru
        _
    $region12: #{endown_forward.1} parent=5 // pred_fallthru
      _
    %p124 = scmp.lt.s32.totalorder %s9, 2
    // Predicated region
    $region21: #{endown_forward.1} parent=5 // pred_check
      %p125 = pneg %p124
    $region22: #{endown_forward.1} parent=5 // pred_check_branch
      %127 = sbr.rel (%p125) target = $region24
    $region23: #{endown_forward.1} parent=5 // pred_region
      // Predicated region
      $region25: #{endown_forward.1} parent=23 // pred_check
        %p128 = pneg %p71
      $region26: #{endown_forward.1} parent=23 // pred_check_branch
        %130 = sbr.rel (%p128) target = $region28
      $region27: #{endown_forward.1} parent=23 // pred_region
        %p131 = scmp.lt.s32.totalorder %s9, 1
        %s132 = scalar_select %p131, %s9, 1
        %s133 = smul.addr %s132, 48
        %s134 = smul.addr %s133, 2
        %s135 = scalar_lea.vmem %s2, %s134
      $region28: #{endown_forward.1} parent=23 // pred_fallthru
        _
    $region24: #{endown_forward.1} parent=5 // pred_fallthru
      _
    %p136 = scmp.le.s32.totalorder 1, %s9
    %p137 = scmp.lt.s32.totalorder %s9, 3
    %p138 = pnand %p136, %p137
    %p139 = pneg %p138
    // Predicated region
    $region29: #{endown_forward.1} parent=5 // pred_check
      _
    $region30: #{endown_forward.1} parent=5 // pred_check_branch
      %141 = sbr.rel (%p138) target = $region32
    $region31: #{endown_forward.1} parent=5 // pred_region
      %s142 = ssub.s32 %s9, 1
      %p143 = pneg %p30
      %p144 = pneg %p27
      %p145 = pneg %p51
      %p146 = pneg %p48
      %p147 = scmp.lt.s32.totalorder %s14, 1
      %s148 = scalar_select %p147, %s14, 1
      %s149 = smul.addr %s148, 48
      %s150 = smul.addr %s149, 2
      %s151 = scalar_lea.vmem %s2, %s150
      %p152 = pneg %p77
      %p153 = pneg %p74
      %p154 = pneg %p103
      %p155 = pneg %p100
      %p156 = scmp.lt.s32.totalorder %s14, 1
      %s157 = scalar_select %p156, %s14, 1
      %s158 = smul.addr %s157, 6
      %s159 = smul.addr %s158, 8
      %s160 = scalar_lea.vmem %s3, %s159
      %p161 = scmp.lt.s32.totalorder %s14, 1
      %s162 = scalar_select %p161, %s14, 1
      %s163 = smul.addr %s162, 48
      %s164 = smul.addr %s163, 2
      %s165 = scalar_lea.vmem %s2, %s164
      %p166 = scmp.lt.s32.totalorder %s14, 1
      %s167 = scalar_select %p166, %s14, 1
      %s168 = smul.addr %s167, 6
      %s169 = smul.addr %s168, 8
      %s170 = scalar_lea.vmem %s3, %s169
      %v172 = vld [vmem:[%s165] sm:$0xff]
      %v173 = vld [vmem:[%s165 + $0x8] sm:$0xf]
      %v174 = vld [vmem:[%s0] sm:$0xf]
      %s175 = scalar_lea.vmem %s165, 12
      %v176 = vld [vmem:[%s175] sm:$0xff]
      %v177 = vld [vmem:[%s175 + $0x8] sm:$0xf]
      %s178 = scalar_lea.vmem %s0, 4
      %v179 = vld [vmem:[%s178] sm:$0xf]
      %v182 = vcombine.high %v176, %v176
      %v184 = vunpack.c.l.s4 1983009808
      %v185 = vunpack.c.0.s8 %v184
      %v186 = vlaneseq
      %v187 = vshrl.u32 %v186, 7
      %v188 = vsub.s32 %v185, %v187
      %v189 = vrot.slane %v176, %v188
      %v191 = vunpack.c.l.s4 1983009808
      %v192 = vunpack.c.0.s8 %v191
      %v193 = vlaneseq
      %v194 = vshrl.u32 %v193, 7
      %v195 = vsub.s32 %v192, %v194
      %v196 = vrot.slane %v182, %v195
      %v197 = vcombine.high %v189, %v189
      %v198 = vcombine.high %v196, %v196
      %v200 = vunpack.c.l.s4 1983009808
      %v201 = vunpack.c.0.s8 %v200
      %v202 = vlaneseq
      %v203 = vshrl.u32 %v202, 7
      %v204 = vsub.s32 %v201, %v203
      %v205 = vrot.slane %v177, %v204
      %v206 = vcombine.high %v205, %v205
      %vm207 = vcmask 31744
      %v209 = vsel %vm207, %v179, 0
      %vm211 = vcmask 1041408
      %v213 = vsel %vm211, %v189, 0
      %v216 = vsel %vm211, %v197, 0
      %v219 = vsel %vm211, %v196, 0
      %v222 = vsel %vm211, %v198, 0
      %v225 = vsel %vm211, %v205, 0
      %v228 = vsel %vm211, %v206, 0
      %230 = vmatprep.subr.bf16.mxu0 %v216
      %231 = vmatpush1.bf16.msra.mxu0 %v213
      %232 = vmatprep.subr.bf16.mxu0 0
      %233 = vmatpush1.bf16.msra.mxu0 0
      %234 = vmatprep.subr.bf16.mxu0 0
      %235 = vmatpush1.bf16.msra.mxu0 0
      %236 = vmatprep.subr.bf16.mxu0 0
      %237 = vmatpush1.bf16.msra.mxu0 0
      %238 = vmatprep.subr.bf16.mxu0 0
      %239 = vmatpush1.bf16.msra.mxu0 0
      %240 = vmatprep.subr.bf16.mxu0 0
      %241 = vmatpush1.bf16.msra.mxu0 0
      %242 = vmatprep.subr.bf16.mxu0 0
      %243 = vmatpush1.bf16.msra.mxu0 0
      %244 = vmatprep.subr.bf16.mxu0 0
      %245 = vmatpush1.bf16.msra.mxu0 0
      %246 = vmatprep.subr.bf16.mxu0 0
      %247 = vmatpush1.bf16.msra.mxu0 0
      %248 = vmatprep.subr.bf16.mxu0 0
      %249 = vmatpush1.bf16.msra.mxu0 0
      %250 = vmatprep.subr.bf16.mxu0 0
      %251 = vmatpush1.bf16.msra.mxu0 0
      %252 = vmatprep.subr.bf16.mxu0 0
      %253 = vmatpush1.bf16.msra.mxu0 0
      %254 = vmatprep.subr.bf16.mxu0 0
      %255 = vmatpush1.bf16.msra.mxu0 0
      %256 = vmatprep.subr.bf16.mxu0 0
      %257 = vmatpush1.bf16.msra.mxu0 0
      %258 = vmatprep.subr.bf16.mxu0 0
      %259 = vmatpush1.bf16.msra.mxu0 0
      %260 = vmatprep.subr.bf16.mxu0 0
      %261 = vmatpush1.bf16.msra.mxu0 0
      %262 = vmatprep.mubr.bf16.mxu0 0
      %263 = vmatmul.mubr.bf16.gmra.mrb[0].mxu0 %v209
      %v264 = vpop.f32.mrb[0].mxu0
      %v265 = vadd.f32 0.0, %v264
      %v266 = vpop.f32.mrb[0].mxu0
      %v267 = vadd.f32 0.0, %v266
      %v268 = vpop.f32.mrb[0].mxu0
      %v269 = vpop.f32.mrb[0].mxu0
      %270 = vdwg.mxu0
      %271 = vmatprep.subr.bf16.mxu0 %v222
      %272 = vmatpush1.bf16.msra.mxu0 %v219
      %273 = vmatprep.subr.bf16.mxu0 0
      %274 = vmatpush1.bf16.msra.mxu0 0
      %275 = vmatprep.subr.bf16.mxu0 0
      %276 = vmatpush1.bf16.msra.mxu0 0
      %277 = vmatprep.subr.bf16.mxu0 0
      %278 = vmatpush1.bf16.msra.mxu0 0
      %279 = vmatprep.subr.bf16.mxu0 0
      %280 = vmatpush1.bf16.msra.mxu0 0
      %281 = vmatprep.subr.bf16.mxu0 0
      %282 = vmatpush1.bf16.msra.mxu0 0
      %283 = vmatprep.subr.bf16.mxu0 0
      %284 = vmatpush1.bf16.msra.mxu0 0
      %285 = vmatprep.subr.bf16.mxu0 0
      %286 = vmatpush1.bf16.msra.mxu0 0
      %287 = vmatprep.subr.bf16.mxu0 0
      %288 = vmatpush1.bf16.msra.mxu0 0
      %289 = vmatprep.subr.bf16.mxu0 0
      %290 = vmatpush1.bf16.msra.mxu0 0
      %291 = vmatprep.subr.bf16.mxu0 0
      %292 = vmatpush1.bf16.msra.mxu0 0
      %293 = vmatprep.subr.bf16.mxu0 0
      %294 = vmatpush1.bf16.msra.mxu0 0
      %295 = vmatprep.subr.bf16.mxu0 0
      %296 = vmatpush1.bf16.msra.mxu0 0
      %297 = vmatprep.subr.bf16.mxu0 0
      %298 = vmatpush1.bf16.msra.mxu0 0
      %299 = vmatprep.subr.bf16.mxu0 0
      %300 = vmatpush1.bf16.msra.mxu0 0
      %301 = vmatprep.subr.bf16.mxu0 0
      %302 = vmatpush1.bf16.msra.mxu0 0
      %303 = vmatprep.mubr.bf16.mxu0 0
      %304 = vmatmul.mubr.bf16.gmra.mrb[0].mxu0 %v209
      %v305 = vpop.f32.mrb[0].mxu0
      %v306 = vadd.f32 0.0, %v305
      %v307 = vpop.f32.mrb[0].mxu0
      %v308 = vadd.f32 0.0, %v307
      %v309 = vpop.f32.mrb[0].mxu0
      %v310 = vpop.f32.mrb[0].mxu0
      %311 = vdwg.mxu0
      %312 = vmatprep.subr.bf16.mxu0 %v228
      %313 = vmatpush1.bf16.msra.mxu0 %v225
      %314 = vmatprep.subr.bf16.mxu0 0
      %315 = vmatpush1.bf16.msra.mxu0 0
      %316 = vmatprep.subr.bf16.mxu0 0
      %317 = vmatpush1.bf16.msra.mxu0 0
      %318 = vmatprep.subr.bf16.mxu0 0
      %319 = vmatpush1.bf16.msra.mxu0 0
      %320 = vmatprep.subr.bf16.mxu0 0
      %321 = vmatpush1.bf16.msra.mxu0 0
      %322 = vmatprep.subr.bf16.mxu0 0
      %323 = vmatpush1.bf16.msra.mxu0 0
      %324 = vmatprep.subr.bf16.mxu0 0
      %325 = vmatpush1.bf16.msra.mxu0 0
      %326 = vmatprep.subr.bf16.mxu0 0
      %327 = vmatpush1.bf16.msra.mxu0 0
      %328 = vmatprep.subr.bf16.mxu0 0
      %329 = vmatpush1.bf16.msra.mxu0 0
      %330 = vmatprep.subr.bf16.mxu0 0
      %331 = vmatpush1.bf16.msra.mxu0 0
      %332 = vmatprep.subr.bf16.mxu0 0
      %333 = vmatpush1.bf16.msra.mxu0 0
      %334 = vmatprep.subr.bf16.mxu0 0
      %335 = vmatpush1.bf16.msra.mxu0 0
      %336 = vmatprep.subr.bf16.mxu0 0
      %337 = vmatpush1.bf16.msra.mxu0 0
      %338 = vmatprep.subr.bf16.mxu0 0
      %339 = vmatpush1.bf16.msra.mxu0 0
      %340 = vmatprep.subr.bf16.mxu0 0
      %341 = vmatpush1.bf16.msra.mxu0 0
      %342 = vmatprep.subr.bf16.mxu0 0
      %343 = vmatpush1.bf16.msra.mxu0 0
      %344 = vmatprep.mubr.bf16.mxu0 0
      %345 = vmatmul.mubr.bf16.gmra.mrb[0].mxu0 %v209
      %v346 = vpop.f32.mrb[0].mxu0
      %v347 = vadd.f32 0.0, %v346
      %v348 = vpop.f32.mrb[0].mxu0
      %v349 = vadd.f32 0.0, %v348
      %v350 = vpop.f32.mrb[0].mxu0
      %v351 = vpop.f32.mrb[0].mxu0
      %352 = vdwg.mxu0
      %v355 = vcombine.high %v172, %v172
      %v357 = vunpack.c.l.s4 1983009808
      %v358 = vunpack.c.0.s8 %v357
      %v359 = vlaneseq
      %v360 = vshrl.u32 %v359, 7
      %v361 = vsub.s32 %v358, %v360
      %v362 = vrot.slane %v172, %v361
      %v364 = vunpack.c.l.s4 1983009808
      %v365 = vunpack.c.0.s8 %v364
      %v366 = vlaneseq
      %v367 = vshrl.u32 %v366, 7
      %v368 = vsub.s32 %v365, %v367
      %v369 = vrot.slane %v355, %v368
      %v370 = vcombine.high %v362, %v362
      %v371 = vcombine.high %v369, %v369
      %v373 = vunpack.c.l.s4 1983009808
      %v374 = vunpack.c.0.s8 %v373
      %v375 = vlaneseq
      %v376 = vshrl.u32 %v375, 7
      %v377 = vsub.s32 %v374, %v376
      %v378 = vrot.slane %v173, %v377
      %v379 = vcombine.high %v378, %v378
      %v381 = vsel %vm207, %v174, 0
      %v384 = vsel %vm211, %v362, 0
      %v387 = vsel %vm211, %v370, 0
      %v390 = vsel %vm211, %v369, 0
      %v393 = vsel %vm211, %v371, 0
      %v396 = vsel %vm211, %v378, 0
      %v399 = vsel %vm211, %v379, 0
      %401 = vmatprep.subr.bf16.mxu0 %v387
      %402 = vmatpush1.bf16.msra.mxu0 %v384
      %403 = vmatprep.subr.bf16.mxu0 0
      %404 = vmatpush1.bf16.msra.mxu0 0
      %405 = vmatprep.subr.bf16.mxu0 0
      %406 = vmatpush1.bf16.msra.mxu0 0
      %407 = vmatprep.subr.bf16.mxu0 0
      %408 = vmatpush1.bf16.msra.mxu0 0
      %409 = vmatprep.subr.bf16.mxu0 0
      %410 = vmatpush1.bf16.msra.mxu0 0
      %411 = vmatprep.subr.bf16.mxu0 0
      %412 = vmatpush1.bf16.msra.mxu0 0
      %413 = vmatprep.subr.bf16.mxu0 0
      %414 = vmatpush1.bf16.msra.mxu0 0
      %415 = vmatprep.subr.bf16.mxu0 0
      %416 = vmatpush1.bf16.msra.mxu0 0
      %417 = vmatprep.subr.bf16.mxu0 0
      %418 = vmatpush1.bf16.msra.mxu0 0
      %419 = vmatprep.subr.bf16.mxu0 0
      %420 = vmatpush1.bf16.msra.mxu0 0
      %421 = vmatprep.subr.bf16.mxu0 0
      %422 = vmatpush1.bf16.msra.mxu0 0
      %423 = vmatprep.subr.bf16.mxu0 0
      %424 = vmatpush1.bf16.msra.mxu0 0
      %425 = vmatprep.subr.bf16.mxu0 0
      %426 = vmatpush1.bf16.msra.mxu0 0
      %427 = vmatprep.subr.bf16.mxu0 0
      %428 = vmatpush1.bf16.msra.mxu0 0
      %429 = vmatprep.subr.bf16.mxu0 0
      %430 = vmatpush1.bf16.msra.mxu0 0
      %431 = vmatprep.subr.bf16.mxu0 0
      %432 = vmatpush1.bf16.msra.mxu0 0
      %433 = vmatprep.mubr.bf16.mxu0 0
      %434 = vmatmul.mubr.bf16.gmra.mrb[0].mxu0 %v381
      %v435 = vpop.f32.mrb[0].mxu0
      %v436 = vadd.f32 %v265, %v435
      %v437 = vpop.f32.mrb[0].mxu0
      %v438 = vadd.f32 %v267, %v437
      %v439 = vpop.f32.mrb[0].mxu0
      %v440 = vpop.f32.mrb[0].mxu0
      %441 = vdwg.mxu0
      %442 = vmatprep.subr.bf16.mxu0 %v393
      %443 = vmatpush1.bf16.msra.mxu0 %v390
      %444 = vmatprep.subr.bf16.mxu0 0
      %445 = vmatpush1.bf16.msra.mxu0 0
      %446 = vmatprep.subr.bf16.mxu0 0
      %447 = vmatpush1.bf16.msra.mxu0 0
      %448 = vmatprep.subr.bf16.mxu0 0
      %449 = vmatpush1.bf16.msra.mxu0 0
      %450 = vmatprep.subr.bf16.mxu0 0
      %451 = vmatpush1.bf16.msra.mxu0 0
      %452 = vmatprep.subr.bf16.mxu0 0
      %453 = vmatpush1.bf16.msra.mxu0 0
      %454 = vmatprep.subr.bf16.mxu0 0
      %455 = vmatpush1.bf16.msra.mxu0 0
      %456 = vmatprep.subr.bf16.mxu0 0
      %457 = vmatpush1.bf16.msra.mxu0 0
      %458 = vmatprep.subr.bf16.mxu0 0
      %459 = vmatpush1.bf16.msra.mxu0 0
      %460 = vmatprep.subr.bf16.mxu0 0
      %461 = vmatpush1.bf16.msra.mxu0 0
      %462 = vmatprep.subr.bf16.mxu0 0
      %463 = vmatpush1.bf16.msra.mxu0 0
      %464 = vmatprep.subr.bf16.mxu0 0
      %465 = vmatpush1.bf16.msra.mxu0 0
      %466 = vmatprep.subr.bf16.mxu0 0
      %467 = vmatpush1.bf16.msra.mxu0 0
      %468 = vmatprep.subr.bf16.mxu0 0
      %469 = vmatpush1.bf16.msra.mxu0 0
      %470 = vmatprep.subr.bf16.mxu0 0
      %471 = vmatpush1.bf16.msra.mxu0 0
      %472 = vmatprep.subr.bf16.mxu0 0
      %473 = vmatpush1.bf16.msra.mxu0 0
      %474 = vmatprep.mubr.bf16.mxu0 0
      %475 = vmatmul.mubr.bf16.gmra.mrb[0].mxu0 %v381
      %v476 = vpop.f32.mrb[0].mxu0
      %v477 = vadd.f32 %v306, %v476
      %v478 = vpop.f32.mrb[0].mxu0
      %v479 = vadd.f32 %v308, %v478
      %v480 = vpop.f32.mrb[0].mxu0
      %v481 = vpop.f32.mrb[0].mxu0
      %482 = vdwg.mxu0
      %483 = vmatprep.subr.bf16.mxu0 %v399
      %484 = vmatpush1.bf16.msra.mxu0 %v396
      %485 = vmatprep.subr.bf16.mxu0 0
      %486 = vmatpush1.bf16.msra.mxu0 0
      %487 = vmatprep.subr.bf16.mxu0 0
      %488 = vmatpush1.bf16.msra.mxu0 0
      %489 = vmatprep.subr.bf16.mxu0 0
      %490 = vmatpush1.bf16.msra.mxu0 0
      %491 = vmatprep.subr.bf16.mxu0 0
      %492 = vmatpush1.bf16.msra.mxu0 0
      %493 = vmatprep.subr.bf16.mxu0 0
      %494 = vmatpush1.bf16.msra.mxu0 0
      %495 = vmatprep.subr.bf16.mxu0 0
      %496 = vmatpush1.bf16.msra.mxu0 0
      %497 = vmatprep.subr.bf16.mxu0 0
      %498 = vmatpush1.bf16.msra.mxu0 0
      %499 = vmatprep.subr.bf16.mxu0 0
      %500 = vmatpush1.bf16.msra.mxu0 0
      %501 = vmatprep.subr.bf16.mxu0 0
      %502 = vmatpush1.bf16.msra.mxu0 0
      %503 = vmatprep.subr.bf16.mxu0 0
      %504 = vmatpush1.bf16.msra.mxu0 0
      %505 = vmatprep.subr.bf16.mxu0 0
      %506 = vmatpush1.bf16.msra.mxu0 0
      %507 = vmatprep.subr.bf16.mxu0 0
      %508 = vmatpush1.bf16.msra.mxu0 0
      %509 = vmatprep.subr.bf16.mxu0 0
      %510 = vmatpush1.bf16.msra.mxu0 0
      %511 = vmatprep.subr.bf16.mxu0 0
      %512 = vmatpush1.bf16.msra.mxu0 0
      %513 = vmatprep.subr.bf16.mxu0 0
      %514 = vmatpush1.bf16.msra.mxu0 0
      %515 = vmatprep.mubr.bf16.mxu0 0
      %516 = vmatmul.mubr.bf16.gmra.mrb[0].mxu0 %v381
      %v517 = vpop.f32.mrb[0].mxu0
      %v518 = vadd.f32 %v347, %v517
      %v519 = vpop.f32.mrb[0].mxu0
      %v520 = vadd.f32 %v349, %v519
      %v521 = vpop.f32.mrb[0].mxu0
      %v522 = vpop.f32.mrb[0].mxu0
      %523 = vdwg.mxu0
      %v524 = vld [vmem:[%s165] sm:$0xff]
      %v525 = vld [vmem:[%s165 + $0x8] sm:$0xf]
      %s526 = scalar_lea.vmem %s0, 8
      %v527 = vld [vmem:[%s526] sm:$0xf]
      %v530 = vcombine.high %v524, %v524
      %v532 = vunpack.c.l.s4 1983009808
      %v533 = vunpack.c.0.s8 %v532
      %v534 = vlaneseq
      %v535 = vshrl.u32 %v534, 7
      %v536 = vsub.s32 %v533, %v535
      %v537 = vrot.slane %v524, %v536
      %v539 = vunpack.c.l.s4 1983009808
      %v540 = vunpack.c.0.s8 %v539
      %v541 = vlaneseq
      %v542 = vshrl.u32 %v541, 7
      %v543 = vsub.s32 %v540, %v542
      %v544 = vrot.slane %v530, %v543
      %v545 = vcombine.high %v537, %v537
      %v546 = vcombine.high %v544, %v544
      %v548 = vunpack.c.l.s4 1983009808
      %v549 = vunpack.c.0.s8 %v548
      %v550 = vlaneseq
      %v551 = vshrl.u32 %v550, 7
      %v552 = vsub.s32 %v549, %v551
      %v553 = vrot.slane %v525, %v552
      %v554 = vcombine.high %v553, %v553
      %555 = vrot.lane.b32.xlu0 %v537, 127
      %v556 = vpop.permute.xlu0 %555
      %557 = vrot.lane.b32.xlu0 %v545, 127
      %v558 = vpop.permute.xlu0 %557
      %559 = vrot.lane.b32.xlu0 %v544, 127
      %v560 = vpop.permute.xlu0 %559
      %561 = vrot.lane.b32.xlu0 %v546, 127
      %v562 = vpop.permute.xlu0 %561
      %563 = vrot.lane.b32.xlu0 %v553, 127
      %v564 = vpop.permute.xlu0 %563
      %565 = vrot.lane.b32.xlu0 %v554, 127
      %v566 = vpop.permute.xlu0 %565
      %vm567 = vcmask 1039360
      %v568 = vsel %vm567, %v556, %v558
      %v569 = vsel %vm567, %v558, %v560
      %v570 = vsel %vm567, %v560, %v562
      %v571 = vsel %vm567, %v562, %v564
      %v572 = vsel %vm567, %v564, %v566
      %v574 = vsel %vm207, %v527, 0
      %v577 = vsel %vm211, %v568, 0
      %v580 = vsel %vm211, %v569, 0
      %v583 = vsel %vm211, %v570, 0
      %v586 = vsel %vm211, %v571, 0
      %v589 = vsel %vm211, %v572, 0
      %v592 = vsel %vm211, %v566, 0
      %594 = vmatprep.subr.bf16.mxu0 %v580
      %595 = vmatpush1.bf16.msra.mxu0 %v577
      %596 = vmatprep.subr.bf16.mxu0 0
      %597 = vmatpush1.bf16.msra.mxu0 0
      %598 = vmatprep.subr.bf16.mxu0 0
      %599 = vmatpush1.bf16.msra.mxu0 0
      %600 = vmatprep.subr.bf16.mxu0 0
      %601 = vmatpush1.bf16.msra.mxu0 0
      %602 = vmatprep.subr.bf16.mxu0 0
      %603 = vmatpush1.bf16.msra.mxu0 0
      %604 = vmatprep.subr.bf16.mxu0 0
      %605 = vmatpush1.bf16.msra.mxu0 0
      %606 = vmatprep.subr.bf16.mxu0 0
      %607 = vmatpush1.bf16.msra.mxu0 0
      %608 = vmatprep.subr.bf16.mxu0 0
      %609 = vmatpush1.bf16.msra.mxu0 0
      %610 = vmatprep.subr.bf16.mxu0 0
      %611 = vmatpush1.bf16.msra.mxu0 0
      %612 = vmatprep.subr.bf16.mxu0 0
      %613 = vmatpush1.bf16.msra.mxu0 0
      %614 = vmatprep.subr.bf16.mxu0 0
      %615 = vmatpush1.bf16.msra.mxu0 0
      %616 = vmatprep.subr.bf16.mxu0 0
      %617 = vmatpush1.bf16.msra.mxu0 0
      %618 = vmatprep.subr.bf16.mxu0 0
      %619 = vmatpush1.bf16.msra.mxu0 0
      %620 = vmatprep.subr.bf16.mxu0 0
      %621 = vmatpush1.bf16.msra.mxu0 0
      %622 = vmatprep.subr.bf16.mxu0 0
      %623 = vmatpush1.bf16.msra.mxu0 0
      %624 = vmatprep.subr.bf16.mxu0 0
      %625 = vmatpush1.bf16.msra.mxu0 0
      %626 = vmatprep.mubr.bf16.mxu0 0
      %627 = vmatmul.mubr.bf16.gmra.mrb[0].mxu0 %v574
      %v628 = vpop.f32.mrb[0].mxu0
      %v629 = vadd.f32 0.0, %v628
      %v630 = vpop.f32.mrb[0].mxu0
      %v631 = vadd.f32 0.0, %v630
      %v632 = vpop.f32.mrb[0].mxu0
      %v633 = vpop.f32.mrb[0].mxu0
      %634 = vdwg.mxu0
      %635 = vmatprep.subr.bf16.mxu0 %v586
      %636 = vmatpush1.bf16.msra.mxu0 %v583
      %637 = vmatprep.subr.bf16.mxu0 0
      %638 = vmatpush1.bf16.msra.mxu0 0
      %639 = vmatprep.subr.bf16.mxu0 0
      %640 = vmatpush1.bf16.msra.mxu0 0
      %641 = vmatprep.subr.bf16.mxu0 0
      %642 = vmatpush1.bf16.msra.mxu0 0
      %643 = vmatprep.subr.bf16.mxu0 0
      %644 = vmatpush1.bf16.msra.mxu0 0
      %645 = vmatprep.subr.bf16.mxu0 0
      %646 = vmatpush1.bf16.msra.mxu0 0
      %647 = vmatprep.subr.bf16.mxu0 0
      %648 = vmatpush1.bf16.msra.mxu0 0
      %649 = vmatprep.subr.bf16.mxu0 0
      %650 = vmatpush1.bf16.msra.mxu0 0
      %651 = vmatprep.subr.bf16.mxu0 0
      %652 = vmatpush1.bf16.msra.mxu0 0
      %653 = vmatprep.subr.bf16.mxu0 0
      %654 = vmatpush1.bf16.msra.mxu0 0
      %655 = vmatprep.subr.bf16.mxu0 0
      %656 = vmatpush1.bf16.msra.mxu0 0
      %657 = vmatprep.subr.bf16.mxu0 0
      %658 = vmatpush1.bf16.msra.mxu0 0
      %659 = vmatprep.subr.bf16.mxu0 0
      %660 = vmatpush1.bf16.msra.mxu0 0
      %661 = vmatprep.subr.bf16.mxu0 0
      %662 = vmatpush1.bf16.msra.mxu0 0
      %663 = vmatprep.subr.bf16.mxu0 0
      %664 = vmatpush1.bf16.msra.mxu0 0
      %665 = vmatprep.subr.bf16.mxu0 0
      %666 = vmatpush1.bf16.msra.mxu0 0
      %667 = vmatprep.mubr.bf16.mxu0 0
      %668 = vmatmul.mubr.bf16.gmra.mrb[0].mxu0 %v574
      %v669 = vpop.f32.mrb[0].mxu0
      %v670 = vadd.f32 0.0, %v669
      %v671 = vpop.f32.mrb[0].mxu0
      %v672 = vadd.f32 0.0, %v671
      %v673 = vpop.f32.mrb[0].mxu0
      %v674 = vpop.f32.mrb[0].mxu0
      %675 = vdwg.mxu0
      %676 = vmatprep.subr.bf16.mxu0 %v592
      %677 = vmatpush1.bf16.msra.mxu0 %v589
      %678 = vmatprep.subr.bf16.mxu0 0
      %679 = vmatpush1.bf16.msra.mxu0 0
      %680 = vmatprep.subr.bf16.mxu0 0
      %681 = vmatpush1.bf16.msra.mxu0 0
      %682 = vmatprep.subr.bf16.mxu0 0
      %683 = vmatpush1.bf16.msra.mxu0 0
      %684 = vmatprep.subr.bf16.mxu0 0
      %685 = vmatpush1.bf16.msra.mxu0 0
      %686 = vmatprep.subr.bf16.mxu0 0
      %687 = vmatpush1.bf16.msra.mxu0 0
      %688 = vmatprep.subr.bf16.mxu0 0
      %689 = vmatpush1.bf16.msra.mxu0 0
      %690 = vmatprep.subr.bf16.mxu0 0
      %691 = vmatpush1.bf16.msra.mxu0 0
      %692 = vmatprep.subr.bf16.mxu0 0
      %693 = vmatpush1.bf16.msra.mxu0 0
      %694 = vmatprep.subr.bf16.mxu0 0
      %695 = vmatpush1.bf16.msra.mxu0 0
      %696 = vmatprep.subr.bf16.mxu0 0
      %697 = vmatpush1.bf16.msra.mxu0 0
      %698 = vmatprep.subr.bf16.mxu0 0
      %699 = vmatpush1.bf16.msra.mxu0 0
      %700 = vmatprep.subr.bf16.mxu0 0
      %701 = vmatpush1.bf16.msra.mxu0 0
      %702 = vmatprep.subr.bf16.mxu0 0
      %703 = vmatpush1.bf16.msra.mxu0 0
      %704 = vmatprep.subr.bf16.mxu0 0
      %705 = vmatpush1.bf16.msra.mxu0 0
      %706 = vmatprep.subr.bf16.mxu0 0
      %707 = vmatpush1.bf16.msra.mxu0 0
      %708 = vmatprep.mubr.bf16.mxu0 0
      %709 = vmatmul.mubr.bf16.gmra.mrb[0].mxu0 %v574
      %v710 = vpop.f32.mrb[0].mxu0
      %v711 = vadd.f32 0.0, %v710
      %v712 = vpop.f32.mrb[0].mxu0
      %v713 = vadd.f32 0.0, %v712
      %v714 = vpop.f32.mrb[0].mxu0
      %v715 = vpop.f32.mrb[0].mxu0
      %716 = vdwg.mxu0
      %v717 = vadd.f32 %v436, %v629
      %v718 = vadd.f32 %v438, %v631
      %v719 = vadd.f32 %v477, %v670
      %v720 = vadd.f32 %v479, %v672
      %v721 = vadd.f32 %v518, %v711
      %v722 = vadd.f32 %v520, %v713
      %s723 = scalar_lea.vmem %s165, 24
      %v724 = vld [vmem:[%s723] sm:$0xff]
      %v725 = vld [vmem:[%s723 + $0x8] sm:$0xf]
      %s726 = scalar_lea.vmem %s0, 12
      %v727 = vld [vmem:[%s726] sm:$0xf]
      %v730 = vcombine.high %v724, %v724
      %v732 = vunpack.c.l.s4 1983009808
      %v733 = vunpack.c.0.s8 %v732
      %v734 = vlaneseq
      %v735 = vshrl.u32 %v734, 7
      %v736 = vsub.s32 %v733, %v735
      %v737 = vrot.slane %v724, %v736
      %v739 = vunpack.c.l.s4 1983009808
      %v740 = vunpack.c.0.s8 %v739
      %v741 = vlaneseq
      %v742 = vshrl.u32 %v741, 7
      %v743 = vsub.s32 %v740, %v742
      %v744 = vrot.slane %v730, %v743
      %v745 = vcombine.high %v737, %v737
      %v746 = vcombine.high %v744, %v744
      %v748 = vunpack.c.l.s4 1983009808
      %v749 = vunpack.c.0.s8 %v748
      %v750 = vlaneseq
      %v751 = vshrl.u32 %v750, 7
      %v752 = vsub.s32 %v749, %v751
      %v753 = vrot.slane %v725, %v752
      %v754 = vcombine.high %v753, %v753
      %v756 = vsel %vm207, %v727, 0
      %v759 = vsel %vm211, %v737, 0
      %v762 = vsel %vm211, %v745, 0
      %v765 = vsel %vm211, %v744, 0
      %v768 = vsel %vm211, %v746, 0
      %v771 = vsel %vm211, %v753, 0
      %v774 = vsel %vm211, %v754, 0
      %776 = vmatprep.subr.bf16.mxu0 %v762
      %777 = vmatpush1.bf16.msra.mxu0 %v759
      %778 = vmatprep.subr.bf16.mxu0 0
      %779 = vmatpush1.bf16.msra.mxu0 0
      %780 = vmatprep.subr.bf16.mxu0 0
      %781 = vmatpush1.bf16.msra.mxu0 0
      %782 = vmatprep.subr.bf16.mxu0 0
      %783 = vmatpush1.bf16.msra.mxu0 0
      %784 = vmatprep.subr.bf16.mxu0 0
      %785 = vmatpush1.bf16.msra.mxu0 0
      %786 = vmatprep.subr.bf16.mxu0 0
      %787 = vmatpush1.bf16.msra.mxu0 0
      %788 = vmatprep.subr.bf16.mxu0 0
      %789 = vmatpush1.bf16.msra.mxu0 0
      %790 = vmatprep.subr.bf16.mxu0 0
      %791 = vmatpush1.bf16.msra.mxu0 0
      %792 = vmatprep.subr.bf16.mxu0 0
      %793 = vmatpush1.bf16.msra.mxu0 0
      %794 = vmatprep.subr.bf16.mxu0 0
      %795 = vmatpush1.bf16.msra.mxu0 0
      %796 = vmatprep.subr.bf16.mxu0 0
      %797 = vmatpush1.bf16.msra.mxu0 0
      %798 = vmatprep.subr.bf16.mxu0 0
      %799 = vmatpush1.bf16.msra.mxu0 0
      %800 = vmatprep.subr.bf16.mxu0 0
      %801 = vmatpush1.bf16.msra.mxu0 0
      %802 = vmatprep.subr.bf16.mxu0 0
      %803 = vmatpush1.bf16.msra.mxu0 0
      %804 = vmatprep.subr.bf16.mxu0 0
      %805 = vmatpush1.bf16.msra.mxu0 0
      %806 = vmatprep.subr.bf16.mxu0 0
      %807 = vmatpush1.bf16.msra.mxu0 0
      %808 = vmatprep.mubr.bf16.mxu0 0
      %809 = vmatmul.mubr.bf16.gmra.mrb[0].mxu0 %v756
      %v810 = vpop.f32.mrb[0].mxu0
      %v811 = vadd.f32 0.0, %v810
      %v812 = vpop.f32.mrb[0].mxu0
      %v813 = vadd.f32 0.0, %v812
      %v814 = vpop.f32.mrb[0].mxu0
      %v815 = vpop.f32.mrb[0].mxu0
      %816 = vdwg.mxu0
      %817 = vmatprep.subr.bf16.mxu0 %v768
      %818 = vmatpush1.bf16.msra.mxu0 %v765
      %819 = vmatprep.subr.bf16.mxu0 0
      %820 = vmatpush1.bf16.msra.mxu0 0
      %821 = vmatprep.subr.bf16.mxu0 0
      %822 = vmatpush1.bf16.msra.mxu0 0
      %823 = vmatprep.subr.bf16.mxu0 0
      %824 = vmatpush1.bf16.msra.mxu0 0
      %825 = vmatprep.subr.bf16.mxu0 0
      %826 = vmatpush1.bf16.msra.mxu0 0
      %827 = vmatprep.subr.bf16.mxu0 0
      %828 = vmatpush1.bf16.msra.mxu0 0
      %829 = vmatprep.subr.bf16.mxu0 0
      %830 = vmatpush1.bf16.msra.mxu0 0
      %831 = vmatprep.subr.bf16.mxu0 0
      %832 = vmatpush1.bf16.msra.mxu0 0
      %833 = vmatprep.subr.bf16.mxu0 0
      %834 = vmatpush1.bf16.msra.mxu0 0
      %835 = vmatprep.subr.bf16.mxu0 0
      %836 = vmatpush1.bf16.msra.mxu0 0
      %837 = vmatprep.subr.bf16.mxu0 0
      %838 = vmatpush1.bf16.msra.mxu0 0
      %839 = vmatprep.subr.bf16.mxu0 0
      %840 = vmatpush1.bf16.msra.mxu0 0
      %841 = vmatprep.subr.bf16.mxu0 0
      %842 = vmatpush1.bf16.msra.mxu0 0
      %843 = vmatprep.subr.bf16.mxu0 0
      %844 = vmatpush1.bf16.msra.mxu0 0
      %845 = vmatprep.subr.bf16.mxu0 0
      %846 = vmatpush1.bf16.msra.mxu0 0
      %847 = vmatprep.subr.bf16.mxu0 0
      %848 = vmatpush1.bf16.msra.mxu0 0
      %849 = vmatprep.mubr.bf16.mxu0 0
      %850 = vmatmul.mubr.bf16.gmra.mrb[0].mxu0 %v756
      %v851 = vpop.f32.mrb[0].mxu0
      %v852 = vadd.f32 0.0, %v851
      %v853 = vpop.f32.mrb[0].mxu0
      %v854 = vadd.f32 0.0, %v853
      %v855 = vpop.f32.mrb[0].mxu0
      %v856 = vpop.f32.mrb[0].mxu0
      %857 = vdwg.mxu0
      %858 = vmatprep.subr.bf16.mxu0 %v774
      %859 = vmatpush1.bf16.msra.mxu0 %v771
      %860 = vmatprep.subr.bf16.mxu0 0
      %861 = vmatpush1.bf16.msra.mxu0 0
      %862 = vmatprep.subr.bf16.mxu0 0
      %863 = vmatpush1.bf16.msra.mxu0 0
      %864 = vmatprep.subr.bf16.mxu0 0
      %865 = vmatpush1.bf16.msra.mxu0 0
      %866 = vmatprep.subr.bf16.mxu0 0
      %867 = vmatpush1.bf16.msra.mxu0 0
      %868 = vmatprep.subr.bf16.mxu0 0
      %869 = vmatpush1.bf16.msra.mxu0 0
      %870 = vmatprep.subr.bf16.mxu0 0
      %871 = vmatpush1.bf16.msra.mxu0 0
      %872 = vmatprep.subr.bf16.mxu0 0
      %873 = vmatpush1.bf16.msra.mxu0 0
      %874 = vmatprep.subr.bf16.mxu0 0
      %875 = vmatpush1.bf16.msra.mxu0 0
      %876 = vmatprep.subr.bf16.mxu0 0
      %877 = vmatpush1.bf16.msra.mxu0 0
      %878 = vmatprep.subr.bf16.mxu0 0
      %879 = vmatpush1.bf16.msra.mxu0 0
      %880 = vmatprep.subr.bf16.mxu0 0
      %881 = vmatpush1.bf16.msra.mxu0 0
      %882 = vmatprep.subr.bf16.mxu0 0
      %883 = vmatpush1.bf16.msra.mxu0 0
      %884 = vmatprep.subr.bf16.mxu0 0
      %885 = vmatpush1.bf16.msra.mxu0 0
      %886 = vmatprep.subr.bf16.mxu0 0
      %887 = vmatpush1.bf16.msra.mxu0 0
      %888 = vmatprep.subr.bf16.mxu0 0
      %889 = vmatpush1.bf16.msra.mxu0 0
      %890 = vmatprep.mubr.bf16.mxu0 0
      %891 = vmatmul.mubr.bf16.gmra.mrb[0].mxu0 %v756
      %v892 = vpop.f32.mrb[0].mxu0
      %v893 = vadd.f32 0.0, %v892
      %v894 = vpop.f32.mrb[0].mxu0
      %v895 = vadd.f32 0.0, %v894
      %v896 = vpop.f32.mrb[0].mxu0
      %v897 = vpop.f32.mrb[0].mxu0
      %898 = vdwg.mxu0
      %v899 = vadd.f32 %v717, %v811
      %v900 = vadd.f32 %v718, %v813
      %v901 = vadd.f32 %v719, %v852
      %v902 = vadd.f32 %v720, %v854
      %v903 = vadd.f32 %v721, %v893
      %v904 = vadd.f32 %v722, %v895
      %s905 = scalar_lea.vmem %s165, 36
      %v906 = vld [vmem:[%s905] sm:$0xff]
      %v907 = vld [vmem:[%s905 + $0x8] sm:$0xf]
      %s908 = scalar_lea.vmem %s0, 16
      %v909 = vld [vmem:[%s908] sm:$0xf]
      %v912 = vcombine.high %v906, %v906
      %v914 = vunpack.c.l.s4 1983009808
      %v915 = vunpack.c.0.s8 %v914
      %v916 = vlaneseq
      %v917 = vshrl.u32 %v916, 7
      %v918 = vsub.s32 %v915, %v917
      %v919 = vrot.slane %v906, %v918
      %v921 = vunpack.c.l.s4 1983009808
      %v922 = vunpack.c.0.s8 %v921
      %v923 = vlaneseq
      %v924 = vshrl.u32 %v923, 7
      %v925 = vsub.s32 %v922, %v924
      %v926 = vrot.slane %v912, %v925
      %v927 = vcombine.high %v919, %v919
      %v928 = vcombine.high %v926, %v926
      %v930 = vunpack.c.l.s4 1983009808
      %v931 = vunpack.c.0.s8 %v930
      %v932 = vlaneseq
      %v933 = vshrl.u32 %v932, 7
      %v934 = vsub.s32 %v931, %v933
      %v935 = vrot.slane %v907, %v934
      %v936 = vcombine.high %v935, %v935
      %v938 = vsel %vm207, %v909, 0
      %v941 = vsel %vm211, %v919, 0
      %v944 = vsel %vm211, %v927, 0
      %v947 = vsel %vm211, %v926, 0
      %v950 = vsel %vm211, %v928, 0
      %v953 = vsel %vm211, %v935, 0
      %v956 = vsel %vm211, %v936, 0
      %958 = vmatprep.subr.bf16.mxu0 %v944
      %959 = vmatpush1.bf16.msra.mxu0 %v941
      %960 = vmatprep.subr.bf16.mxu0 0
      %961 = vmatpush1.bf16.msra.mxu0 0
      %962 = vmatprep.subr.bf16.mxu0 0
      %963 = vmatpush1.bf16.msra.mxu0 0
      %964 = vmatprep.subr.bf16.mxu0 0
      %965 = vmatpush1.bf16.msra.mxu0 0
      %966 = vmatprep.subr.bf16.mxu0 0
      %967 = vmatpush1.bf16.msra.mxu0 0
      %968 = vmatprep.subr.bf16.mxu0 0
      %969 = vmatpush1.bf16.msra.mxu0 0
      %970 = vmatprep.subr.bf16.mxu0 0
      %971 = vmatpush1.bf16.msra.mxu0 0
      %972 = vmatprep.subr.bf16.mxu0 0
      %973 = vmatpush1.bf16.msra.mxu0 0
      %974 = vmatprep.subr.bf16.mxu0 0
      %975 = vmatpush1.bf16.msra.mxu0 0
      %976 = vmatprep.subr.bf16.mxu0 0
      %977 = vmatpush1.bf16.msra.mxu0 0
      %978 = vmatprep.subr.bf16.mxu0 0
      %979 = vmatpush1.bf16.msra.mxu0 0
      %980 = vmatprep.subr.bf16.mxu0 0
      %981 = vmatpush1.bf16.msra.mxu0 0
      %982 = vmatprep.subr.bf16.mxu0 0
      %983 = vmatpush1.bf16.msra.mxu0 0
      %984 = vmatprep.subr.bf16.mxu0 0
      %985 = vmatpush1.bf16.msra.mxu0 0
      %986 = vmatprep.subr.bf16.mxu0 0
      %987 = vmatpush1.bf16.msra.mxu0 0
      %988 = vmatprep.subr.bf16.mxu0 0
      %989 = vmatpush1.bf16.msra.mxu0 0
      %990 = vmatprep.mubr.bf16.mxu0 0
      %991 = vmatmul.mubr.bf16.gmra.mrb[0].mxu0 %v938
      %v992 = vpop.f32.mrb[0].mxu0
      %v993 = vadd.f32 0.0, %v992
      %v994 = vpop.f32.mrb[0].mxu0
      %v995 = vadd.f32 0.0, %v994
      %v996 = vpop.f32.mrb[0].mxu0
      %v997 = vpop.f32.mrb[0].mxu0
      %998 = vdwg.mxu0
      %999 = vmatprep.subr.bf16.mxu0 %v950
      %1000 = vmatpush1.bf16.msra.mxu0 %v947
      %1001 = vmatprep.subr.bf16.mxu0 0
      %1002 = vmatpush1.bf16.msra.mxu0 0
      %1003 = vmatprep.subr.bf16.mxu0 0
      %1004 = vmatpush1.bf16.msra.mxu0 0
      %1005 = vmatprep.subr.bf16.mxu0 0
      %1006 = vmatpush1.bf16.msra.mxu0 0
      %1007 = vmatprep.subr.bf16.mxu0 0
      %1008 = vmatpush1.bf16.msra.mxu0 0
      %1009 = vmatprep.subr.bf16.mxu0 0
      %1010 = vmatpush1.bf16.msra.mxu0 0
      %1011 = vmatprep.subr.bf16.mxu0 0
      %1012 = vmatpush1.bf16.msra.mxu0 0
      %1013 = vmatprep.subr.bf16.mxu0 0
      %1014 = vmatpush1.bf16.msra.mxu0 0
      %1015 = vmatprep.subr.bf16.mxu0 0
      %1016 = vmatpush1.bf16.msra.mxu0 0
      %1017 = vmatprep.subr.bf16.mxu0 0
      %1018 = vmatpush1.bf16.msra.mxu0 0
      %1019 = vmatprep.subr.bf16.mxu0 0
      %1020 = vmatpush1.bf16.msra.mxu0 0
      %1021 = vmatprep.subr.bf16.mxu0 0
      %1022 = vmatpush1.bf16.msra.mxu0 0
      %1023 = vmatprep.subr.bf16.mxu0 0
      %1024 = vmatpush1.bf16.msra.mxu0 0
      %1025 = vmatprep.subr.bf16.mxu0 0
      %1026 = vmatpush1.bf16.msra.mxu0 0
      %1027 = vmatprep.subr.bf16.mxu0 0
      %1028 = vmatpush1.bf16.msra.mxu0 0
      %1029 = vmatprep.subr.bf16.mxu0 0
      %1030 = vmatpush1.bf16.msra.mxu0 0
      %1031 = vmatprep.mubr.bf16.mxu0 0
      %1032 = vmatmul.mubr.bf16.gmra.mrb[0].mxu0 %v938
      %v1033 = vpop.f32.mrb[0].mxu0
      %v1034 = vadd.f32 0.0, %v1033
      %v1035 = vpop.f32.mrb[0].mxu0
      %v1036 = vadd.f32 0.0, %v1035
      %v1037 = vpop.f32.mrb[0].mxu0
      %v1038 = vpop.f32.mrb[0].mxu0
      %1039 = vdwg.mxu0
      %1040 = vmatprep.subr.bf16.mxu0 %v956
      %1041 = vmatpush1.bf16.msra.mxu0 %v953
      %1042 = vmatprep.subr.bf16.mxu0 0
      %1043 = vmatpush1.bf16.msra.mxu0 0
      %1044 = vmatprep.subr.bf16.mxu0 0
      %1045 = vmatpush1.bf16.msra.mxu0 0
      %1046 = vmatprep.subr.bf16.mxu0 0
      %1047 = vmatpush1.bf16.msra.mxu0 0
      %1048 = vmatprep.subr.bf16.mxu0 0
      %1049 = vmatpush1.bf16.msra.mxu0 0
      %1050 = vmatprep.subr.bf16.mxu0 0
      %1051 = vmatpush1.bf16.msra.mxu0 0
      %1052 = vmatprep.subr.bf16.mxu0 0
      %1053 = vmatpush1.bf16.msra.mxu0 0
      %1054 = vmatprep.subr.bf16.mxu0 0
      %1055 = vmatpush1.bf16.msra.mxu0 0
      %1056 = vmatprep.subr.bf16.mxu0 0
      %1057 = vmatpush1.bf16.msra.mxu0 0
      %1058 = vmatprep.subr.bf16.mxu0 0
      %1059 = vmatpush1.bf16.msra.mxu0 0
      %1060 = vmatprep.subr.bf16.mxu0 0
      %1061 = vmatpush1.bf16.msra.mxu0 0
      %1062 = vmatprep.subr.bf16.mxu0 0
      %1063 = vmatpush1.bf16.msra.mxu0 0
      %1064 = vmatprep.subr.bf16.mxu0 0
      %1065 = vmatpush1.bf16.msra.mxu0 0
      %1066 = vmatprep.subr.bf16.mxu0 0
      %1067 = vmatpush1.bf16.msra.mxu0 0
      %1068 = vmatprep.subr.bf16.mxu0 0
      %1069 = vmatpush1.bf16.msra.mxu0 0
      %1070 = vmatprep.subr.bf16.mxu0 0
      %1071 = vmatpush1.bf16.msra.mxu0 0
      %1072 = vmatprep.mubr.bf16.mxu0 0
      %1073 = vmatmul.mubr.bf16.gmra.mrb[0].mxu0 %v938
      %v1074 = vpop.f32.mrb[0].mxu0
      %v1075 = vadd.f32 0.0, %v1074
      %v1076 = vpop.f32.mrb[0].mxu0
      %v1077 = vadd.f32 0.0, %v1076
      %v1078 = vpop.f32.mrb[0].mxu0
      %v1079 = vpop.f32.mrb[0].mxu0
      %1080 = vdwg.mxu0
      %v1081 = vadd.f32 %v899, %v993
      %v1082 = vadd.f32 %v900, %v995
      %v1083 = vadd.f32 %v901, %v1034
      %v1084 = vadd.f32 %v902, %v1036
      %v1085 = vadd.f32 %v903, %v1075
      %v1086 = vadd.f32 %v904, %v1077
      %v1087 = vld [vmem:[%s723] sm:$0xff]
      %v1088 = vld [vmem:[%s723 + $0x8] sm:$0xf]
      %s1089 = scalar_lea.vmem %s0, 20
      %v1090 = vld [vmem:[%s1089] sm:$0xf]
      %v1093 = vcombine.high %v1087, %v1087
      %v1095 = vunpack.c.l.s4 1983009808
      %v1096 = vunpack.c.0.s8 %v1095
      %v1097 = vlaneseq
      %v1098 = vshrl.u32 %v1097, 7
      %v1099 = vsub.s32 %v1096, %v1098
      %v1100 = vrot.slane %v1087, %v1099
      %v1102 = vunpack.c.l.s4 1983009808
      %v1103 = vunpack.c.0.s8 %v1102
      %v1104 = vlaneseq
      %v1105 = vshrl.u32 %v1104, 7
      %v1106 = vsub.s32 %v1103, %v1105
      %v1107 = vrot.slane %v1093, %v1106
      %v1108 = vcombine.high %v1100, %v1100
      %v1109 = vcombine.high %v1107, %v1107
      %v1111 = vunpack.c.l.s4 1983009808
      %v1112 = vunpack.c.0.s8 %v1111
      %v1113 = vlaneseq
      %v1114 = vshrl.u32 %v1113, 7
      %v1115 = vsub.s32 %v1112, %v1114
      %v1116 = vrot.slane %v1088, %v1115
      %v1117 = vcombine.high %v1116, %v1116
      %1118 = vrot.lane.b32.xlu0 %v1100, 127
      %v1119 = vpop.permute.xlu0 %1118
      %1120 = vrot.lane.b32.xlu0 %v1108, 127
      %v1121 = vpop.permute.xlu0 %1120
      %1122 = vrot.lane.b32.xlu0 %v1107, 127
      %v1123 = vpop.permute.xlu0 %1122
      %1124 = vrot.lane.b32.xlu0 %v1109, 127
      %v1125 = vpop.permute.xlu0 %1124
      %1126 = vrot.lane.b32.xlu0 %v1116, 127
      %v1127 = vpop.permute.xlu0 %1126
      %1128 = vrot.lane.b32.xlu0 %v1117, 127
      %v1129 = vpop.permute.xlu0 %1128
      %v1130 = vsel %vm567, %v1119, %v1121
      %v1131 = vsel %vm567, %v1121, %v1123
      %v1132 = vsel %vm567, %v1123, %v1125
      %v1133 = vsel %vm567, %v1125, %v1127
      %v1134 = vsel %vm567, %v1127, %v1129
      %v1136 = vsel %vm207, %v1090, 0
      %v1139 = vsel %vm211, %v1130, 0
      %v1142 = vsel %vm211, %v1131, 0
      %v1145 = vsel %vm211, %v1132, 0
      %v1148 = vsel %vm211, %v1133, 0
      %v1151 = vsel %vm211, %v1134, 0
      %v1154 = vsel %vm211, %v1129, 0
      %1156 = vmatprep.subr.bf16.mxu0 %v1142
      %1157 = vmatpush1.bf16.msra.mxu0 %v1139
      %1158 = vmatprep.subr.bf16.mxu0 0
      %1159 = vmatpush1.bf16.msra.mxu0 0
      %1160 = vmatprep.subr.bf16.mxu0 0
      %1161 = vmatpush1.bf16.msra.mxu0 0
      %1162 = vmatprep.subr.bf16.mxu0 0
      %1163 = vmatpush1.bf16.msra.mxu0 0
      %1164 = vmatprep.subr.bf16.mxu0 0
      %1165 = vmatpush1.bf16.msra.mxu0 0
      %1166 = vmatprep.subr.bf16.mxu0 0
      %1167 = vmatpush1.bf16.msra.mxu0 0
      %1168 = vmatprep.subr.bf16.mxu0 0
      %1169 = vmatpush1.bf16.msra.mxu0 0
      %1170 = vmatprep.subr.bf16.mxu0 0
      %1171 = vmatpush1.bf16.msra.mxu0 0
      %1172 = vmatprep.subr.bf16.mxu0 0
      %1173 = vmatpush1.bf16.msra.mxu0 0
      %1174 = vmatprep.subr.bf16.mxu0 0
      %1175 = vmatpush1.bf16.msra.mxu0 0
      %1176 = vmatprep.subr.bf16.mxu0 0
      %1177 = vmatpush1.bf16.msra.mxu0 0
      %1178 = vmatprep.subr.bf16.mxu0 0
      %1179 = vmatpush1.bf16.msra.mxu0 0
      %1180 = vmatprep.subr.bf16.mxu0 0
      %1181 = vmatpush1.bf16.msra.mxu0 0
      %1182 = vmatprep.subr.bf16.mxu0 0
      %1183 = vmatpush1.bf16.msra.mxu0 0
      %1184 = vmatprep.subr.bf16.mxu0 0
      %1185 = vmatpush1.bf16.msra.mxu0 0
      %1186 = vmatprep.subr.bf16.mxu0 0
      %1187 = vmatpush1.bf16.msra.mxu0 0
      %1188 = vmatprep.mubr.bf16.mxu0 0
      %1189 = vmatmul.mubr.bf16.gmra.mrb[0].mxu0 %v1136
      %v1190 = vpop.f32.mrb[0].mxu0
      %v1191 = vadd.f32 0.0, %v1190
      %v1192 = vpop.f32.mrb[0].mxu0
      %v1193 = vadd.f32 0.0, %v1192
      %v1194 = vpop.f32.mrb[0].mxu0
      %v1195 = vpop.f32.mrb[0].mxu0
      %1196 = vdwg.mxu0
      %1197 = vmatprep.subr.bf16.mxu0 %v1148
      %1198 = vmatpush1.bf16.msra.mxu0 %v1145
      %1199 = vmatprep.subr.bf16.mxu0 0
      %1200 = vmatpush1.bf16.msra.mxu0 0
      %1201 = vmatprep.subr.bf16.mxu0 0
      %1202 = vmatpush1.bf16.msra.mxu0 0
      %1203 = vmatprep.subr.bf16.mxu0 0
      %1204 = vmatpush1.bf16.msra.mxu0 0
      %1205 = vmatprep.subr.bf16.mxu0 0
      %1206 = vmatpush1.bf16.msra.mxu0 0
      %1207 = vmatprep.subr.bf16.mxu0 0
      %1208 = vmatpush1.bf16.msra.mxu0 0
      %1209 = vmatprep.subr.bf16.mxu0 0
      %1210 = vmatpush1.bf16.msra.mxu0 0
      %1211 = vmatprep.subr.bf16.mxu0 0
      %1212 = vmatpush1.bf16.msra.mxu0 0
      %1213 = vmatprep.subr.bf16.mxu0 0
      %1214 = vmatpush1.bf16.msra.mxu0 0
      %1215 = vmatprep.subr.bf16.mxu0 0
      %1216 = vmatpush1.bf16.msra.mxu0 0
      %1217 = vmatprep.subr.bf16.mxu0 0
      %1218 = vmatpush1.bf16.msra.mxu0 0
      %1219 = vmatprep.subr.bf16.mxu0 0
      %1220 = vmatpush1.bf16.msra.mxu0 0
      %1221 = vmatprep.subr.bf16.mxu0 0
      %1222 = vmatpush1.bf16.msra.mxu0 0
      %1223 = vmatprep.subr.bf16.mxu0 0
      %1224 = vmatpush1.bf16.msra.mxu0 0
      %1225 = vmatprep.subr.bf16.mxu0 0
      %1226 = vmatpush1.bf16.msra.mxu0 0
      %1227 = vmatprep.subr.bf16.mxu0 0
      %1228 = vmatpush1.bf16.msra.mxu0 0
      %1229 = vmatprep.mubr.bf16.mxu0 0
      %1230 = vmatmul.mubr.bf16.gmra.mrb[0].mxu0 %v1136
      %v1231 = vpop.f32.mrb[0].mxu0
      %v1232 = vadd.f32 0.0, %v1231
      %v1233 = vpop.f32.mrb[0].mxu0
      %v1234 = vadd.f32 0.0, %v1233
      %v1235 = vpop.f32.mrb[0].mxu0
      %v1236 = vpop.f32.mrb[0].mxu0
      %1237 = vdwg.mxu0
      %1238 = vmatprep.subr.bf16.mxu0 %v1154
      %1239 = vmatpush1.bf16.msra.mxu0 %v1151
      %1240 = vmatprep.subr.bf16.mxu0 0
      %1241 = vmatpush1.bf16.msra.mxu0 0
      %1242 = vmatprep.subr.bf16.mxu0 0
      %1243 = vmatpush1.bf16.msra.mxu0 0
      %1244 = vmatprep.subr.bf16.mxu0 0
      %1245 = vmatpush1.bf16.msra.mxu0 0
      %1246 = vmatprep.subr.bf16.mxu0 0
      %1247 = vmatpush1.bf16.msra.mxu0 0
      %1248 = vmatprep.subr.bf16.mxu0 0
      %1249 = vmatpush1.bf16.msra.mxu0 0
      %1250 = vmatprep.subr.bf16.mxu0 0
      %1251 = vmatpush1.bf16.msra.mxu0 0
      %1252 = vmatprep.subr.bf16.mxu0 0
      %1253 = vmatpush1.bf16.msra.mxu0 0
      %1254 = vmatprep.subr.bf16.mxu0 0
      %1255 = vmatpush1.bf16.msra.mxu0 0
      %1256 = vmatprep.subr.bf16.mxu0 0
      %1257 = vmatpush1.bf16.msra.mxu0 0
      %1258 = vmatprep.subr.bf16.mxu0 0
      %1259 = vmatpush1.bf16.msra.mxu0 0
      %1260 = vmatprep.subr.bf16.mxu0 0
      %1261 = vmatpush1.bf16.msra.mxu0 0
      %1262 = vmatprep.subr.bf16.mxu0 0
      %1263 = vmatpush1.bf16.msra.mxu0 0
      %1264 = vmatprep.subr.bf16.mxu0 0
      %1265 = vmatpush1.bf16.msra.mxu0 0
      %1266 = vmatprep.subr.bf16.mxu0 0
      %1267 = vmatpush1.bf16.msra.mxu0 0
      %1268 = vmatprep.subr.bf16.mxu0 0
      %1269 = vmatpush1.bf16.msra.mxu0 0
      %1270 = vmatprep.mubr.bf16.mxu0 0
      %1271 = vmatmul.mubr.bf16.gmra.mrb[0].mxu0 %v1136
      %v1272 = vpop.f32.mrb[0].mxu0
      %v1273 = vadd.f32 0.0, %v1272
      %v1274 = vpop.f32.mrb[0].mxu0
      %v1275 = vadd.f32 0.0, %v1274
      %v1276 = vpop.f32.mrb[0].mxu0
      %v1277 = vpop.f32.mrb[0].mxu0
      %1278 = vdwg.mxu0
      %v1279 = vadd.f32 %v1081, %v1191
      %v1280 = vadd.f32 %v1082, %v1193
      %v1281 = vadd.f32 %v1083, %v1232
      %v1282 = vadd.f32 %v1084, %v1234
      %v1283 = vadd.f32 %v1085, %v1273
      %v1284 = vadd.f32 %v1086, %v1275
      %v1285 = vld [vmem:[%s165] sm:$0xff]
      %v1286 = vld [vmem:[%s165 + $0x8] sm:$0xf]
      %s1287 = scalar_lea.vmem %s0, 24
      %v1288 = vld [vmem:[%s1287] sm:$0xf]
      %v1291 = vcombine.high %v1285, %v1285
      %v1293 = vunpack.c.l.s4 1983009808
      %v1294 = vunpack.c.0.s8 %v1293
      %v1295 = vlaneseq
      %v1296 = vshrl.u32 %v1295, 7
      %v1297 = vsub.s32 %v1294, %v1296
      %v1298 = vrot.slane %v1285, %v1297
      %v1300 = vunpack.c.l.s4 1983009808
      %v1301 = vunpack.c.0.s8 %v1300
      %v1302 = vlaneseq
      %v1303 = vshrl.u32 %v1302, 7
      %v1304 = vsub.s32 %v1301, %v1303
      %v1305 = vrot.slane %v1291, %v1304
      %v1306 = vcombine.high %v1298, %v1298
      %v1307 = vcombine.high %v1305, %v1305
      %v1309 = vunpack.c.l.s4 1983009808
      %v1310 = vunpack.c.0.s8 %v1309
      %v1311 = vlaneseq
      %v1312 = vshrl.u32 %v1311, 7
      %v1313 = vsub.s32 %v1310, %v1312
      %v1314 = vrot.slane %v1286, %v1313
      %v1315 = vcombine.high %v1314, %v1314
      %1316 = vrot.lane.b32.xlu0 %v1298, 119
      %v1317 = vpop.permute.xlu0 %1316
      %1318 = vrot.lane.b32.xlu0 %v1306, 119
      %v1319 = vpop.permute.xlu0 %1318
      %1320 = vrot.lane.b32.xlu0 %v1305, 119
      %v1321 = vpop.permute.xlu0 %1320
      %1322 = vrot.lane.b32.xlu0 %v1307, 119
      %v1323 = vpop.permute.xlu0 %1322
      %1324 = vrot.lane.b32.xlu0 %v1314, 119
      %v1325 = vpop.permute.xlu0 %1324
      %1326 = vrot.lane.b32.xlu0 %v1315, 119
      %v1327 = vpop.permute.xlu0 %1326
      %vm1328 = vcmask 973824
      %v1329 = vsel %vm1328, %v1317, %v1319
      %v1330 = vsel %vm1328, %v1319, %v1321
      %v1331 = vsel %vm1328, %v1321, %v1323
      %v1332 = vsel %vm1328, %v1323, %v1325
      %v1333 = vsel %vm1328, %v1325, %v1327
      %v1335 = vsel %vm207, %v1288, 0
      %v1338 = vsel %vm211, %v1329, 0
      %v1341 = vsel %vm211, %v1330, 0
      %v1344 = vsel %vm211, %v1331, 0
      %v1347 = vsel %vm211, %v1332, 0
      %v1350 = vsel %vm211, %v1333, 0
      %v1353 = vsel %vm211, %v1327, 0
      %1355 = vmatprep.subr.bf16.mxu0 %v1341
      %1356 = vmatpush1.bf16.msra.mxu0 %v1338
      %1357 = vmatprep.subr.bf16.mxu0 0
      %1358 = vmatpush1.bf16.msra.mxu0 0
      %1359 = vmatprep.subr.bf16.mxu0 0
      %1360 = vmatpush1.bf16.msra.mxu0 0
      %1361 = vmatprep.subr.bf16.mxu0 0
      %1362 = vmatpush1.bf16.msra.mxu0 0
      %1363 = vmatprep.subr.bf16.mxu0 0
      %1364 = vmatpush1.bf16.msra.mxu0 0
      %1365 = vmatprep.subr.bf16.mxu0 0
      %1366 = vmatpush1.bf16.msra.mxu0 0
      %1367 = vmatprep.subr.bf16.mxu0 0
      %1368 = vmatpush1.bf16.msra.mxu0 0
      %1369 = vmatprep.subr.bf16.mxu0 0
      %1370 = vmatpush1.bf16.msra.mxu0 0
      %1371 = vmatprep.subr.bf16.mxu0 0
      %1372 = vmatpush1.bf16.msra.mxu0 0
      %1373 = vmatprep.subr.bf16.mxu0 0
      %1374 = vmatpush1.bf16.msra.mxu0 0
      %1375 = vmatprep.subr.bf16.mxu0 0
      %1376 = vmatpush1.bf16.msra.mxu0 0
      %1377 = vmatprep.subr.bf16.mxu0 0
      %1378 = vmatpush1.bf16.msra.mxu0 0
      %1379 = vmatprep.subr.bf16.mxu0 0
      %1380 = vmatpush1.bf16.msra.mxu0 0
      %1381 = vmatprep.subr.bf16.mxu0 0
      %1382 = vmatpush1.bf16.msra.mxu0 0
      %1383 = vmatprep.subr.bf16.mxu0 0
      %1384 = vmatpush1.bf16.msra.mxu0 0
      %1385 = vmatprep.subr.bf16.mxu0 0
      %1386 = vmatpush1.bf16.msra.mxu0 0
      %1387 = vmatprep.mubr.bf16.mxu0 0
      %1388 = vmatmul.mubr.bf16.gmra.mrb[0].mxu0 %v1335
      %v1389 = vpop.f32.mrb[0].mxu0
      %v1390 = vadd.f32 0.0, %v1389
      %v1391 = vpop.f32.mrb[0].mxu0
      %v1392 = vadd.f32 0.0, %v1391
      %v1393 = vpop.f32.mrb[0].mxu0
      %v1394 = vpop.f32.mrb[0].mxu0
      %1395 = vdwg.mxu0
      %1396 = vmatprep.subr.bf16.mxu0 %v1347
      %1397 = vmatpush1.bf16.msra.mxu0 %v1344
      %1398 = vmatprep.subr.bf16.mxu0 0
      %1399 = vmatpush1.bf16.msra.mxu0 0
      %1400 = vmatprep.subr.bf16.mxu0 0
      %1401 = vmatpush1.bf16.msra.mxu0 0
      %1402 = vmatprep.subr.bf16.mxu0 0
      %1403 = vmatpush1.bf16.msra.mxu0 0
      %1404 = vmatprep.subr.bf16.mxu0 0
      %1405 = vmatpush1.bf16.msra.mxu0 0
      %1406 = vmatprep.subr.bf16.mxu0 0
      %1407 = vmatpush1.bf16.msra.mxu0 0
      %1408 = vmatprep.subr.bf16.mxu0 0
      %1409 = vmatpush1.bf16.msra.mxu0 0
      %1410 = vmatprep.subr.bf16.mxu0 0
      %1411 = vmatpush1.bf16.msra.mxu0 0
      %1412 = vmatprep.subr.bf16.mxu0 0
      %1413 = vmatpush1.bf16.msra.mxu0 0
      %1414 = vmatprep.subr.bf16.mxu0 0
      %1415 = vmatpush1.bf16.msra.mxu0 0
      %1416 = vmatprep.subr.bf16.mxu0 0
      %1417 = vmatpush1.bf16.msra.mxu0 0
      %1418 = vmatprep.subr.bf16.mxu0 0
      %1419 = vmatpush1.bf16.msra.mxu0 0
      %1420 = vmatprep.subr.bf16.mxu0 0
      %1421 = vmatpush1.bf16.msra.mxu0 0
      %1422 = vmatprep.subr.bf16.mxu0 0
      %1423 = vmatpush1.bf16.msra.mxu0 0
      %1424 = vmatprep.subr.bf16.mxu0 0
      %1425 = vmatpush1.bf16.msra.mxu0 0
      %1426 = vmatprep.subr.bf16.mxu0 0
      %1427 = vmatpush1.bf16.msra.mxu0 0
      %1428 = vmatprep.mubr.bf16.mxu0 0
      %1429 = vmatmul.mubr.bf16.gmra.mrb[0].mxu0 %v1335
      %v1430 = vpop.f32.mrb[0].mxu0
      %v1431 = vadd.f32 0.0, %v1430
      %v1432 = vpop.f32.mrb[0].mxu0
      %v1433 = vadd.f32 0.0, %v1432
      %v1434 = vpop.f32.mrb[0].mxu0
      %v1435 = vpop.f32.mrb[0].mxu0
      %1436 = vdwg.mxu0
      %1437 = vmatprep.subr.bf16.mxu0 %v1353
      %1438 = vmatpush1.bf16.msra.mxu0 %v1350
      %1439 = vmatprep.subr.bf16.mxu0 0
      %1440 = vmatpush1.bf16.msra.mxu0 0
      %1441 = vmatprep.subr.bf16.mxu0 0
      %1442 = vmatpush1.bf16.msra.mxu0 0
      %1443 = vmatprep.subr.bf16.mxu0 0
      %1444 = vmatpush1.bf16.msra.mxu0 0
      %1445 = vmatprep.subr.bf16.mxu0 0
      %1446 = vmatpush1.bf16.msra.mxu0 0
      %1447 = vmatprep.subr.bf16.mxu0 0
      %1448 = vmatpush1.bf16.msra.mxu0 0
      %1449 = vmatprep.subr.bf16.mxu0 0
      %1450 = vmatpush1.bf16.msra.mxu0 0
      %1451 = vmatprep.subr.bf16.mxu0 0
      %1452 = vmatpush1.bf16.msra.mxu0 0
      %1453 = vmatprep.subr.bf16.mxu0 0
      %1454 = vmatpush1.bf16.msra.mxu0 0
      %1455 = vmatprep.subr.bf16.mxu0 0
      %1456 = vmatpush1.bf16.msra.mxu0 0
      %1457 = vmatprep.subr.bf16.mxu0 0
      %1458 = vmatpush1.bf16.msra.mxu0 0
      %1459 = vmatprep.subr.bf16.mxu0 0
      %1460 = vmatpush1.bf16.msra.mxu0 0
      %1461 = vmatprep.subr.bf16.mxu0 0
      %1462 = vmatpush1.bf16.msra.mxu0 0
      %1463 = vmatprep.subr.bf16.mxu0 0
      %1464 = vmatpush1.bf16.msra.mxu0 0
      %1465 = vmatprep.subr.bf16.mxu0 0
      %1466 = vmatpush1.bf16.msra.mxu0 0
      %1467 = vmatprep.subr.bf16.mxu0 0
      %1468 = vmatpush1.bf16.msra.mxu0 0
      %1469 = vmatprep.mubr.bf16.mxu0 0
      %1470 = vmatmul.mubr.bf16.gmra.mrb[0].mxu0 %v1335
      %v1471 = vpop.f32.mrb[0].mxu0
      %v1472 = vadd.f32 0.0, %v1471
      %v1473 = vpop.f32.mrb[0].mxu0
      %v1474 = vadd.f32 0.0, %v1473
      %v1475 = vpop.f32.mrb[0].mxu0
      %v1476 = vpop.f32.mrb[0].mxu0
      %1477 = vdwg.mxu0
      %v1478 = vadd.f32 %v1279, %v1390
      %v1479 = vadd.f32 %v1280, %v1392
      %v1480 = vadd.f32 %v1281, %v1431
      %v1481 = vadd.f32 %v1282, %v1433
      %v1482 = vadd.f32 %v1283, %v1472
      %v1483 = vadd.f32 %v1284, %v1474
      %v1484 = vld [vmem:[%s175] sm:$0xff]
      %v1485 = vld [vmem:[%s175 + $0x8] sm:$0xf]
      %s1486 = scalar_lea.vmem %s0, 28
      %v1487 = vld [vmem:[%s1486] sm:$0xf]
      %v1490 = vcombine.high %v1484, %v1484
      %v1492 = vunpack.c.l.s4 1983009808
      %v1493 = vunpack.c.0.s8 %v1492
      %v1494 = vlaneseq
      %v1495 = vshrl.u32 %v1494, 7
      %v1496 = vsub.s32 %v1493, %v1495
      %v1497 = vrot.slane %v1484, %v1496
      %v1499 = vunpack.c.l.s4 1983009808
      %v1500 = vunpack.c.0.s8 %v1499
      %v1501 = vlaneseq
      %v1502 = vshrl.u32 %v1501, 7
      %v1503 = vsub.s32 %v1500, %v1502
      %v1504 = vrot.slane %v1490, %v1503
      %v1505 = vcombine.high %v1497, %v1497
      %v1506 = vcombine.high %v1504, %v1504
      %v1508 = vunpack.c.l.s4 1983009808
      %v1509 = vunpack.c.0.s8 %v1508
      %v1510 = vlaneseq
      %v1511 = vshrl.u32 %v1510, 7
      %v1512 = vsub.s32 %v1509, %v1511
      %v1513 = vrot.slane %v1485, %v1512
      %v1514 = vcombine.high %v1513, %v1513
      %1515 = vrot.lane.b32.xlu0 %v1497, 119
      %v1516 = vpop.permute.xlu0 %1515
      %1517 = vrot.lane.b32.xlu0 %v1505, 119
      %v1518 = vpop.permute.xlu0 %1517
      %1519 = vrot.lane.b32.xlu0 %v1504, 119
      %v1520 = vpop.permute.xlu0 %1519
      %1521 = vrot.lane.b32.xlu0 %v1506, 119
      %v1522 = vpop.permute.xlu0 %1521
      %1523 = vrot.lane.b32.xlu0 %v1513, 119
      %v1524 = vpop.permute.xlu0 %1523
      %1525 = vrot.lane.b32.xlu0 %v1514, 119
      %v1526 = vpop.permute.xlu0 %1525
      %v1527 = vsel %vm1328, %v1516, %v1518
      %v1528 = vsel %vm1328, %v1518, %v1520
      %v1529 = vsel %vm1328, %v1520, %v1522
      %v1530 = vsel %vm1328, %v1522, %v1524
      %v1531 = vsel %vm1328, %v1524, %v1526
      %v1533 = vsel %vm207, %v1487, 0
      %v1536 = vsel %vm211, %v1527, 0
      %v1539 = vsel %vm211, %v1528, 0
      %v1542 = vsel %vm211, %v1529, 0
      %v1545 = vsel %vm211, %v1530, 0
      %v1548 = vsel %vm211, %v1531, 0
      %v1551 = vsel %vm211, %v1526, 0
      %1553 = vmatprep.subr.bf16.mxu0 %v1539
      %1554 = vmatpush1.bf16.msra.mxu0 %v1536
      %1555 = vmatprep.subr.bf16.mxu0 0
      %1556 = vmatpush1.bf16.msra.mxu0 0
      %1557 = vmatprep.subr.bf16.mxu0 0
      %1558 = vmatpush1.bf16.msra.mxu0 0
      %1559 = vmatprep.subr.bf16.mxu0 0
      %1560 = vmatpush1.bf16.msra.mxu0 0
      %1561 = vmatprep.subr.bf16.mxu0 0
      %1562 = vmatpush1.bf16.msra.mxu0 0
      %1563 = vmatprep.subr.bf16.mxu0 0
      %1564 = vmatpush1.bf16.msra.mxu0 0
      %1565 = vmatprep.subr.bf16.mxu0 0
      %1566 = vmatpush1.bf16.msra.mxu0 0
      %1567 = vmatprep.subr.bf16.mxu0 0
      %1568 = vmatpush1.bf16.msra.mxu0 0
      %1569 = vmatprep.subr.bf16.mxu0 0
      %1570 = vmatpush1.bf16.msra.mxu0 0
      %1571 = vmatprep.subr.bf16.mxu0 0
      %1572 = vmatpush1.bf16.msra.mxu0 0
      %1573 = vmatprep.subr.bf16.mxu0 0
      %1574 = vmatpush1.bf16.msra.mxu0 0
      %1575 = vmatprep.subr.bf16.mxu0 0
      %1576 = vmatpush1.bf16.msra.mxu0 0
      %1577 = vmatprep.subr.bf16.mxu0 0
      %1578 = vmatpush1.bf16.msra.mxu0 0
      %1579 = vmatprep.subr.bf16.mxu0 0
      %1580 = vmatpush1.bf16.msra.mxu0 0
      %1581 = vmatprep.subr.bf16.mxu0 0
      %1582 = vmatpush1.bf16.msra.mxu0 0
      %1583 = vmatprep.subr.bf16.mxu0 0
      %1584 = vmatpush1.bf16.msra.mxu0 0
      %1585 = vmatprep.mubr.bf16.mxu0 0
      %1586 = vmatmul.mubr.bf16.gmra.mrb[0].mxu0 %v1533
      %v1587 = vpop.f32.mrb[0].mxu0
      %v1588 = vadd.f32 0.0, %v1587
      %v1589 = vpop.f32.mrb[0].mxu0
      %v1590 = vadd.f32 0.0, %v1589
      %v1591 = vpop.f32.mrb[0].mxu0
      %v1592 = vpop.f32.mrb[0].mxu0
      %1593 = vdwg.mxu0
      %1594 = vmatprep.subr.bf16.mxu0 %v1545
      %1595 = vmatpush1.bf16.msra.mxu0 %v1542
      %1596 = vmatprep.subr.bf16.mxu0 0
      %1597 = vmatpush1.bf16.msra.mxu0 0
      %1598 = vmatprep.subr.bf16.mxu0 0
      %1599 = vmatpush1.bf16.msra.mxu0 0
      %1600 = vmatprep.subr.bf16.mxu0 0
      %1601 = vmatpush1.bf16.msra.mxu0 0
      %1602 = vmatprep.subr.bf16.mxu0 0
      %1603 = vmatpush1.bf16.msra.mxu0 0
      %1604 = vmatprep.subr.bf16.mxu0 0
      %1605 = vmatpush1.bf16.msra.mxu0 0
      %1606 = vmatprep.subr.bf16.mxu0 0
      %1607 = vmatpush1.bf16.msra.mxu0 0
      %1608 = vmatprep.subr.bf16.mxu0 0
      %1609 = vmatpush1.bf16.msra.mxu0 0
      %1610 = vmatprep.subr.bf16.mxu0 0
      %1611 = vmatpush1.bf16.msra.mxu0 0
      %1612 = vmatprep.subr.bf16.mxu0 0
      %1613 = vmatpush1.bf16.msra.mxu0 0
      %1614 = vmatprep.subr.bf16.mxu0 0
      %1615 = vmatpush1.bf16.msra.mxu0 0
      %1616 = vmatprep.subr.bf16.mxu0 0
      %1617 = vmatpush1.bf16.msra.mxu0 0
      %1618 = vmatprep.subr.bf16.mxu0 0
      %1619 = vmatpush1.bf16.msra.mxu0 0
      %1620 = vmatprep.subr.bf16.mxu0 0
      %1621 = vmatpush1.bf16.msra.mxu0 0
      %1622 = vmatprep.subr.bf16.mxu0 0
      %1623 = vmatpush1.bf16.msra.mxu0 0
      %1624 = vmatprep.subr.bf16.mxu0 0
      %1625 = vmatpush1.bf16.msra.mxu0 0
      %1626 = vmatprep.mubr.bf16.mxu0 0
      %1627 = vmatmul.mubr.bf16.gmra.mrb[0].mxu0 %v1533
      %v1628 = vpop.f32.mrb[0].mxu0
      %v1629 = vadd.f32 0.0, %v1628
      %v1630 = vpop.f32.mrb[0].mxu0
      %v1631 = vadd.f32 0.0, %v1630
      %v1632 = vpop.f32.mrb[0].mxu0
      %v1633 = vpop.f32.mrb[0].mxu0
      %1634 = vdwg.mxu0
      %1635 = vmatprep.subr.bf16.mxu0 %v1551
      %1636 = vmatpush1.bf16.msra.mxu0 %v1548
      %1637 = vmatprep.subr.bf16.mxu0 0
      %1638 = vmatpush1.bf16.msra.mxu0 0
      %1639 = vmatprep.subr.bf16.mxu0 0
      %1640 = vmatpush1.bf16.msra.mxu0 0
      %1641 = vmatprep.subr.bf16.mxu0 0
      %1642 = vmatpush1.bf16.msra.mxu0 0
      %1643 = vmatprep.subr.bf16.mxu0 0
      %1644 = vmatpush1.bf16.msra.mxu0 0
      %1645 = vmatprep.subr.bf16.mxu0 0
      %1646 = vmatpush1.bf16.msra.mxu0 0
      %1647 = vmatprep.subr.bf16.mxu0 0
      %1648 = vmatpush1.bf16.msra.mxu0 0
      %1649 = vmatprep.subr.bf16.mxu0 0
      %1650 = vmatpush1.bf16.msra.mxu0 0
      %1651 = vmatprep.subr.bf16.mxu0 0
      %1652 = vmatpush1.bf16.msra.mxu0 0
      %1653 = vmatprep.subr.bf16.mxu0 0
      %1654 = vmatpush1.bf16.msra.mxu0 0
      %1655 = vmatprep.subr.bf16.mxu0 0
      %1656 = vmatpush1.bf16.msra.mxu0 0
      %1657 = vmatprep.subr.bf16.mxu0 0
      %1658 = vmatpush1.bf16.msra.mxu0 0
      %1659 = vmatprep.subr.bf16.mxu0 0
      %1660 = vmatpush1.bf16.msra.mxu0 0
      %1661 = vmatprep.subr.bf16.mxu0 0
      %1662 = vmatpush1.bf16.msra.mxu0 0
      %1663 = vmatprep.subr.bf16.mxu0 0
      %1664 = vmatpush1.bf16.msra.mxu0 0
      %1665 = vmatprep.subr.bf16.mxu0 0
      %1666 = vmatpush1.bf16.msra.mxu0 0
      %1667 = vmatprep.mubr.bf16.mxu0 0
      %1668 = vmatmul.mubr.bf16.gmra.mrb[0].mxu0 %v1533
      %v1669 = vpop.f32.mrb[0].mxu0
      %v1670 = vadd.f32 0.0, %v1669
      %v1671 = vpop.f32.mrb[0].mxu0
      %v1672 = vadd.f32 0.0, %v1671
      %v1673 = vpop.f32.mrb[0].mxu0
      %v1674 = vpop.f32.mrb[0].mxu0
      %1675 = vdwg.mxu0
      %v1676 = vadd.f32 %v1478, %v1588
      %v1677 = vadd.f32 %v1479, %v1590
      %v1678 = vadd.f32 %v1480, %v1629
      %v1679 = vadd.f32 %v1481, %v1631
      %v1680 = vadd.f32 %v1482, %v1670
      %v1681 = vadd.f32 %v1483, %v1672
      %v1682 = vld [vmem:[%s165] sm:$0xff]
      %v1683 = vld [vmem:[%s165 + $0x8] sm:$0xf]
      %s1684 = scalar_lea.vmem %s0, 32
      %v1685 = vld [vmem:[%s1684] sm:$0xf]
      %v1688 = vcombine.high %v1682, %v1682
      %v1690 = vunpack.c.l.s4 1983009808
      %v1691 = vunpack.c.0.s8 %v1690
      %v1692 = vlaneseq
      %v1693 = vshrl.u32 %v1692, 7
      %v1694 = vsub.s32 %v1691, %v1693
      %v1695 = vrot.slane %v1682, %v1694
      %v1697 = vunpack.c.l.s4 1983009808
      %v1698 = vunpack.c.0.s8 %v1697
      %v1699 = vlaneseq
      %v1700 = vshrl.u32 %v1699, 7
      %v1701 = vsub.s32 %v1698, %v1700
      %v1702 = vrot.slane %v1688, %v1701
      %v1703 = vcombine.high %v1695, %v1695
      %v1704 = vcombine.high %v1702, %v1702
      %v1706 = vunpack.c.l.s4 1983009808
      %v1707 = vunpack.c.0.s8 %v1706
      %v1708 = vlaneseq
      %v1709 = vshrl.u32 %v1708, 7
      %v1710 = vsub.s32 %v1707, %v1709
      %v1711 = vrot.slane %v1683, %v1710
      %v1712 = vcombine.high %v1711, %v1711
      %1713 = vrot.lane.b32.xlu0 %v1695, 118
      %v1714 = vpop.permute.xlu0 %1713
      %1715 = vrot.lane.b32.xlu0 %v1703, 118
      %v1716 = vpop.permute.xlu0 %1715
      %1717 = vrot.lane.b32.xlu0 %v1702, 118
      %v1718 = vpop.permute.xlu0 %1717
      %1719 = vrot.lane.b32.xlu0 %v1704, 118
      %v1720 = vpop.permute.xlu0 %1719
      %1721 = vrot.lane.b32.xlu0 %v1711, 118
      %v1722 = vpop.permute.xlu0 %1721
      %1723 = vrot.lane.b32.xlu0 %v1712, 118
      %v1724 = vpop.permute.xlu0 %1723
      %vm1725 = vcmask 965632
      %v1726 = vsel %vm1725, %v1714, %v1716
      %v1727 = vsel %vm1725, %v1716, %v1718
      %v1728 = vsel %vm1725, %v1718, %v1720
      %v1729 = vsel %vm1725, %v1720, %v1722
      %v1730 = vsel %vm1725, %v1722, %v1724
      %v1732 = vsel %vm207, %v1685, 0
      %v1735 = vsel %vm211, %v1726, 0
      %v1738 = vsel %vm211, %v1727, 0
      %v1741 = vsel %vm211, %v1728, 0
      %v1744 = vsel %vm211, %v1729, 0
      %v1747 = vsel %vm211, %v1730, 0
      %v1750 = vsel %vm211, %v1724, 0
      %1752 = vmatprep.subr.bf16.mxu0 %v1738
      %1753 = vmatpush1.bf16.msra.mxu0 %v1735
      %1754 = vmatprep.subr.bf16.mxu0 0
      %1755 = vmatpush1.bf16.msra.mxu0 0
      %1756 = vmatprep.subr.bf16.mxu0 0
      %1757 = vmatpush1.bf16.msra.mxu0 0
      %1758 = vmatprep.subr.bf16.mxu0 0
      %1759 = vmatpush1.bf16.msra.mxu0 0
      %1760 = vmatprep.subr.bf16.mxu0 0
      %1761 = vmatpush1.bf16.msra.mxu0 0
      %1762 = vmatprep.subr.bf16.mxu0 0
      %1763 = vmatpush1.bf16.msra.mxu0 0
      %1764 = vmatprep.subr.bf16.mxu0 0
      %1765 = vmatpush1.bf16.msra.mxu0 0
      %1766 = vmatprep.subr.bf16.mxu0 0
      %1767 = vmatpush1.bf16.msra.mxu0 0
      %1768 = vmatprep.subr.bf16.mxu0 0
      %1769 = vmatpush1.bf16.msra.mxu0 0
      %1770 = vmatprep.subr.bf16.mxu0 0
      %1771 = vmatpush1.bf16.msra.mxu0 0
      %1772 = vmatprep.subr.bf16.mxu0 0
      %1773 = vmatpush1.bf16.msra.mxu0 0
      %1774 = vmatprep.subr.bf16.mxu0 0
      %1775 = vmatpush1.bf16.msra.mxu0 0
      %1776 = vmatprep.subr.bf16.mxu0 0
      %1777 = vmatpush1.bf16.msra.mxu0 0
      %1778 = vmatprep.subr.bf16.mxu0 0
      %1779 = vmatpush1.bf16.msra.mxu0 0
      %1780 = vmatprep.subr.bf16.mxu0 0
      %1781 = vmatpush1.bf16.msra.mxu0 0
      %1782 = vmatprep.subr.bf16.mxu0 0
      %1783 = vmatpush1.bf16.msra.mxu0 0
      %1784 = vmatprep.mubr.bf16.mxu0 0
      %1785 = vmatmul.mubr.bf16.gmra.mrb[0].mxu0 %v1732
      %v1786 = vpop.f32.mrb[0].mxu0
      %v1787 = vadd.f32 0.0, %v1786
      %v1788 = vpop.f32.mrb[0].mxu0
      %v1789 = vadd.f32 0.0, %v1788
      %v1790 = vpop.f32.mrb[0].mxu0
      %v1791 = vpop.f32.mrb[0].mxu0
      %1792 = vdwg.mxu0
      %1793 = vmatprep.subr.bf16.mxu0 %v1744
      %1794 = vmatpush1.bf16.msra.mxu0 %v1741
      %1795 = vmatprep.subr.bf16.mxu0 0
      %1796 = vmatpush1.bf16.msra.mxu0 0
      %1797 = vmatprep.subr.bf16.mxu0 0
      %1798 = vmatpush1.bf16.msra.mxu0 0
      %1799 = vmatprep.subr.bf16.mxu0 0
      %1800 = vmatpush1.bf16.msra.mxu0 0
      %1801 = vmatprep.subr.bf16.mxu0 0
      %1802 = vmatpush1.bf16.msra.mxu0 0
      %1803 = vmatprep.subr.bf16.mxu0 0
      %1804 = vmatpush1.bf16.msra.mxu0 0
      %1805 = vmatprep.subr.bf16.mxu0 0
      %1806 = vmatpush1.bf16.msra.mxu0 0
      %1807 = vmatprep.subr.bf16.mxu0 0
      %1808 = vmatpush1.bf16.msra.mxu0 0
      %1809 = vmatprep.subr.bf16.mxu0 0
      %1810 = vmatpush1.bf16.msra.mxu0 0
      %1811 = vmatprep.subr.bf16.mxu0 0
      %1812 = vmatpush1.bf16.msra.mxu0 0
      %1813 = vmatprep.subr.bf16.mxu0 0
      %1814 = vmatpush1.bf16.msra.mxu0 0
      %1815 = vmatprep.subr.bf16.mxu0 0
      %1816 = vmatpush1.bf16.msra.mxu0 0
      %1817 = vmatprep.subr.bf16.mxu0 0
      %1818 = vmatpush1.bf16.msra.mxu0 0
      %1819 = vmatprep.subr.bf16.mxu0 0
      %1820 = vmatpush1.bf16.msra.mxu0 0
      %1821 = vmatprep.subr.bf16.mxu0 0
      %1822 = vmatpush1.bf16.msra.mxu0 0
      %1823 = vmatprep.subr.bf16.mxu0 0
      %1824 = vmatpush1.bf16.msra.mxu0 0
      %1825 = vmatprep.mubr.bf16.mxu0 0
      %1826 = vmatmul.mubr.bf16.gmra.mrb[0].mxu0 %v1732
      %v1827 = vpop.f32.mrb[0].mxu0
      %v1828 = vadd.f32 0.0, %v1827
      %v1829 = vpop.f32.mrb[0].mxu0
      %v1830 = vadd.f32 0.0, %v1829
      %v1831 = vpop.f32.mrb[0].mxu0
      %v1832 = vpop.f32.mrb[0].mxu0
      %1833 = vdwg.mxu0
      %1834 = vmatprep.subr.bf16.mxu0 %v1750
      %1835 = vmatpush1.bf16.msra.mxu0 %v1747
      %1836 = vmatprep.subr.bf16.mxu0 0
      %1837 = vmatpush1.bf16.msra.mxu0 0
      %1838 = vmatprep.subr.bf16.mxu0 0
      %1839 = vmatpush1.bf16.msra.mxu0 0
      %1840 = vmatprep.subr.bf16.mxu0 0
      %1841 = vmatpush1.bf16.msra.mxu0 0
      %1842 = vmatprep.subr.bf16.mxu0 0
      %1843 = vmatpush1.bf16.msra.mxu0 0
      %1844 = vmatprep.subr.bf16.mxu0 0
      %1845 = vmatpush1.bf16.msra.mxu0 0
      %1846 = vmatprep.subr.bf16.mxu0 0
      %1847 = vmatpush1.bf16.msra.mxu0 0
      %1848 = vmatprep.subr.bf16.mxu0 0
      %1849 = vmatpush1.bf16.msra.mxu0 0
      %1850 = vmatprep.subr.bf16.mxu0 0
      %1851 = vmatpush1.bf16.msra.mxu0 0
      %1852 = vmatprep.subr.bf16.mxu0 0
      %1853 = vmatpush1.bf16.msra.mxu0 0
      %1854 = vmatprep.subr.bf16.mxu0 0
      %1855 = vmatpush1.bf16.msra.mxu0 0
      %1856 = vmatprep.subr.bf16.mxu0 0
      %1857 = vmatpush1.bf16.msra.mxu0 0
      %1858 = vmatprep.subr.bf16.mxu0 0
      %1859 = vmatpush1.bf16.msra.mxu0 0
      %1860 = vmatprep.subr.bf16.mxu0 0
      %1861 = vmatpush1.bf16.msra.mxu0 0
      %1862 = vmatprep.subr.bf16.mxu0 0
      %1863 = vmatpush1.bf16.msra.mxu0 0
      %1864 = vmatprep.subr.bf16.mxu0 0
      %1865 = vmatpush1.bf16.msra.mxu0 0
      %1866 = vmatprep.mubr.bf16.mxu0 0
      %1867 = vmatmul.mubr.bf16.gmra.mrb[0].mxu0 %v1732
      %v1868 = vpop.f32.mrb[0].mxu0
      %v1869 = vadd.f32 0.0, %v1868
      %v1870 = vpop.f32.mrb[0].mxu0
      %v1871 = vadd.f32 0.0, %v1870
      %v1872 = vpop.f32.mrb[0].mxu0
      %v1873 = vpop.f32.mrb[0].mxu0
      %1874 = vdwg.mxu0
      %v1875 = vadd.f32 %v1676, %v1787
      %v1876 = vadd.f32 %v1677, %v1789
      %v1877 = vadd.f32 %v1678, %v1828
      %v1878 = vadd.f32 %v1679, %v1830
      %v1879 = vadd.f32 %v1680, %v1869
      %v1880 = vadd.f32 %v1681, %v1871
      %s1881 = scalar_lea.vmem %s165, 48
      %v1882 = vld [vmem:[%s1881] sm:$0xff]
      %v1883 = vld [vmem:[%s1881 + $0x8] sm:$0xf]
      %s1884 = scalar_lea.vmem %s0, 36
      %v1885 = vld [vmem:[%s1884] sm:$0xf]
      %v1888 = vcombine.high %v1882, %v1882
      %v1890 = vunpack.c.l.s4 1983009808
      %v1891 = vunpack.c.0.s8 %v1890
      %v1892 = vlaneseq
      %v1893 = vshrl.u32 %v1892, 7
      %v1894 = vsub.s32 %v1891, %v1893
      %v1895 = vrot.slane %v1882, %v1894
      %v1897 = vunpack.c.l.s4 1983009808
      %v1898 = vunpack.c.0.s8 %v1897
      %v1899 = vlaneseq
      %v1900 = vshrl.u32 %v1899, 7
      %v1901 = vsub.s32 %v1898, %v1900
      %v1902 = vrot.slane %v1888, %v1901
      %v1903 = vcombine.high %v1895, %v1895
      %v1904 = vcombine.high %v1902, %v1902
      %v1906 = vunpack.c.l.s4 1983009808
      %v1907 = vunpack.c.0.s8 %v1906
      %v1908 = vlaneseq
      %v1909 = vshrl.u32 %v1908, 7
      %v1910 = vsub.s32 %v1907, %v1909
      %v1911 = vrot.slane %v1883, %v1910
      %v1912 = vcombine.high %v1911, %v1911
      %v1914 = vsel %vm207, %v1885, 0
      %v1917 = vsel %vm211, %v1895, 0
      %v1920 = vsel %vm211, %v1903, 0
      %v1923 = vsel %vm211, %v1902, 0
      %v1926 = vsel %vm211, %v1904, 0
      %v1929 = vsel %vm211, %v1911, 0
      %v1932 = vsel %vm211, %v1912, 0
      %1934 = vmatprep.subr.bf16.mxu0 %v1920
      %1935 = vmatpush1.bf16.msra.mxu0 %v1917
      %1936 = vmatprep.subr.bf16.mxu0 0
      %1937 = vmatpush1.bf16.msra.mxu0 0
      %1938 = vmatprep.subr.bf16.mxu0 0
      %1939 = vmatpush1.bf16.msra.mxu0 0
      %1940 = vmatprep.subr.bf16.mxu0 0
      %1941 = vmatpush1.bf16.msra.mxu0 0
      %1942 = vmatprep.subr.bf16.mxu0 0
      %1943 = vmatpush1.bf16.msra.mxu0 0
      %1944 = vmatprep.subr.bf16.mxu0 0
      %1945 = vmatpush1.bf16.msra.mxu0 0
      %1946 = vmatprep.subr.bf16.mxu0 0
      %1947 = vmatpush1.bf16.msra.mxu0 0
      %1948 = vmatprep.subr.bf16.mxu0 0
      %1949 = vmatpush1.bf16.msra.mxu0 0
      %1950 = vmatprep.subr.bf16.mxu0 0
      %1951 = vmatpush1.bf16.msra.mxu0 0
      %1952 = vmatprep.subr.bf16.mxu0 0
      %1953 = vmatpush1.bf16.msra.mxu0 0
      %1954 = vmatprep.subr.bf16.mxu0 0
      %1955 = vmatpush1.bf16.msra.mxu0 0
      %1956 = vmatprep.subr.bf16.mxu0 0
      %1957 = vmatpush1.bf16.msra.mxu0 0
      %1958 = vmatprep.subr.bf16.mxu0 0
      %1959 = vmatpush1.bf16.msra.mxu0 0
      %1960 = vmatprep.subr.bf16.mxu0 0
      %1961 = vmatpush1.bf16.msra.mxu0 0
      %1962 = vmatprep.subr.bf16.mxu0 0
      %1963 = vmatpush1.bf16.msra.mxu0 0
      %1964 = vmatprep.subr.bf16.mxu0 0
      %1965 = vmatpush1.bf16.msra.mxu0 0
      %1966 = vmatprep.mubr.bf16.mxu0 0
      %1967 = vmatmul.mubr.bf16.gmra.mrb[0].mxu0 %v1914
      %v1968 = vpop.f32.mrb[0].mxu0
      %v1969 = vadd.f32 0.0, %v1968
      %v1970 = vpop.f32.mrb[0].mxu0
      %v1971 = vadd.f32 0.0, %v1970
      %v1972 = vpop.f32.mrb[0].mxu0
      %v1973 = vpop.f32.mrb[0].mxu0
      %1974 = vdwg.mxu0
      %1975 = vmatprep.subr.bf16.mxu0 %v1926
      %1976 = vmatpush1.bf16.msra.mxu0 %v1923
      %1977 = vmatprep.subr.bf16.mxu0 0
      %1978 = vmatpush1.bf16.msra.mxu0 0
      %1979 = vmatprep.subr.bf16.mxu0 0
      %1980 = vmatpush1.bf16.msra.mxu0 0
      %1981 = vmatprep.subr.bf16.mxu0 0
      %1982 = vmatpush1.bf16.msra.mxu0 0
      %1983 = vmatprep.subr.bf16.mxu0 0
      %1984 = vmatpush1.bf16.msra.mxu0 0
      %1985 = vmatprep.subr.bf16.mxu0 0
      %1986 = vmatpush1.bf16.msra.mxu0 0
      %1987 = vmatprep.subr.bf16.mxu0 0
      %1988 = vmatpush1.bf16.msra.mxu0 0
      %1989 = vmatprep.subr.bf16.mxu0 0
      %1990 = vmatpush1.bf16.msra.mxu0 0
      %1991 = vmatprep.subr.bf16.mxu0 0
      %1992 = vmatpush1.bf16.msra.mxu0 0
      %1993 = vmatprep.subr.bf16.mxu0 0
      %1994 = vmatpush1.bf16.msra.mxu0 0
      %1995 = vmatprep.subr.bf16.mxu0 0
      %1996 = vmatpush1.bf16.msra.mxu0 0
      %1997 = vmatprep.subr.bf16.mxu0 0
      %1998 = vmatpush1.bf16.msra.mxu0 0
      %1999 = vmatprep.subr.bf16.mxu0 0
      %2000 = vmatpush1.bf16.msra.mxu0 0
      %2001 = vmatprep.subr.bf16.mxu0 0
      %2002 = vmatpush1.bf16.msra.mxu0 0
      %2003 = vmatprep.subr.bf16.mxu0 0
      %2004 = vmatpush1.bf16.msra.mxu0 0
      %2005 = vmatprep.subr.bf16.mxu0 0
      %2006 = vmatpush1.bf16.msra.mxu0 0
      %2007 = vmatprep.mubr.bf16.mxu0 0
      %2008 = vmatmul.mubr.bf16.gmra.mrb[0].mxu0 %v1914
      %v2009 = vpop.f32.mrb[0].mxu0
      %v2010 = vadd.f32 0.0, %v2009
      %v2011 = vpop.f32.mrb[0].mxu0
      %v2012 = vadd.f32 0.0, %v2011
      %v2013 = vpop.f32.mrb[0].mxu0
      %v2014 = vpop.f32.mrb[0].mxu0
      %2015 = vdwg.mxu0
      %2016 = vmatprep.subr.bf16.mxu0 %v1932
      %2017 = vmatpush1.bf16.msra.mxu0 %v1929
      %2018 = vmatprep.subr.bf16.mxu0 0
      %2019 = vmatpush1.bf16.msra.mxu0 0
      %2020 = vmatprep.subr.bf16.mxu0 0
      %2021 = vmatpush1.bf16.msra.mxu0 0
      %2022 = vmatprep.subr.bf16.mxu0 0
      %2023 = vmatpush1.bf16.msra.mxu0 0
      %2024 = vmatprep.subr.bf16.mxu0 0
      %2025 = vmatpush1.bf16.msra.mxu0 0
      %2026 = vmatprep.subr.bf16.mxu0 0
      %2027 = vmatpush1.bf16.msra.mxu0 0
      %2028 = vmatprep.subr.bf16.mxu0 0
      %2029 = vmatpush1.bf16.msra.mxu0 0
      %2030 = vmatprep.subr.bf16.mxu0 0
      %2031 = vmatpush1.bf16.msra.mxu0 0
      %2032 = vmatprep.subr.bf16.mxu0 0
      %2033 = vmatpush1.bf16.msra.mxu0 0
      %2034 = vmatprep.subr.bf16.mxu0 0
      %2035 = vmatpush1.bf16.msra.mxu0 0
      %2036 = vmatprep.subr.bf16.mxu0 0
      %2037 = vmatpush1.bf16.msra.mxu0 0
      %2038 = vmatprep.subr.bf16.mxu0 0
      %2039 = vmatpush1.bf16.msra.mxu0 0
      %2040 = vmatprep.subr.bf16.mxu0 0
      %2041 = vmatpush1.bf16.msra.mxu0 0
      %2042 = vmatprep.subr.bf16.mxu0 0
      %2043 = vmatpush1.bf16.msra.mxu0 0
      %2044 = vmatprep.subr.bf16.mxu0 0
      %2045 = vmatpush1.bf16.msra.mxu0 0
      %2046 = vmatprep.subr.bf16.mxu0 0
      %2047 = vmatpush1.bf16.msra.mxu0 0
      %2048 = vmatprep.mubr.bf16.mxu0 0
      %2049 = vmatmul.mubr.bf16.gmra.mrb[0].mxu0 %v1914
      %v2050 = vpop.f32.mrb[0].mxu0
      %v2051 = vadd.f32 0.0, %v2050
      %v2052 = vpop.f32.mrb[0].mxu0
      %v2053 = vadd.f32 0.0, %v2052
      %v2054 = vpop.f32.mrb[0].mxu0
      %v2055 = vpop.f32.mrb[0].mxu0
      %2056 = vdwg.mxu0
      %v2057 = vadd.f32 %v1875, %v1969
      %v2058 = vadd.f32 %v1876, %v1971
      %v2059 = vadd.f32 %v1877, %v2010
      %v2060 = vadd.f32 %v1878, %v2012
      %v2061 = vadd.f32 %v1879, %v2051
      %v2062 = vadd.f32 %v1880, %v2053
      %s2063 = scalar_lea.vmem %s165, 60
      %v2064 = vld [vmem:[%s2063] sm:$0xff]
      %v2065 = vld [vmem:[%s2063 + $0x8] sm:$0xf]
      %s2066 = scalar_lea.vmem %s0, 40
      %v2067 = vld [vmem:[%s2066] sm:$0xf]
      %v2070 = vcombine.high %v2064, %v2064
      %v2072 = vunpack.c.l.s4 1983009808
      %v2073 = vunpack.c.0.s8 %v2072
      %v2074 = vlaneseq
      %v2075 = vshrl.u32 %v2074, 7
      %v2076 = vsub.s32 %v2073, %v2075
      %v2077 = vrot.slane %v2064, %v2076
      %v2079 = vunpack.c.l.s4 1983009808
      %v2080 = vunpack.c.0.s8 %v2079
      %v2081 = vlaneseq
      %v2082 = vshrl.u32 %v2081, 7
      %v2083 = vsub.s32 %v2080, %v2082
      %v2084 = vrot.slane %v2070, %v2083
      %v2085 = vcombine.high %v2077, %v2077
      %v2086 = vcombine.high %v2084, %v2084
      %v2088 = vunpack.c.l.s4 1983009808
      %v2089 = vunpack.c.0.s8 %v2088
      %v2090 = vlaneseq
      %v2091 = vshrl.u32 %v2090, 7
      %v2092 = vsub.s32 %v2089, %v2091
      %v2093 = vrot.slane %v2065, %v2092
      %v2094 = vcombine.high %v2093, %v2093
      %v2096 = vsel %vm207, %v2067, 0
      %v2099 = vsel %vm211, %v2077, 0
      %v2102 = vsel %vm211, %v2085, 0
      %v2105 = vsel %vm211, %v2084, 0
      %v2108 = vsel %vm211, %v2086, 0
      %v2111 = vsel %vm211, %v2093, 0
      %v2114 = vsel %vm211, %v2094, 0
      %2116 = vmatprep.subr.bf16.mxu0 %v2102
      %2117 = vmatpush1.bf16.msra.mxu0 %v2099
      %2118 = vmatprep.subr.bf16.mxu0 0
      %2119 = vmatpush1.bf16.msra.mxu0 0
      %2120 = vmatprep.subr.bf16.mxu0 0
      %2121 = vmatpush1.bf16.msra.mxu0 0
      %2122 = vmatprep.subr.bf16.mxu0 0
      %2123 = vmatpush1.bf16.msra.mxu0 0
      %2124 = vmatprep.subr.bf16.mxu0 0
      %2125 = vmatpush1.bf16.msra.mxu0 0
      %2126 = vmatprep.subr.bf16.mxu0 0
      %2127 = vmatpush1.bf16.msra.mxu0 0
      %2128 = vmatprep.subr.bf16.mxu0 0
      %2129 = vmatpush1.bf16.msra.mxu0 0
      %2130 = vmatprep.subr.bf16.mxu0 0
      %2131 = vmatpush1.bf16.msra.mxu0 0
      %2132 = vmatprep.subr.bf16.mxu0 0
      %2133 = vmatpush1.bf16.msra.mxu0 0
      %2134 = vmatprep.subr.bf16.mxu0 0
      %2135 = vmatpush1.bf16.msra.mxu0 0
      %2136 = vmatprep.subr.bf16.mxu0 0
      %2137 = vmatpush1.bf16.msra.mxu0 0
      %2138 = vmatprep.subr.bf16.mxu0 0
      %2139 = vmatpush1.bf16.msra.mxu0 0
      %2140 = vmatprep.subr.bf16.mxu0 0
      %2141 = vmatpush1.bf16.msra.mxu0 0
      %2142 = vmatprep.subr.bf16.mxu0 0
      %2143 = vmatpush1.bf16.msra.mxu0 0
      %2144 = vmatprep.subr.bf16.mxu0 0
      %2145 = vmatpush1.bf16.msra.mxu0 0
      %2146 = vmatprep.subr.bf16.mxu0 0
      %2147 = vmatpush1.bf16.msra.mxu0 0
      %2148 = vmatprep.mubr.bf16.mxu0 0
      %2149 = vmatmul.mubr.bf16.gmra.mrb[0].mxu0 %v2096
      %v2150 = vpop.f32.mrb[0].mxu0
      %v2151 = vadd.f32 0.0, %v2150
      %v2152 = vpop.f32.mrb[0].mxu0
      %v2153 = vadd.f32 0.0, %v2152
      %v2154 = vpop.f32.mrb[0].mxu0
      %v2155 = vpop.f32.mrb[0].mxu0
      %2156 = vdwg.mxu0
      %2157 = vmatprep.subr.bf16.mxu0 %v2108
      %2158 = vmatpush1.bf16.msra.mxu0 %v2105
      %2159 = vmatprep.subr.bf16.mxu0 0
      %2160 = vmatpush1.bf16.msra.mxu0 0
      %2161 = vmatprep.subr.bf16.mxu0 0
      %2162 = vmatpush1.bf16.msra.mxu0 0
      %2163 = vmatprep.subr.bf16.mxu0 0
      %2164 = vmatpush1.bf16.msra.mxu0 0
      %2165 = vmatprep.subr.bf16.mxu0 0
      %2166 = vmatpush1.bf16.msra.mxu0 0
      %2167 = vmatprep.subr.bf16.mxu0 0
      %2168 = vmatpush1.bf16.msra.mxu0 0
      %2169 = vmatprep.subr.bf16.mxu0 0
      %2170 = vmatpush1.bf16.msra.mxu0 0
      %2171 = vmatprep.subr.bf16.mxu0 0
      %2172 = vmatpush1.bf16.msra.mxu0 0
      %2173 = vmatprep.subr.bf16.mxu0 0
      %2174 = vmatpush1.bf16.msra.mxu0 0
      %2175 = vmatprep.subr.bf16.mxu0 0
      %2176 = vmatpush1.bf16.msra.mxu0 0
      %2177 = vmatprep.subr.bf16.mxu0 0
      %2178 = vmatpush1.bf16.msra.mxu0 0
      %2179 = vmatprep.subr.bf16.mxu0 0
      %2180 = vmatpush1.bf16.msra.mxu0 0
      %2181 = vmatprep.subr.bf16.mxu0 0
      %2182 = vmatpush1.bf16.msra.mxu0 0
      %2183 = vmatprep.subr.bf16.mxu0 0
      %2184 = vmatpush1.bf16.msra.mxu0 0
      %2185 = vmatprep.subr.bf16.mxu0 0
      %2186 = vmatpush1.bf16.msra.mxu0 0
      %2187 = vmatprep.subr.bf16.mxu0 0
      %2188 = vmatpush1.bf16.msra.mxu0 0
      %2189 = vmatprep.mubr.bf16.mxu0 0
      %2190 = vmatmul.mubr.bf16.gmra.mrb[0].mxu0 %v2096
      %v2191 = vpop.f32.mrb[0].mxu0
      %v2192 = vadd.f32 0.0, %v2191
      %v2193 = vpop.f32.mrb[0].mxu0
      %v2194 = vadd.f32 0.0, %v2193
      %v2195 = vpop.f32.mrb[0].mxu0
      %v2196 = vpop.f32.mrb[0].mxu0
      %2197 = vdwg.mxu0
      %2198 = vmatprep.subr.bf16.mxu0 %v2114
      %2199 = vmatpush1.bf16.msra.mxu0 %v2111
      %2200 = vmatprep.subr.bf16.mxu0 0
      %2201 = vmatpush1.bf16.msra.mxu0 0
      %2202 = vmatprep.subr.bf16.mxu0 0
      %2203 = vmatpush1.bf16.msra.mxu0 0
      %2204 = vmatprep.subr.bf16.mxu0 0
      %2205 = vmatpush1.bf16.msra.mxu0 0
      %2206 = vmatprep.subr.bf16.mxu0 0
      %2207 = vmatpush1.bf16.msra.mxu0 0
      %2208 = vmatprep.subr.bf16.mxu0 0
      %2209 = vmatpush1.bf16.msra.mxu0 0
      %2210 = vmatprep.subr.bf16.mxu0 0
      %2211 = vmatpush1.bf16.msra.mxu0 0
      %2212 = vmatprep.subr.bf16.mxu0 0
      %2213 = vmatpush1.bf16.msra.mxu0 0
      %2214 = vmatprep.subr.bf16.mxu0 0
      %2215 = vmatpush1.bf16.msra.mxu0 0
      %2216 = vmatprep.subr.bf16.mxu0 0
      %2217 = vmatpush1.bf16.msra.mxu0 0
      %2218 = vmatprep.subr.bf16.mxu0 0
      %2219 = vmatpush1.bf16.msra.mxu0 0
      %2220 = vmatprep.subr.bf16.mxu0 0
      %2221 = vmatpush1.bf16.msra.mxu0 0
      %2222 = vmatprep.subr.bf16.mxu0 0
      %2223 = vmatpush1.bf16.msra.mxu0 0
      %2224 = vmatprep.subr.bf16.mxu0 0
      %2225 = vmatpush1.bf16.msra.mxu0 0
      %2226 = vmatprep.subr.bf16.mxu0 0
      %2227 = vmatpush1.bf16.msra.mxu0 0
      %2228 = vmatprep.subr.bf16.mxu0 0
      %2229 = vmatpush1.bf16.msra.mxu0 0
      %2230 = vmatprep.mubr.bf16.mxu0 0
      %2231 = vmatmul.mubr.bf16.gmra.mrb[0].mxu0 %v2096
      %v2232 = vpop.f32.mrb[0].mxu0
      %v2233 = vadd.f32 0.0, %v2232
      %v2234 = vpop.f32.mrb[0].mxu0
      %v2235 = vadd.f32 0.0, %v2234
      %v2236 = vpop.f32.mrb[0].mxu0
      %v2237 = vpop.f32.mrb[0].mxu0
      %2238 = vdwg.mxu0
      %v2239 = vadd.f32 %v2057, %v2151
      %v2240 = vadd.f32 %v2058, %v2153
      %v2241 = vadd.f32 %v2059, %v2192
      %v2242 = vadd.f32 %v2060, %v2194
      %v2243 = vadd.f32 %v2061, %v2233
      %v2244 = vadd.f32 %v2062, %v2235
      %v2245 = vld [vmem:[%s1881] sm:$0xff]
      %v2246 = vld [vmem:[%s1881 + $0x8] sm:$0xf]
      %s2247 = scalar_lea.vmem %s0, 44
      %v2248 = vld [vmem:[%s2247] sm:$0xf]
      %v2251 = vcombine.high %v2245, %v2245
      %v2253 = vunpack.c.l.s4 1983009808
      %v2254 = vunpack.c.0.s8 %v2253
      %v2255 = vlaneseq
      %v2256 = vshrl.u32 %v2255, 7
      %v2257 = vsub.s32 %v2254, %v2256
      %v2258 = vrot.slane %v2245, %v2257
      %v2260 = vunpack.c.l.s4 1983009808
      %v2261 = vunpack.c.0.s8 %v2260
      %v2262 = vlaneseq
      %v2263 = vshrl.u32 %v2262, 7
      %v2264 = vsub.s32 %v2261, %v2263
      %v2265 = vrot.slane %v2251, %v2264
      %v2266 = vcombine.high %v2258, %v2258
      %v2267 = vcombine.high %v2265, %v2265
      %v2269 = vunpack.c.l.s4 1983009808
      %v2270 = vunpack.c.0.s8 %v2269
      %v2271 = vlaneseq
      %v2272 = vshrl.u32 %v2271, 7
      %v2273 = vsub.s32 %v2270, %v2272
      %v2274 = vrot.slane %v2246, %v2273
      %v2275 = vcombine.high %v2274, %v2274
      %2276 = vrot.lane.b32.xlu0 %v2258, 127
      %v2277 = vpop.permute.xlu0 %2276
      %2278 = vrot.lane.b32.xlu0 %v2266, 127
      %v2279 = vpop.permute.xlu0 %2278
      %2280 = vrot.lane.b32.xlu0 %v2265, 127
      %v2281 = vpop.permute.xlu0 %2280
      %2282 = vrot.lane.b32.xlu0 %v2267, 127
      %v2283 = vpop.permute.xlu0 %2282
      %2284 = vrot.lane.b32.xlu0 %v2274, 127
      %v2285 = vpop.permute.xlu0 %2284
      %2286 = vrot.lane.b32.xlu0 %v2275, 127
      %v2287 = vpop.permute.xlu0 %2286
      %v2288 = vsel %vm567, %v2277, %v2279
      %v2289 = vsel %vm567, %v2279, %v2281
      %v2290 = vsel %vm567, %v2281, %v2283
      %v2291 = vsel %vm567, %v2283, %v2285
      %v2292 = vsel %vm567, %v2285, %v2287
      %v2294 = vsel %vm207, %v2248, 0
      %v2297 = vsel %vm211, %v2288, 0
      %v2300 = vsel %vm211, %v2289, 0
      %v2303 = vsel %vm211, %v2290, 0
      %v2306 = vsel %vm211, %v2291, 0
      %v2309 = vsel %vm211, %v2292, 0
      %v2312 = vsel %vm211, %v2287, 0
      %2314 = vmatprep.subr.bf16.mxu0 %v2300
      %2315 = vmatpush1.bf16.msra.mxu0 %v2297
      %2316 = vmatprep.subr.bf16.mxu0 0
      %2317 = vmatpush1.bf16.msra.mxu0 0
      %2318 = vmatprep.subr.bf16.mxu0 0
      %2319 = vmatpush1.bf16.msra.mxu0 0
      %2320 = vmatprep.subr.bf16.mxu0 0
      %2321 = vmatpush1.bf16.msra.mxu0 0
      %2322 = vmatprep.subr.bf16.mxu0 0
      %2323 = vmatpush1.bf16.msra.mxu0 0
      %2324 = vmatprep.subr.bf16.mxu0 0
      %2325 = vmatpush1.bf16.msra.mxu0 0
      %2326 = vmatprep.subr.bf16.mxu0 0
      %2327 = vmatpush1.bf16.msra.mxu0 0
      %2328 = vmatprep.subr.bf16.mxu0 0
      %2329 = vmatpush1.bf16.msra.mxu0 0
      %2330 = vmatprep.subr.bf16.mxu0 0
      %2331 = vmatpush1.bf16.msra.mxu0 0
      %2332 = vmatprep.subr.bf16.mxu0 0
      %2333 = vmatpush1.bf16.msra.mxu0 0
      %2334 = vmatprep.subr.bf16.mxu0 0
      %2335 = vmatpush1.bf16.msra.mxu0 0
      %2336 = vmatprep.subr.bf16.mxu0 0
      %2337 = vmatpush1.bf16.msra.mxu0 0
      %2338 = vmatprep.subr.bf16.mxu0 0
      %2339 = vmatpush1.bf16.msra.mxu0 0
      %2340 = vmatprep.subr.bf16.mxu0 0
      %2341 = vmatpush1.bf16.msra.mxu0 0
      %2342 = vmatprep.subr.bf16.mxu0 0
      %2343 = vmatpush1.bf16.msra.mxu0 0
      %2344 = vmatprep.subr.bf16.mxu0 0
      %2345 = vmatpush1.bf16.msra.mxu0 0
      %2346 = vmatprep.mubr.bf16.mxu0 0
      %2347 = vmatmul.mubr.bf16.gmra.mrb[0].mxu0 %v2294
      %v2348 = vpop.f32.mrb[0].mxu0
      %v2349 = vadd.f32 0.0, %v2348
      %v2350 = vpop.f32.mrb[0].mxu0
      %v2351 = vadd.f32 0.0, %v2350
      %v2352 = vpop.f32.mrb[0].mxu0
      %v2353 = vpop.f32.mrb[0].mxu0
      %2354 = vdwg.mxu0
      %2355 = vmatprep.subr.bf16.mxu0 %v2306
      %2356 = vmatpush1.bf16.msra.mxu0 %v2303
      %2357 = vmatprep.subr.bf16.mxu0 0
      %2358 = vmatpush1.bf16.msra.mxu0 0
      %2359 = vmatprep.subr.bf16.mxu0 0
      %2360 = vmatpush1.bf16.msra.mxu0 0
      %2361 = vmatprep.subr.bf16.mxu0 0
      %2362 = vmatpush1.bf16.msra.mxu0 0
      %2363 = vmatprep.subr.bf16.mxu0 0
      %2364 = vmatpush1.bf16.msra.mxu0 0
      %2365 = vmatprep.subr.bf16.mxu0 0
      %2366 = vmatpush1.bf16.msra.mxu0 0
      %2367 = vmatprep.subr.bf16.mxu0 0
      %2368 = vmatpush1.bf16.msra.mxu0 0
      %2369 = vmatprep.subr.bf16.mxu0 0
      %2370 = vmatpush1.bf16.msra.mxu0 0
      %2371 = vmatprep.subr.bf16.mxu0 0
      %2372 = vmatpush1.bf16.msra.mxu0 0
      %2373 = vmatprep.subr.bf16.mxu0 0
      %2374 = vmatpush1.bf16.msra.mxu0 0
      %2375 = vmatprep.subr.bf16.mxu0 0
      %2376 = vmatpush1.bf16.msra.mxu0 0
      %2377 = vmatprep.subr.bf16.mxu0 0
      %2378 = vmatpush1.bf16.msra.mxu0 0
      %2379 = vmatprep.subr.bf16.mxu0 0
      %2380 = vmatpush1.bf16.msra.mxu0 0
      %2381 = vmatprep.subr.bf16.mxu0 0
      %2382 = vmatpush1.bf16.msra.mxu0 0
      %2383 = vmatprep.subr.bf16.mxu0 0
      %2384 = vmatpush1.bf16.msra.mxu0 0
      %2385 = vmatprep.subr.bf16.mxu0 0
      %2386 = vmatpush1.bf16.msra.mxu0 0
      %2387 = vmatprep.mubr.bf16.mxu0 0
      %2388 = vmatmul.mubr.bf16.gmra.mrb[0].mxu0 %v2294
      %v2389 = vpop.f32.mrb[0].mxu0
      %v2390 = vadd.f32 0.0, %v2389
      %v2391 = vpop.f32.mrb[0].mxu0
      %v2392 = vadd.f32 0.0, %v2391
      %v2393 = vpop.f32.mrb[0].mxu0
      %v2394 = vpop.f32.mrb[0].mxu0
      %2395 = vdwg.mxu0
      %2396 = vmatprep.subr.bf16.mxu0 %v2312
      %2397 = vmatpush1.bf16.msra.mxu0 %v2309
      %2398 = vmatprep.subr.bf16.mxu0 0
      %2399 = vmatpush1.bf16.msra.mxu0 0
      %2400 = vmatprep.subr.bf16.mxu0 0
      %2401 = vmatpush1.bf16.msra.mxu0 0
      %2402 = vmatprep.subr.bf16.mxu0 0
      %2403 = vmatpush1.bf16.msra.mxu0 0
      %2404 = vmatprep.subr.bf16.mxu0 0
      %2405 = vmatpush1.bf16.msra.mxu0 0
      %2406 = vmatprep.subr.bf16.mxu0 0
      %2407 = vmatpush1.bf16.msra.mxu0 0
      %2408 = vmatprep.subr.bf16.mxu0 0
      %2409 = vmatpush1.bf16.msra.mxu0 0
      %2410 = vmatprep.subr.bf16.mxu0 0
      %2411 = vmatpush1.bf16.msra.mxu0 0
      %2412 = vmatprep.subr.bf16.mxu0 0
      %2413 = vmatpush1.bf16.msra.mxu0 0
      %2414 = vmatprep.subr.bf16.mxu0 0
      %2415 = vmatpush1.bf16.msra.mxu0 0
      %2416 = vmatprep.subr.bf16.mxu0 0
      %2417 = vmatpush1.bf16.msra.mxu0 0
      %2418 = vmatprep.subr.bf16.mxu0 0
      %2419 = vmatpush1.bf16.msra.mxu0 0
      %2420 = vmatprep.subr.bf16.mxu0 0
      %2421 = vmatpush1.bf16.msra.mxu0 0
      %2422 = vmatprep.subr.bf16.mxu0 0
      %2423 = vmatpush1.bf16.msra.mxu0 0
      %2424 = vmatprep.subr.bf16.mxu0 0
      %2425 = vmatpush1.bf16.msra.mxu0 0
      %2426 = vmatprep.subr.bf16.mxu0 0
      %2427 = vmatpush1.bf16.msra.mxu0 0
      %2428 = vmatprep.mubr.bf16.mxu0 0
      %2429 = vmatmul.mubr.bf16.gmra.mrb[0].mxu0 %v2294
      %v2430 = vpop.f32.mrb[0].mxu0
      %v2431 = vadd.f32 0.0, %v2430
      %v2432 = vpop.f32.mrb[0].mxu0
      %v2433 = vadd.f32 0.0, %v2432
      %v2434 = vpop.f32.mrb[0].mxu0
      %v2435 = vpop.f32.mrb[0].mxu0
      %2436 = vdwg.mxu0
      %v2437 = vadd.f32 %v2239, %v2349
      %v2438 = vadd.f32 %v2240, %v2351
      %v2439 = vadd.f32 %v2241, %v2390
      %v2440 = vadd.f32 %v2242, %v2392
      %v2441 = vadd.f32 %v2243, %v2431
      %v2442 = vadd.f32 %v2244, %v2433
      %s2443 = scalar_lea.vmem %s165, 72
      %v2444 = vld [vmem:[%s2443] sm:$0xff]
      %v2445 = vld [vmem:[%s2443 + $0x8] sm:$0xf]
      %s2446 = scalar_lea.vmem %s0, 48
      %v2447 = vld [vmem:[%s2446] sm:$0xf]
      %v2450 = vcombine.high %v2444, %v2444
      %v2452 = vunpack.c.l.s4 1983009808
      %v2453 = vunpack.c.0.s8 %v2452
      %v2454 = vlaneseq
      %v2455 = vshrl.u32 %v2454, 7
      %v2456 = vsub.s32 %v2453, %v2455
      %v2457 = vrot.slane %v2444, %v2456
      %v2459 = vunpack.c.l.s4 1983009808
      %v2460 = vunpack.c.0.s8 %v2459
      %v2461 = vlaneseq
      %v2462 = vshrl.u32 %v2461, 7
      %v2463 = vsub.s32 %v2460, %v2462
      %v2464 = vrot.slane %v2450, %v2463
      %v2465 = vcombine.high %v2457, %v2457
      %v2466 = vcombine.high %v2464, %v2464
      %v2468 = vunpack.c.l.s4 1983009808
      %v2469 = vunpack.c.0.s8 %v2468
      %v2470 = vlaneseq
      %v2471 = vshrl.u32 %v2470, 7
      %v2472 = vsub.s32 %v2469, %v2471
      %v2473 = vrot.slane %v2445, %v2472
      %v2474 = vcombine.high %v2473, %v2473
      %v2476 = vsel %vm207, %v2447, 0
      %v2479 = vsel %vm211, %v2457, 0
      %v2482 = vsel %vm211, %v2465, 0
      %v2485 = vsel %vm211, %v2464, 0
      %v2488 = vsel %vm211, %v2466, 0
      %v2491 = vsel %vm211, %v2473, 0
      %v2494 = vsel %vm211, %v2474, 0
      %2496 = vmatprep.subr.bf16.mxu0 %v2482
      %2497 = vmatpush1.bf16.msra.mxu0 %v2479
      %2498 = vmatprep.subr.bf16.mxu0 0
      %2499 = vmatpush1.bf16.msra.mxu0 0
      %2500 = vmatprep.subr.bf16.mxu0 0
      %2501 = vmatpush1.bf16.msra.mxu0 0
      %2502 = vmatprep.subr.bf16.mxu0 0
      %2503 = vmatpush1.bf16.msra.mxu0 0
      %2504 = vmatprep.subr.bf16.mxu0 0
      %2505 = vmatpush1.bf16.msra.mxu0 0
      %2506 = vmatprep.subr.bf16.mxu0 0
      %2507 = vmatpush1.bf16.msra.mxu0 0
      %2508 = vmatprep.subr.bf16.mxu0 0
      %2509 = vmatpush1.bf16.msra.mxu0 0
      %2510 = vmatprep.subr.bf16.mxu0 0
      %2511 = vmatpush1.bf16.msra.mxu0 0
      %2512 = vmatprep.subr.bf16.mxu0 0
      %2513 = vmatpush1.bf16.msra.mxu0 0
      %2514 = vmatprep.subr.bf16.mxu0 0
      %2515 = vmatpush1.bf16.msra.mxu0 0
      %2516 = vmatprep.subr.bf16.mxu0 0
      %2517 = vmatpush1.bf16.msra.mxu0 0
      %2518 = vmatprep.subr.bf16.mxu0 0
      %2519 = vmatpush1.bf16.msra.mxu0 0
      %2520 = vmatprep.subr.bf16.mxu0 0
      %2521 = vmatpush1.bf16.msra.mxu0 0
      %2522 = vmatprep.subr.bf16.mxu0 0
      %2523 = vmatpush1.bf16.msra.mxu0 0
      %2524 = vmatprep.subr.bf16.mxu0 0
      %2525 = vmatpush1.bf16.msra.mxu0 0
      %2526 = vmatprep.subr.bf16.mxu0 0
      %2527 = vmatpush1.bf16.msra.mxu0 0
      %2528 = vmatprep.mubr.bf16.mxu0 0
      %2529 = vmatmul.mubr.bf16.gmra.mrb[0].mxu0 %v2476
      %v2530 = vpop.f32.mrb[0].mxu0
      %v2531 = vadd.f32 0.0, %v2530
      %v2532 = vpop.f32.mrb[0].mxu0
      %v2533 = vadd.f32 0.0, %v2532
      %v2534 = vpop.f32.mrb[0].mxu0
      %v2535 = vpop.f32.mrb[0].mxu0
      %2536 = vdwg.mxu0
      %2537 = vmatprep.subr.bf16.mxu0 %v2488
      %2538 = vmatpush1.bf16.msra.mxu0 %v2485
      %2539 = vmatprep.subr.bf16.mxu0 0
      %2540 = vmatpush1.bf16.msra.mxu0 0
      %2541 = vmatprep.subr.bf16.mxu0 0
      %2542 = vmatpush1.bf16.msra.mxu0 0
      %2543 = vmatprep.subr.bf16.mxu0 0
      %2544 = vmatpush1.bf16.msra.mxu0 0
      %2545 = vmatprep.subr.bf16.mxu0 0
      %2546 = vmatpush1.bf16.msra.mxu0 0
      %2547 = vmatprep.subr.bf16.mxu0 0
      %2548 = vmatpush1.bf16.msra.mxu0 0
      %2549 = vmatprep.subr.bf16.mxu0 0
      %2550 = vmatpush1.bf16.msra.mxu0 0
      %2551 = vmatprep.subr.bf16.mxu0 0
      %2552 = vmatpush1.bf16.msra.mxu0 0
      %2553 = vmatprep.subr.bf16.mxu0 0
      %2554 = vmatpush1.bf16.msra.mxu0 0
      %2555 = vmatprep.subr.bf16.mxu0 0
      %2556 = vmatpush1.bf16.msra.mxu0 0
      %2557 = vmatprep.subr.bf16.mxu0 0
      %2558 = vmatpush1.bf16.msra.mxu0 0
      %2559 = vmatprep.subr.bf16.mxu0 0
      %2560 = vmatpush1.bf16.msra.mxu0 0
      %2561 = vmatprep.subr.bf16.mxu0 0
      %2562 = vmatpush1.bf16.msra.mxu0 0
      %2563 = vmatprep.subr.bf16.mxu0 0
      %2564 = vmatpush1.bf16.msra.mxu0 0
      %2565 = vmatprep.subr.bf16.mxu0 0
      %2566 = vmatpush1.bf16.msra.mxu0 0
      %2567 = vmatprep.subr.bf16.mxu0 0
      %2568 = vmatpush1.bf16.msra.mxu0 0
      %2569 = vmatprep.mubr.bf16.mxu0 0
      %2570 = vmatmul.mubr.bf16.gmra.mrb[0].mxu0 %v2476
      %v2571 = vpop.f32.mrb[0].mxu0
      %v2572 = vadd.f32 0.0, %v2571
      %v2573 = vpop.f32.mrb[0].mxu0
      %v2574 = vadd.f32 0.0, %v2573
      %v2575 = vpop.f32.mrb[0].mxu0
      %v2576 = vpop.f32.mrb[0].mxu0
      %2577 = vdwg.mxu0
      %2578 = vmatprep.subr.bf16.mxu0 %v2494
      %2579 = vmatpush1.bf16.msra.mxu0 %v2491
      %2580 = vmatprep.subr.bf16.mxu0 0
      %2581 = vmatpush1.bf16.msra.mxu0 0
      %2582 = vmatprep.subr.bf16.mxu0 0
      %2583 = vmatpush1.bf16.msra.mxu0 0
      %2584 = vmatprep.subr.bf16.mxu0 0
      %2585 = vmatpush1.bf16.msra.mxu0 0
      %2586 = vmatprep.subr.bf16.mxu0 0
      %2587 = vmatpush1.bf16.msra.mxu0 0
      %2588 = vmatprep.subr.bf16.mxu0 0
      %2589 = vmatpush1.bf16.msra.mxu0 0
      %2590 = vmatprep.subr.bf16.mxu0 0
      %2591 = vmatpush1.bf16.msra.mxu0 0
      %2592 = vmatprep.subr.bf16.mxu0 0
      %2593 = vmatpush1.bf16.msra.mxu0 0
      %2594 = vmatprep.subr.bf16.mxu0 0
      %2595 = vmatpush1.bf16.msra.mxu0 0
      %2596 = vmatprep.subr.bf16.mxu0 0
      %2597 = vmatpush1.bf16.msra.mxu0 0
      %2598 = vmatprep.subr.bf16.mxu0 0
      %2599 = vmatpush1.bf16.msra.mxu0 0
      %2600 = vmatprep.subr.bf16.mxu0 0
      %2601 = vmatpush1.bf16.msra.mxu0 0
      %2602 = vmatprep.subr.bf16.mxu0 0
      %2603 = vmatpush1.bf16.msra.mxu0 0
      %2604 = vmatprep.subr.bf16.mxu0 0
      %2605 = vmatpush1.bf16.msra.mxu0 0
      %2606 = vmatprep.subr.bf16.mxu0 0
      %2607 = vmatpush1.bf16.msra.mxu0 0
      %2608 = vmatprep.subr.bf16.mxu0 0
      %2609 = vmatpush1.bf16.msra.mxu0 0
      %2610 = vmatprep.mubr.bf16.mxu0 0
      %2611 = vmatmul.mubr.bf16.gmra.mrb[0].mxu0 %v2476
      %v2612 = vpop.f32.mrb[0].mxu0
      %v2613 = vadd.f32 0.0, %v2612
      %v2614 = vpop.f32.mrb[0].mxu0
      %v2615 = vadd.f32 0.0, %v2614
      %v2616 = vpop.f32.mrb[0].mxu0
      %v2617 = vpop.f32.mrb[0].mxu0
      %2618 = vdwg.mxu0
      %v2619 = vadd.f32 %v2437, %v2531
      %v2620 = vadd.f32 %v2438, %v2533
      %v2621 = vadd.f32 %v2439, %v2572
      %v2622 = vadd.f32 %v2440, %v2574
      %v2623 = vadd.f32 %v2441, %v2613
      %v2624 = vadd.f32 %v2442, %v2615
      %s2625 = scalar_lea.vmem %s165, 84
      %v2626 = vld [vmem:[%s2625] sm:$0xff]
      %v2627 = vld [vmem:[%s2625 + $0x8] sm:$0xf]
      %s2628 = scalar_lea.vmem %s0, 52
      %v2629 = vld [vmem:[%s2628] sm:$0xf]
      %v2632 = vcombine.high %v2626, %v2626
      %v2634 = vunpack.c.l.s4 1983009808
      %v2635 = vunpack.c.0.s8 %v2634
      %v2636 = vlaneseq
      %v2637 = vshrl.u32 %v2636, 7
      %v2638 = vsub.s32 %v2635, %v2637
      %v2639 = vrot.slane %v2626, %v2638
      %v2641 = vunpack.c.l.s4 1983009808
      %v2642 = vunpack.c.0.s8 %v2641
      %v2643 = vlaneseq
      %v2644 = vshrl.u32 %v2643, 7
      %v2645 = vsub.s32 %v2642, %v2644
      %v2646 = vrot.slane %v2632, %v2645
      %v2647 = vcombine.high %v2639, %v2639
      %v2648 = vcombine.high %v2646, %v2646
      %v2650 = vunpack.c.l.s4 1983009808
      %v2651 = vunpack.c.0.s8 %v2650
      %v2652 = vlaneseq
      %v2653 = vshrl.u32 %v2652, 7
      %v2654 = vsub.s32 %v2651, %v2653
      %v2655 = vrot.slane %v2627, %v2654
      %v2656 = vcombine.high %v2655, %v2655
      %v2658 = vsel %vm207, %v2629, 0
      %v2661 = vsel %vm211, %v2639, 0
      %v2664 = vsel %vm211, %v2647, 0
      %v2667 = vsel %vm211, %v2646, 0
      %v2670 = vsel %vm211, %v2648, 0
      %v2673 = vsel %vm211, %v2655, 0
      %v2676 = vsel %vm211, %v2656, 0
      %2678 = vmatprep.subr.bf16.mxu0 %v2664
      %2679 = vmatpush1.bf16.msra.mxu0 %v2661
      %2680 = vmatprep.subr.bf16.mxu0 0
      %2681 = vmatpush1.bf16.msra.mxu0 0
      %2682 = vmatprep.subr.bf16.mxu0 0
      %2683 = vmatpush1.bf16.msra.mxu0 0
      %2684 = vmatprep.subr.bf16.mxu0 0
      %2685 = vmatpush1.bf16.msra.mxu0 0
      %2686 = vmatprep.subr.bf16.mxu0 0
      %2687 = vmatpush1.bf16.msra.mxu0 0
      %2688 = vmatprep.subr.bf16.mxu0 0
      %2689 = vmatpush1.bf16.msra.mxu0 0
      %2690 = vmatprep.subr.bf16.mxu0 0
      %2691 = vmatpush1.bf16.msra.mxu0 0
      %2692 = vmatprep.subr.bf16.mxu0 0
      %2693 = vmatpush1.bf16.msra.mxu0 0
      %2694 = vmatprep.subr.bf16.mxu0 0
      %2695 = vmatpush1.bf16.msra.mxu0 0
      %2696 = vmatprep.subr.bf16.mxu0 0
      %2697 = vmatpush1.bf16.msra.mxu0 0
      %2698 = vmatprep.subr.bf16.mxu0 0
      %2699 = vmatpush1.bf16.msra.mxu0 0
      %2700 = vmatprep.subr.bf16.mxu0 0
      %2701 = vmatpush1.bf16.msra.mxu0 0
      %2702 = vmatprep.subr.bf16.mxu0 0
      %2703 = vmatpush1.bf16.msra.mxu0 0
      %2704 = vmatprep.subr.bf16.mxu0 0
      %2705 = vmatpush1.bf16.msra.mxu0 0
      %2706 = vmatprep.subr.bf16.mxu0 0
      %2707 = vmatpush1.bf16.msra.mxu0 0
      %2708 = vmatprep.subr.bf16.mxu0 0
      %2709 = vmatpush1.bf16.msra.mxu0 0
      %2710 = vmatprep.mubr.bf16.mxu0 0
      %2711 = vmatmul.mubr.bf16.gmra.mrb[0].mxu0 %v2658
      %v2712 = vpop.f32.mrb[0].mxu0
      %v2713 = vadd.f32 0.0, %v2712
      %v2714 = vpop.f32.mrb[0].mxu0
      %v2715 = vadd.f32 0.0, %v2714
      %v2716 = vpop.f32.mrb[0].mxu0
      %v2717 = vpop.f32.mrb[0].mxu0
      %2718 = vdwg.mxu0
      %2719 = vmatprep.subr.bf16.mxu0 %v2670
      %2720 = vmatpush1.bf16.msra.mxu0 %v2667
      %2721 = vmatprep.subr.bf16.mxu0 0
      %2722 = vmatpush1.bf16.msra.mxu0 0
      %2723 = vmatprep.subr.bf16.mxu0 0
      %2724 = vmatpush1.bf16.msra.mxu0 0
      %2725 = vmatprep.subr.bf16.mxu0 0
      %2726 = vmatpush1.bf16.msra.mxu0 0
      %2727 = vmatprep.subr.bf16.mxu0 0
      %2728 = vmatpush1.bf16.msra.mxu0 0
      %2729 = vmatprep.subr.bf16.mxu0 0
      %2730 = vmatpush1.bf16.msra.mxu0 0
      %2731 = vmatprep.subr.bf16.mxu0 0
      %2732 = vmatpush1.bf16.msra.mxu0 0
      %2733 = vmatprep.subr.bf16.mxu0 0
      %2734 = vmatpush1.bf16.msra.mxu0 0
      %2735 = vmatprep.subr.bf16.mxu0 0
      %2736 = vmatpush1.bf16.msra.mxu0 0
      %2737 = vmatprep.subr.bf16.mxu0 0
      %2738 = vmatpush1.bf16.msra.mxu0 0
      %2739 = vmatprep.subr.bf16.mxu0 0
      %2740 = vmatpush1.bf16.msra.mxu0 0
      %2741 = vmatprep.subr.bf16.mxu0 0
      %2742 = vmatpush1.bf16.msra.mxu0 0
      %2743 = vmatprep.subr.bf16.mxu0 0
      %2744 = vmatpush1.bf16.msra.mxu0 0
      %2745 = vmatprep.subr.bf16.mxu0 0
      %2746 = vmatpush1.bf16.msra.mxu0 0
      %2747 = vmatprep.subr.bf16.mxu0 0
      %2748 = vmatpush1.bf16.msra.mxu0 0
      %2749 = vmatprep.subr.bf16.mxu0 0
      %2750 = vmatpush1.bf16.msra.mxu0 0
      %2751 = vmatprep.mubr.bf16.mxu0 0
      %2752 = vmatmul.mubr.bf16.gmra.mrb[0].mxu0 %v2658
      %v2753 = vpop.f32.mrb[0].mxu0
      %v2754 = vadd.f32 0.0, %v2753
      %v2755 = vpop.f32.mrb[0].mxu0
      %v2756 = vadd.f32 0.0, %v2755
      %v2757 = vpop.f32.mrb[0].mxu0
      %v2758 = vpop.f32.mrb[0].mxu0
      %2759 = vdwg.mxu0
      %2760 = vmatprep.subr.bf16.mxu0 %v2676
      %2761 = vmatpush1.bf16.msra.mxu0 %v2673
      %2762 = vmatprep.subr.bf16.mxu0 0
      %2763 = vmatpush1.bf16.msra.mxu0 0
      %2764 = vmatprep.subr.bf16.mxu0 0
      %2765 = vmatpush1.bf16.msra.mxu0 0
      %2766 = vmatprep.subr.bf16.mxu0 0
      %2767 = vmatpush1.bf16.msra.mxu0 0
      %2768 = vmatprep.subr.bf16.mxu0 0
      %2769 = vmatpush1.bf16.msra.mxu0 0
      %2770 = vmatprep.subr.bf16.mxu0 0
      %2771 = vmatpush1.bf16.msra.mxu0 0
      %2772 = vmatprep.subr.bf16.mxu0 0
      %2773 = vmatpush1.bf16.msra.mxu0 0
      %2774 = vmatprep.subr.bf16.mxu0 0
      %2775 = vmatpush1.bf16.msra.mxu0 0
      %2776 = vmatprep.subr.bf16.mxu0 0
      %2777 = vmatpush1.bf16.msra.mxu0 0
      %2778 = vmatprep.subr.bf16.mxu0 0
      %2779 = vmatpush1.bf16.msra.mxu0 0
      %2780 = vmatprep.subr.bf16.mxu0 0
      %2781 = vmatpush1.bf16.msra.mxu0 0
      %2782 = vmatprep.subr.bf16.mxu0 0
      %2783 = vmatpush1.bf16.msra.mxu0 0
      %2784 = vmatprep.subr.bf16.mxu0 0
      %2785 = vmatpush1.bf16.msra.mxu0 0
      %2786 = vmatprep.subr.bf16.mxu0 0
      %2787 = vmatpush1.bf16.msra.mxu0 0
      %2788 = vmatprep.subr.bf16.mxu0 0
      %2789 = vmatpush1.bf16.msra.mxu0 0
      %2790 = vmatprep.subr.bf16.mxu0 0
      %2791 = vmatpush1.bf16.msra.mxu0 0
      %2792 = vmatprep.mubr.bf16.mxu0 0
      %2793 = vmatmul.mubr.bf16.gmra.mrb[0].mxu0 %v2658
      %v2794 = vpop.f32.mrb[0].mxu0
      %v2795 = vadd.f32 0.0, %v2794
      %v2796 = vpop.f32.mrb[0].mxu0
      %v2797 = vadd.f32 0.0, %v2796
      %v2798 = vpop.f32.mrb[0].mxu0
      %v2799 = vpop.f32.mrb[0].mxu0
      %2800 = vdwg.mxu0
      %v2801 = vadd.f32 %v2619, %v2713
      %v2802 = vadd.f32 %v2620, %v2715
      %v2803 = vadd.f32 %v2621, %v2754
      %v2804 = vadd.f32 %v2622, %v2756
      %v2805 = vadd.f32 %v2623, %v2795
      %v2806 = vadd.f32 %v2624, %v2797
      %v2807 = vld [vmem:[%s2443] sm:$0xff]
      %v2808 = vld [vmem:[%s2443 + $0x8] sm:$0xf]
      %s2809 = scalar_lea.vmem %s0, 56
      %v2810 = vld [vmem:[%s2809] sm:$0xf]
      %v2813 = vcombine.high %v2807, %v2807
      %v2815 = vunpack.c.l.s4 1983009808
      %v2816 = vunpack.c.0.s8 %v2815
      %v2817 = vlaneseq
      %v2818 = vshrl.u32 %v2817, 7
      %v2819 = vsub.s32 %v2816, %v2818
      %v2820 = vrot.slane %v2807, %v2819
      %v2822 = vunpack.c.l.s4 1983009808
      %v2823 = vunpack.c.0.s8 %v2822
      %v2824 = vlaneseq
      %v2825 = vshrl.u32 %v2824, 7
      %v2826 = vsub.s32 %v2823, %v2825
      %v2827 = vrot.slane %v2813, %v2826
      %v2828 = vcombine.high %v2820, %v2820
      %v2829 = vcombine.high %v2827, %v2827
      %v2831 = vunpack.c.l.s4 1983009808
      %v2832 = vunpack.c.0.s8 %v2831
      %v2833 = vlaneseq
      %v2834 = vshrl.u32 %v2833, 7
      %v2835 = vsub.s32 %v2832, %v2834
      %v2836 = vrot.slane %v2808, %v2835
      %v2837 = vcombine.high %v2836, %v2836
      %2838 = vrot.lane.b32.xlu0 %v2820, 127
      %v2839 = vpop.permute.xlu0 %2838
      %2840 = vrot.lane.b32.xlu0 %v2828, 127
      %v2841 = vpop.permute.xlu0 %2840
      %2842 = vrot.lane.b32.xlu0 %v2827, 127
      %v2843 = vpop.permute.xlu0 %2842
      %2844 = vrot.lane.b32.xlu0 %v2829, 127
      %v2845 = vpop.permute.xlu0 %2844
      %2846 = vrot.lane.b32.xlu0 %v2836, 127
      %v2847 = vpop.permute.xlu0 %2846
      %2848 = vrot.lane.b32.xlu0 %v2837, 127
      %v2849 = vpop.permute.xlu0 %2848
      %v2850 = vsel %vm567, %v2839, %v2841
      %v2851 = vsel %vm567, %v2841, %v2843
      %v2852 = vsel %vm567, %v2843, %v2845
      %v2853 = vsel %vm567, %v2845, %v2847
      %v2854 = vsel %vm567, %v2847, %v2849
      %v2856 = vsel %vm207, %v2810, 0
      %v2859 = vsel %vm211, %v2850, 0
      %v2862 = vsel %vm211, %v2851, 0
      %v2865 = vsel %vm211, %v2852, 0
      %v2868 = vsel %vm211, %v2853, 0
      %v2871 = vsel %vm211, %v2854, 0
      %v2874 = vsel %vm211, %v2849, 0
      %2876 = vmatprep.subr.bf16.mxu0 %v2862
      %2877 = vmatpush1.bf16.msra.mxu0 %v2859
      %2878 = vmatprep.subr.bf16.mxu0 0
      %2879 = vmatpush1.bf16.msra.mxu0 0
      %2880 = vmatprep.subr.bf16.mxu0 0
      %2881 = vmatpush1.bf16.msra.mxu0 0
      %2882 = vmatprep.subr.bf16.mxu0 0
      %2883 = vmatpush1.bf16.msra.mxu0 0
      %2884 = vmatprep.subr.bf16.mxu0 0
      %2885 = vmatpush1.bf16.msra.mxu0 0
      %2886 = vmatprep.subr.bf16.mxu0 0
      %2887 = vmatpush1.bf16.msra.mxu0 0
      %2888 = vmatprep.subr.bf16.mxu0 0
      %2889 = vmatpush1.bf16.msra.mxu0 0
      %2890 = vmatprep.subr.bf16.mxu0 0
      %2891 = vmatpush1.bf16.msra.mxu0 0
      %2892 = vmatprep.subr.bf16.mxu0 0
      %2893 = vmatpush1.bf16.msra.mxu0 0
      %2894 = vmatprep.subr.bf16.mxu0 0
      %2895 = vmatpush1.bf16.msra.mxu0 0
      %2896 = vmatprep.subr.bf16.mxu0 0
      %2897 = vmatpush1.bf16.msra.mxu0 0
      %2898 = vmatprep.subr.bf16.mxu0 0
      %2899 = vmatpush1.bf16.msra.mxu0 0
      %2900 = vmatprep.subr.bf16.mxu0 0
      %2901 = vmatpush1.bf16.msra.mxu0 0
      %2902 = vmatprep.subr.bf16.mxu0 0
      %2903 = vmatpush1.bf16.msra.mxu0 0
      %2904 = vmatprep.subr.bf16.mxu0 0
      %2905 = vmatpush1.bf16.msra.mxu0 0
      %2906 = vmatprep.subr.bf16.mxu0 0
      %2907 = vmatpush1.bf16.msra.mxu0 0
      %2908 = vmatprep.mubr.bf16.mxu0 0
      %2909 = vmatmul.mubr.bf16.gmra.mrb[0].mxu0 %v2856
      %v2910 = vpop.f32.mrb[0].mxu0
      %v2911 = vadd.f32 0.0, %v2910
      %v2912 = vpop.f32.mrb[0].mxu0
      %v2913 = vadd.f32 0.0, %v2912
      %v2914 = vpop.f32.mrb[0].mxu0
      %v2915 = vpop.f32.mrb[0].mxu0
      %2916 = vdwg.mxu0
      %2917 = vmatprep.subr.bf16.mxu0 %v2868
      %2918 = vmatpush1.bf16.msra.mxu0 %v2865
      %2919 = vmatprep.subr.bf16.mxu0 0
      %2920 = vmatpush1.bf16.msra.mxu0 0
      %2921 = vmatprep.subr.bf16.mxu0 0
      %2922 = vmatpush1.bf16.msra.mxu0 0
      %2923 = vmatprep.subr.bf16.mxu0 0
      %2924 = vmatpush1.bf16.msra.mxu0 0
      %2925 = vmatprep.subr.bf16.mxu0 0
      %2926 = vmatpush1.bf16.msra.mxu0 0
      %2927 = vmatprep.subr.bf16.mxu0 0
      %2928 = vmatpush1.bf16.msra.mxu0 0
      %2929 = vmatprep.subr.bf16.mxu0 0
      %2930 = vmatpush1.bf16.msra.mxu0 0
      %2931 = vmatprep.subr.bf16.mxu0 0
      %2932 = vmatpush1.bf16.msra.mxu0 0
      %2933 = vmatprep.subr.bf16.mxu0 0
      %2934 = vmatpush1.bf16.msra.mxu0 0
      %2935 = vmatprep.subr.bf16.mxu0 0
      %2936 = vmatpush1.bf16.msra.mxu0 0
      %2937 = vmatprep.subr.bf16.mxu0 0
      %2938 = vmatpush1.bf16.msra.mxu0 0
      %2939 = vmatprep.subr.bf16.mxu0 0
      %2940 = vmatpush1.bf16.msra.mxu0 0
      %2941 = vmatprep.subr.bf16.mxu0 0
      %2942 = vmatpush1.bf16.msra.mxu0 0
      %2943 = vmatprep.subr.bf16.mxu0 0
      %2944 = vmatpush1.bf16.msra.mxu0 0
      %2945 = vmatprep.subr.bf16.mxu0 0
      %2946 = vmatpush1.bf16.msra.mxu0 0
      %2947 = vmatprep.subr.bf16.mxu0 0
      %2948 = vmatpush1.bf16.msra.mxu0 0
      %2949 = vmatprep.mubr.bf16.mxu0 0
      %2950 = vmatmul.mubr.bf16.gmra.mrb[0].mxu0 %v2856
      %v2951 = vpop.f32.mrb[0].mxu0
      %v2952 = vadd.f32 0.0, %v2951
      %v2953 = vpop.f32.mrb[0].mxu0
      %v2954 = vadd.f32 0.0, %v2953
      %v2955 = vpop.f32.mrb[0].mxu0
      %v2956 = vpop.f32.mrb[0].mxu0
      %2957 = vdwg.mxu0
      %2958 = vmatprep.subr.bf16.mxu0 %v2874
      %2959 = vmatpush1.bf16.msra.mxu0 %v2871
      %2960 = vmatprep.subr.bf16.mxu0 0
      %2961 = vmatpush1.bf16.msra.mxu0 0
      %2962 = vmatprep.subr.bf16.mxu0 0
      %2963 = vmatpush1.bf16.msra.mxu0 0
      %2964 = vmatprep.subr.bf16.mxu0 0
      %2965 = vmatpush1.bf16.msra.mxu0 0
      %2966 = vmatprep.subr.bf16.mxu0 0
      %2967 = vmatpush1.bf16.msra.mxu0 0
      %2968 = vmatprep.subr.bf16.mxu0 0
      %2969 = vmatpush1.bf16.msra.mxu0 0
      %2970 = vmatprep.subr.bf16.mxu0 0
      %2971 = vmatpush1.bf16.msra.mxu0 0
      %2972 = vmatprep.subr.bf16.mxu0 0
      %2973 = vmatpush1.bf16.msra.mxu0 0
      %2974 = vmatprep.subr.bf16.mxu0 0
      %2975 = vmatpush1.bf16.msra.mxu0 0
      %2976 = vmatprep.subr.bf16.mxu0 0
      %2977 = vmatpush1.bf16.msra.mxu0 0
      %2978 = vmatprep.subr.bf16.mxu0 0
      %2979 = vmatpush1.bf16.msra.mxu0 0
      %2980 = vmatprep.subr.bf16.mxu0 0
      %2981 = vmatpush1.bf16.msra.mxu0 0
      %2982 = vmatprep.subr.bf16.mxu0 0
      %2983 = vmatpush1.bf16.msra.mxu0 0
      %2984 = vmatprep.subr.bf16.mxu0 0
      %2985 = vmatpush1.bf16.msra.mxu0 0
      %2986 = vmatprep.subr.bf16.mxu0 0
      %2987 = vmatpush1.bf16.msra.mxu0 0
      %2988 = vmatprep.subr.bf16.mxu0 0
      %2989 = vmatpush1.bf16.msra.mxu0 0
      %2990 = vmatprep.mubr.bf16.mxu0 0
      %2991 = vmatmul.mubr.bf16.gmra.mrb[0].mxu0 %v2856
      %v2992 = vpop.f32.mrb[0].mxu0
      %v2993 = vadd.f32 0.0, %v2992
      %v2994 = vpop.f32.mrb[0].mxu0
      %v2995 = vadd.f32 0.0, %v2994
      %v2996 = vpop.f32.mrb[0].mxu0
      %v2997 = vpop.f32.mrb[0].mxu0
      %2998 = vdwg.mxu0
      %v2999 = vadd.f32 %v2801, %v2911
      %v3000 = vadd.f32 %v2802, %v2913
      %v3001 = vadd.f32 %v2803, %v2952
      %v3002 = vadd.f32 %v2804, %v2954
      %v3003 = vadd.f32 %v2805, %v2993
      %v3004 = vadd.f32 %v2806, %v2995
      %v3005 = vld [vmem:[%s1881] sm:$0xff]
      %v3006 = vld [vmem:[%s1881 + $0x8] sm:$0xf]
      %s3007 = scalar_lea.vmem %s0, 60
      %v3008 = vld [vmem:[%s3007] sm:$0xf]
      %v3011 = vcombine.high %v3005, %v3005
      %v3013 = vunpack.c.l.s4 1983009808
      %v3014 = vunpack.c.0.s8 %v3013
      %v3015 = vlaneseq
      %v3016 = vshrl.u32 %v3015, 7
      %v3017 = vsub.s32 %v3014, %v3016
      %v3018 = vrot.slane %v3005, %v3017
      %v3020 = vunpack.c.l.s4 1983009808
      %v3021 = vunpack.c.0.s8 %v3020
      %v3022 = vlaneseq
      %v3023 = vshrl.u32 %v3022, 7
      %v3024 = vsub.s32 %v3021, %v3023
      %v3025 = vrot.slane %v3011, %v3024
      %v3026 = vcombine.high %v3018, %v3018
      %v3027 = vcombine.high %v3025, %v3025
      %v3029 = vunpack.c.l.s4 1983009808
      %v3030 = vunpack.c.0.s8 %v3029
      %v3031 = vlaneseq
      %v3032 = vshrl.u32 %v3031, 7
      %v3033 = vsub.s32 %v3030, %v3032
      %v3034 = vrot.slane %v3006, %v3033
      %v3035 = vcombine.high %v3034, %v3034
      %3036 = vrot.lane.b32.xlu0 %v3018, 119
      %v3037 = vpop.permute.xlu0 %3036
      %3038 = vrot.lane.b32.xlu0 %v3026, 119
      %v3039 = vpop.permute.xlu0 %3038
      %3040 = vrot.lane.b32.xlu0 %v3025, 119
      %v3041 = vpop.permute.xlu0 %3040
      %3042 = vrot.lane.b32.xlu0 %v3027, 119
      %v3043 = vpop.permute.xlu0 %3042
      %3044 = vrot.lane.b32.xlu0 %v3034, 119
      %v3045 = vpop.permute.xlu0 %3044
      %3046 = vrot.lane.b32.xlu0 %v3035, 119
      %v3047 = vpop.permute.xlu0 %3046
      %v3048 = vsel %vm1328, %v3037, %v3039
      %v3049 = vsel %vm1328, %v3039, %v3041
      %v3050 = vsel %vm1328, %v3041, %v3043
      %v3051 = vsel %vm1328, %v3043, %v3045
      %v3052 = vsel %vm1328, %v3045, %v3047
      %v3054 = vsel %vm207, %v3008, 0
      %v3057 = vsel %vm211, %v3048, 0
      %v3060 = vsel %vm211, %v3049, 0
      %v3063 = vsel %vm211, %v3050, 0
      %v3066 = vsel %vm211, %v3051, 0
      %v3069 = vsel %vm211, %v3052, 0
      %v3072 = vsel %vm211, %v3047, 0
      %3074 = vmatprep.subr.bf16.mxu0 %v3060
      %3075 = vmatpush1.bf16.msra.mxu0 %v3057
      %3076 = vmatprep.subr.bf16.mxu0 0
      %3077 = vmatpush1.bf16.msra.mxu0 0
      %3078 = vmatprep.subr.bf16.mxu0 0
      %3079 = vmatpush1.bf16.msra.mxu0 0
      %3080 = vmatprep.subr.bf16.mxu0 0
      %3081 = vmatpush1.bf16.msra.mxu0 0
      %3082 = vmatprep.subr.bf16.mxu0 0
      %3083 = vmatpush1.bf16.msra.mxu0 0
      %3084 = vmatprep.subr.bf16.mxu0 0
      %3085 = vmatpush1.bf16.msra.mxu0 0
      %3086 = vmatprep.subr.bf16.mxu0 0
      %3087 = vmatpush1.bf16.msra.mxu0 0
      %3088 = vmatprep.subr.bf16.mxu0 0
      %3089 = vmatpush1.bf16.msra.mxu0 0
      %3090 = vmatprep.subr.bf16.mxu0 0
      %3091 = vmatpush1.bf16.msra.mxu0 0
      %3092 = vmatprep.subr.bf16.mxu0 0
      %3093 = vmatpush1.bf16.msra.mxu0 0
      %3094 = vmatprep.subr.bf16.mxu0 0
      %3095 = vmatpush1.bf16.msra.mxu0 0
      %3096 = vmatprep.subr.bf16.mxu0 0
      %3097 = vmatpush1.bf16.msra.mxu0 0
      %3098 = vmatprep.subr.bf16.mxu0 0
      %3099 = vmatpush1.bf16.msra.mxu0 0
      %3100 = vmatprep.subr.bf16.mxu0 0
      %3101 = vmatpush1.bf16.msra.mxu0 0
      %3102 = vmatprep.subr.bf16.mxu0 0
      %3103 = vmatpush1.bf16.msra.mxu0 0
      %3104 = vmatprep.subr.bf16.mxu0 0
      %3105 = vmatpush1.bf16.msra.mxu0 0
      %3106 = vmatprep.mubr.bf16.mxu0 0
      %3107 = vmatmul.mubr.bf16.gmra.mrb[0].mxu0 %v3054
      %v3108 = vpop.f32.mrb[0].mxu0
      %v3109 = vadd.f32 0.0, %v3108
      %v3110 = vpop.f32.mrb[0].mxu0
      %v3111 = vadd.f32 0.0, %v3110
      %v3112 = vpop.f32.mrb[0].mxu0
      %v3113 = vpop.f32.mrb[0].mxu0
      %3114 = vdwg.mxu0
      %3115 = vmatprep.subr.bf16.mxu0 %v3066
      %3116 = vmatpush1.bf16.msra.mxu0 %v3063
      %3117 = vmatprep.subr.bf16.mxu0 0
      %3118 = vmatpush1.bf16.msra.mxu0 0
      %3119 = vmatprep.subr.bf16.mxu0 0
      %3120 = vmatpush1.bf16.msra.mxu0 0
      %3121 = vmatprep.subr.bf16.mxu0 0
      %3122 = vmatpush1.bf16.msra.mxu0 0
      %3123 = vmatprep.subr.bf16.mxu0 0
      %3124 = vmatpush1.bf16.msra.mxu0 0
      %3125 = vmatprep.subr.bf16.mxu0 0
      %3126 = vmatpush1.bf16.msra.mxu0 0
      %3127 = vmatprep.subr.bf16.mxu0 0
      %3128 = vmatpush1.bf16.msra.mxu0 0
      %3129 = vmatprep.subr.bf16.mxu0 0
      %3130 = vmatpush1.bf16.msra.mxu0 0
      %3131 = vmatprep.subr.bf16.mxu0 0
      %3132 = vmatpush1.bf16.msra.mxu0 0
      %3133 = vmatprep.subr.bf16.mxu0 0
      %3134 = vmatpush1.bf16.msra.mxu0 0
      %3135 = vmatprep.subr.bf16.mxu0 0
      %3136 = vmatpush1.bf16.msra.mxu0 0
      %3137 = vmatprep.subr.bf16.mxu0 0
      %3138 = vmatpush1.bf16.msra.mxu0 0
      %3139 = vmatprep.subr.bf16.mxu0 0
      %3140 = vmatpush1.bf16.msra.mxu0 0
      %3141 = vmatprep.subr.bf16.mxu0 0
      %3142 = vmatpush1.bf16.msra.mxu0 0
      %3143 = vmatprep.subr.bf16.mxu0 0
      %3144 = vmatpush1.bf16.msra.mxu0 0
      %3145 = vmatprep.subr.bf16.mxu0 0
      %3146 = vmatpush1.bf16.msra.mxu0 0
      %3147 = vmatprep.mubr.bf16.mxu0 0
      %3148 = vmatmul.mubr.bf16.gmra.mrb[0].mxu0 %v3054
      %v3149 = vpop.f32.mrb[0].mxu0
      %v3150 = vadd.f32 0.0, %v3149
      %v3151 = vpop.f32.mrb[0].mxu0
      %v3152 = vadd.f32 0.0, %v3151
      %v3153 = vpop.f32.mrb[0].mxu0
      %v3154 = vpop.f32.mrb[0].mxu0
      %3155 = vdwg.mxu0
      %3156 = vmatprep.subr.bf16.mxu0 %v3072
      %3157 = vmatpush1.bf16.msra.mxu0 %v3069
      %3158 = vmatprep.subr.bf16.mxu0 0
      %3159 = vmatpush1.bf16.msra.mxu0 0
      %3160 = vmatprep.subr.bf16.mxu0 0
      %3161 = vmatpush1.bf16.msra.mxu0 0
      %3162 = vmatprep.subr.bf16.mxu0 0
      %3163 = vmatpush1.bf16.msra.mxu0 0
      %3164 = vmatprep.subr.bf16.mxu0 0
      %3165 = vmatpush1.bf16.msra.mxu0 0
      %3166 = vmatprep.subr.bf16.mxu0 0
      %3167 = vmatpush1.bf16.msra.mxu0 0
      %3168 = vmatprep.subr.bf16.mxu0 0
      %3169 = vmatpush1.bf16.msra.mxu0 0
      %3170 = vmatprep.subr.bf16.mxu0 0
      %3171 = vmatpush1.bf16.msra.mxu0 0
      %3172 = vmatprep.subr.bf16.mxu0 0
      %3173 = vmatpush1.bf16.msra.mxu0 0
      %3174 = vmatprep.subr.bf16.mxu0 0
      %3175 = vmatpush1.bf16.msra.mxu0 0
      %3176 = vmatprep.subr.bf16.mxu0 0
      %3177 = vmatpush1.bf16.msra.mxu0 0
      %3178 = vmatprep.subr.bf16.mxu0 0
      %3179 = vmatpush1.bf16.msra.mxu0 0
      %3180 = vmatprep.subr.bf16.mxu0 0
      %3181 = vmatpush1.bf16.msra.mxu0 0
      %3182 = vmatprep.subr.bf16.mxu0 0
      %3183 = vmatpush1.bf16.msra.mxu0 0
      %3184 = vmatprep.subr.bf16.mxu0 0
      %3185 = vmatpush1.bf16.msra.mxu0 0
      %3186 = vmatprep.subr.bf16.mxu0 0
      %3187 = vmatpush1.bf16.msra.mxu0 0
      %3188 = vmatprep.mubr.bf16.mxu0 0
      %3189 = vmatmul.mubr.bf16.gmra.mrb[0].mxu0 %v3054
      %v3190 = vpop.f32.mrb[0].mxu0
      %v3191 = vadd.f32 0.0, %v3190
      %v3192 = vpop.f32.mrb[0].mxu0
      %v3193 = vadd.f32 0.0, %v3192
      %v3194 = vpop.f32.mrb[0].mxu0
      %v3195 = vpop.f32.mrb[0].mxu0
      %3196 = vdwg.mxu0
      %v3197 = vadd.f32 %v2999, %v3109
      %v3198 = vadd.f32 %v3000, %v3111
      %v3199 = vadd.f32 %v3001, %v3150
      %v3200 = vadd.f32 %v3002, %v3152
      %v3201 = vadd.f32 %v3003, %v3191
      %v3202 = vadd.f32 %v3004, %v3193
      %v3203 = vld [vmem:[%s2063] sm:$0xff]
      %v3204 = vld [vmem:[%s2063 + $0x8] sm:$0xf]
      %s3205 = scalar_lea.vmem %s0, 64
      %v3206 = vld [vmem:[%s3205] sm:$0xf]
      %v3209 = vcombine.high %v3203, %v3203
      %v3211 = vunpack.c.l.s4 1983009808
      %v3212 = vunpack.c.0.s8 %v3211
      %v3213 = vlaneseq
      %v3214 = vshrl.u32 %v3213, 7
      %v3215 = vsub.s32 %v3212, %v3214
      %v3216 = vrot.slane %v3203, %v3215
      %v3218 = vunpack.c.l.s4 1983009808
      %v3219 = vunpack.c.0.s8 %v3218
      %v3220 = vlaneseq
      %v3221 = vshrl.u32 %v3220, 7
      %v3222 = vsub.s32 %v3219, %v3221
      %v3223 = vrot.slane %v3209, %v3222
      %v3224 = vcombine.high %v3216, %v3216
      %v3225 = vcombine.high %v3223, %v3223
      %v3227 = vunpack.c.l.s4 1983009808
      %v3228 = vunpack.c.0.s8 %v3227
      %v3229 = vlaneseq
      %v3230 = vshrl.u32 %v3229, 7
      %v3231 = vsub.s32 %v3228, %v3230
      %v3232 = vrot.slane %v3204, %v3231
      %v3233 = vcombine.high %v3232, %v3232
      %3234 = vrot.lane.b32.xlu0 %v3216, 119
      %v3235 = vpop.permute.xlu0 %3234
      %3236 = vrot.lane.b32.xlu0 %v3224, 119
      %v3237 = vpop.permute.xlu0 %3236
      %3238 = vrot.lane.b32.xlu0 %v3223, 119
      %v3239 = vpop.permute.xlu0 %3238
      %3240 = vrot.lane.b32.xlu0 %v3225, 119
      %v3241 = vpop.permute.xlu0 %3240
      %3242 = vrot.lane.b32.xlu0 %v3232, 119
      %v3243 = vpop.permute.xlu0 %3242
      %3244 = vrot.lane.b32.xlu0 %v3233, 119
      %v3245 = vpop.permute.xlu0 %3244
      %v3246 = vsel %vm1328, %v3235, %v3237
      %v3247 = vsel %vm1328, %v3237, %v3239
      %v3248 = vsel %vm1328, %v3239, %v3241
      %v3249 = vsel %vm1328, %v3241, %v3243
      %v3250 = vsel %vm1328, %v3243, %v3245
      %v3252 = vsel %vm207, %v3206, 0
      %v3255 = vsel %vm211, %v3246, 0
      %v3258 = vsel %vm211, %v3247, 0
      %v3261 = vsel %vm211, %v3248, 0
      %v3264 = vsel %vm211, %v3249, 0
      %v3267 = vsel %vm211, %v3250, 0
      %v3270 = vsel %vm211, %v3245, 0
      %3272 = vmatprep.subr.bf16.mxu0 %v3258
      %3273 = vmatpush1.bf16.msra.mxu0 %v3255
      %3274 = vmatprep.subr.bf16.mxu0 0
      %3275 = vmatpush1.bf16.msra.mxu0 0
      %3276 = vmatprep.subr.bf16.mxu0 0
      %3277 = vmatpush1.bf16.msra.mxu0 0
      %3278 = vmatprep.subr.bf16.mxu0 0
      %3279 = vmatpush1.bf16.msra.mxu0 0
      %3280 = vmatprep.subr.bf16.mxu0 0
      %3281 = vmatpush1.bf16.msra.mxu0 0
      %3282 = vmatprep.subr.bf16.mxu0 0
      %3283 = vmatpush1.bf16.msra.mxu0 0
      %3284 = vmatprep.subr.bf16.mxu0 0
      %3285 = vmatpush1.bf16.msra.mxu0 0
      %3286 = vmatprep.subr.bf16.mxu0 0
      %3287 = vmatpush1.bf16.msra.mxu0 0
      %3288 = vmatprep.subr.bf16.mxu0 0
      %3289 = vmatpush1.bf16.msra.mxu0 0
      %3290 = vmatprep.subr.bf16.mxu0 0
      %3291 = vmatpush1.bf16.msra.mxu0 0
      %3292 = vmatprep.subr.bf16.mxu0 0
      %3293 = vmatpush1.bf16.msra.mxu0 0
      %3294 = vmatprep.subr.bf16.mxu0 0
      %3295 = vmatpush1.bf16.msra.mxu0 0
      %3296 = vmatprep.subr.bf16.mxu0 0
      %3297 = vmatpush1.bf16.msra.mxu0 0
      %3298 = vmatprep.subr.bf16.mxu0 0
      %3299 = vmatpush1.bf16.msra.mxu0 0
      %3300 = vmatprep.subr.bf16.mxu0 0
      %3301 = vmatpush1.bf16.msra.mxu0 0
      %3302 = vmatprep.subr.bf16.mxu0 0
      %3303 = vmatpush1.bf16.msra.mxu0 0
      %3304 = vmatprep.mubr.bf16.mxu0 0
      %3305 = vmatmul.mubr.bf16.gmra.mrb[0].mxu0 %v3252
      %v3306 = vpop.f32.mrb[0].mxu0
      %v3307 = vadd.f32 0.0, %v3306
      %v3308 = vpop.f32.mrb[0].mxu0
      %v3309 = vadd.f32 0.0, %v3308
      %v3310 = vpop.f32.mrb[0].mxu0
      %v3311 = vpop.f32.mrb[0].mxu0
      %3312 = vdwg.mxu0
      %3313 = vmatprep.subr.bf16.mxu0 %v3264
      %3314 = vmatpush1.bf16.msra.mxu0 %v3261
      %3315 = vmatprep.subr.bf16.mxu0 0
      %3316 = vmatpush1.bf16.msra.mxu0 0
      %3317 = vmatprep.subr.bf16.mxu0 0
      %3318 = vmatpush1.bf16.msra.mxu0 0
      %3319 = vmatprep.subr.bf16.mxu0 0
      %3320 = vmatpush1.bf16.msra.mxu0 0
      %3321 = vmatprep.subr.bf16.mxu0 0
      %3322 = vmatpush1.bf16.msra.mxu0 0
      %3323 = vmatprep.subr.bf16.mxu0 0
      %3324 = vmatpush1.bf16.msra.mxu0 0
      %3325 = vmatprep.subr.bf16.mxu0 0
      %3326 = vmatpush1.bf16.msra.mxu0 0
      %3327 = vmatprep.subr.bf16.mxu0 0
      %3328 = vmatpush1.bf16.msra.mxu0 0
      %3329 = vmatprep.subr.bf16.mxu0 0
      %3330 = vmatpush1.bf16.msra.mxu0 0
      %3331 = vmatprep.subr.bf16.mxu0 0
      %3332 = vmatpush1.bf16.msra.mxu0 0
      %3333 = vmatprep.subr.bf16.mxu0 0
      %3334 = vmatpush1.bf16.msra.mxu0 0
      %3335 = vmatprep.subr.bf16.mxu0 0
      %3336 = vmatpush1.bf16.msra.mxu0 0
      %3337 = vmatprep.subr.bf16.mxu0 0
      %3338 = vmatpush1.bf16.msra.mxu0 0
      %3339 = vmatprep.subr.bf16.mxu0 0
      %3340 = vmatpush1.bf16.msra.mxu0 0
      %3341 = vmatprep.subr.bf16.mxu0 0
      %3342 = vmatpush1.bf16.msra.mxu0 0
      %3343 = vmatprep.subr.bf16.mxu0 0
      %3344 = vmatpush1.bf16.msra.mxu0 0
      %3345 = vmatprep.mubr.bf16.mxu0 0
      %3346 = vmatmul.mubr.bf16.gmra.mrb[0].mxu0 %v3252
      %v3347 = vpop.f32.mrb[0].mxu0
      %v3348 = vadd.f32 0.0, %v3347
      %v3349 = vpop.f32.mrb[0].mxu0
      %v3350 = vadd.f32 0.0, %v3349
      %v3351 = vpop.f32.mrb[0].mxu0
      %v3352 = vpop.f32.mrb[0].mxu0
      %3353 = vdwg.mxu0
      %3354 = vmatprep.subr.bf16.mxu0 %v3270
      %3355 = vmatpush1.bf16.msra.mxu0 %v3267
      %3356 = vmatprep.subr.bf16.mxu0 0
      %3357 = vmatpush1.bf16.msra.mxu0 0
      %3358 = vmatprep.subr.bf16.mxu0 0
      %3359 = vmatpush1.bf16.msra.mxu0 0
      %3360 = vmatprep.subr.bf16.mxu0 0
      %3361 = vmatpush1.bf16.msra.mxu0 0
      %3362 = vmatprep.subr.bf16.mxu0 0
      %3363 = vmatpush1.bf16.msra.mxu0 0
      %3364 = vmatprep.subr.bf16.mxu0 0
      %3365 = vmatpush1.bf16.msra.mxu0 0
      %3366 = vmatprep.subr.bf16.mxu0 0
      %3367 = vmatpush1.bf16.msra.mxu0 0
      %3368 = vmatprep.subr.bf16.mxu0 0
      %3369 = vmatpush1.bf16.msra.mxu0 0
      %3370 = vmatprep.subr.bf16.mxu0 0
      %3371 = vmatpush1.bf16.msra.mxu0 0
      %3372 = vmatprep.subr.bf16.mxu0 0
      %3373 = vmatpush1.bf16.msra.mxu0 0
      %3374 = vmatprep.subr.bf16.mxu0 0
      %3375 = vmatpush1.bf16.msra.mxu0 0
      %3376 = vmatprep.subr.bf16.mxu0 0
      %3377 = vmatpush1.bf16.msra.mxu0 0
      %3378 = vmatprep.subr.bf16.mxu0 0
      %3379 = vmatpush1.bf16.msra.mxu0 0
      %3380 = vmatprep.subr.bf16.mxu0 0
      %3381 = vmatpush1.bf16.msra.mxu0 0
      %3382 = vmatprep.subr.bf16.mxu0 0
      %3383 = vmatpush1.bf16.msra.mxu0 0
      %3384 = vmatprep.subr.bf16.mxu0 0
      %3385 = vmatpush1.bf16.msra.mxu0 0
      %3386 = vmatprep.mubr.bf16.mxu0 0
      %3387 = vmatmul.mubr.bf16.gmra.mrb[0].mxu0 %v3252
      %v3388 = vpop.f32.mrb[0].mxu0
      %v3389 = vadd.f32 0.0, %v3388
      %v3390 = vpop.f32.mrb[0].mxu0
      %v3391 = vadd.f32 0.0, %v3390
      %v3392 = vpop.f32.mrb[0].mxu0
      %v3393 = vpop.f32.mrb[0].mxu0
      %3394 = vdwg.mxu0
      %v3395 = vadd.f32 %v3197, %v3307
      %v3396 = vadd.f32 %v3198, %v3309
      %v3397 = vadd.f32 %v3199, %v3348
      %v3398 = vadd.f32 %v3200, %v3350
      %v3399 = vadd.f32 %v3201, %v3389
      %v3400 = vadd.f32 %v3202, %v3391
      %v3401 = vld [vmem:[%s1881] sm:$0xff]
      %v3402 = vld [vmem:[%s1881 + $0x8] sm:$0xf]
      %s3403 = scalar_lea.vmem %s0, 68
      %v3404 = vld [vmem:[%s3403] sm:$0xf]
      %v3407 = vcombine.high %v3401, %v3401
      %v3409 = vunpack.c.l.s4 1983009808
      %v3410 = vunpack.c.0.s8 %v3409
      %v3411 = vlaneseq
      %v3412 = vshrl.u32 %v3411, 7
      %v3413 = vsub.s32 %v3410, %v3412
      %v3414 = vrot.slane %v3401, %v3413
      %v3416 = vunpack.c.l.s4 1983009808
      %v3417 = vunpack.c.0.s8 %v3416
      %v3418 = vlaneseq
      %v3419 = vshrl.u32 %v3418, 7
      %v3420 = vsub.s32 %v3417, %v3419
      %v3421 = vrot.slane %v3407, %v3420
      %v3422 = vcombine.high %v3414, %v3414
      %v3423 = vcombine.high %v3421, %v3421
      %v3425 = vunpack.c.l.s4 1983009808
      %v3426 = vunpack.c.0.s8 %v3425
      %v3427 = vlaneseq
      %v3428 = vshrl.u32 %v3427, 7
      %v3429 = vsub.s32 %v3426, %v3428
      %v3430 = vrot.slane %v3402, %v3429
      %v3431 = vcombine.high %v3430, %v3430
      %3432 = vrot.lane.b32.xlu0 %v3414, 118
      %v3433 = vpop.permute.xlu0 %3432
      %3434 = vrot.lane.b32.xlu0 %v3422, 118
      %v3435 = vpop.permute.xlu0 %3434
      %3436 = vrot.lane.b32.xlu0 %v3421, 118
      %v3437 = vpop.permute.xlu0 %3436
      %3438 = vrot.lane.b32.xlu0 %v3423, 118
      %v3439 = vpop.permute.xlu0 %3438
      %3440 = vrot.lane.b32.xlu0 %v3430, 118
      %v3441 = vpop.permute.xlu0 %3440
      %3442 = vrot.lane.b32.xlu0 %v3431, 118
      %v3443 = vpop.permute.xlu0 %3442
      %v3444 = vsel %vm1725, %v3433, %v3435
      %v3445 = vsel %vm1725, %v3435, %v3437
      %v3446 = vsel %vm1725, %v3437, %v3439
      %v3447 = vsel %vm1725, %v3439, %v3441
      %v3448 = vsel %vm1725, %v3441, %v3443
      %v3450 = vsel %vm207, %v3404, 0
      %v3453 = vsel %vm211, %v3444, 0
      %v3456 = vsel %vm211, %v3445, 0
      %v3459 = vsel %vm211, %v3446, 0
      %v3462 = vsel %vm211, %v3447, 0
      %v3465 = vsel %vm211, %v3448, 0
      %v3468 = vsel %vm211, %v3443, 0
      %3470 = vmatprep.subr.bf16.mxu0 %v3456
      %3471 = vmatpush1.bf16.msra.mxu0 %v3453
      %3472 = vmatprep.subr.bf16.mxu0 0
      %3473 = vmatpush1.bf16.msra.mxu0 0
      %3474 = vmatprep.subr.bf16.mxu0 0
      %3475 = vmatpush1.bf16.msra.mxu0 0
      %3476 = vmatprep.subr.bf16.mxu0 0
      %3477 = vmatpush1.bf16.msra.mxu0 0
      %3478 = vmatprep.subr.bf16.mxu0 0
      %3479 = vmatpush1.bf16.msra.mxu0 0
      %3480 = vmatprep.subr.bf16.mxu0 0
      %3481 = vmatpush1.bf16.msra.mxu0 0
      %3482 = vmatprep.subr.bf16.mxu0 0
      %3483 = vmatpush1.bf16.msra.mxu0 0
      %3484 = vmatprep.subr.bf16.mxu0 0
      %3485 = vmatpush1.bf16.msra.mxu0 0
      %3486 = vmatprep.subr.bf16.mxu0 0
      %3487 = vmatpush1.bf16.msra.mxu0 0
      %3488 = vmatprep.subr.bf16.mxu0 0
      %3489 = vmatpush1.bf16.msra.mxu0 0
      %3490 = vmatprep.subr.bf16.mxu0 0
      %3491 = vmatpush1.bf16.msra.mxu0 0
      %3492 = vmatprep.subr.bf16.mxu0 0
      %3493 = vmatpush1.bf16.msra.mxu0 0
      %3494 = vmatprep.subr.bf16.mxu0 0
      %3495 = vmatpush1.bf16.msra.mxu0 0
      %3496 = vmatprep.subr.bf16.mxu0 0
      %3497 = vmatpush1.bf16.msra.mxu0 0
      %3498 = vmatprep.subr.bf16.mxu0 0
      %3499 = vmatpush1.bf16.msra.mxu0 0
      %3500 = vmatprep.subr.bf16.mxu0 0
      %3501 = vmatpush1.bf16.msra.mxu0 0
      %3502 = vmatprep.mubr.bf16.mxu0 0
      %3503 = vmatmul.mubr.bf16.gmra.mrb[0].mxu0 %v3450
      %v3504 = vpop.f32.mrb[0].mxu0
      %v3505 = vadd.f32 0.0, %v3504
      %v3506 = vpop.f32.mrb[0].mxu0
      %v3507 = vadd.f32 0.0, %v3506
      %v3508 = vpop.f32.mrb[0].mxu0
      %v3509 = vpop.f32.mrb[0].mxu0
      %3510 = vdwg.mxu0
      %3511 = vmatprep.subr.bf16.mxu0 %v3462
      %3512 = vmatpush1.bf16.msra.mxu0 %v3459
      %3513 = vmatprep.subr.bf16.mxu0 0
      %3514 = vmatpush1.bf16.msra.mxu0 0
      %3515 = vmatprep.subr.bf16.mxu0 0
      %3516 = vmatpush1.bf16.msra.mxu0 0
      %3517 = vmatprep.subr.bf16.mxu0 0
      %3518 = vmatpush1.bf16.msra.mxu0 0
      %3519 = vmatprep.subr.bf16.mxu0 0
      %3520 = vmatpush1.bf16.msra.mxu0 0
      %3521 = vmatprep.subr.bf16.mxu0 0
      %3522 = vmatpush1.bf16.msra.mxu0 0
      %3523 = vmatprep.subr.bf16.mxu0 0
      %3524 = vmatpush1.bf16.msra.mxu0 0
      %3525 = vmatprep.subr.bf16.mxu0 0
      %3526 = vmatpush1.bf16.msra.mxu0 0
      %3527 = vmatprep.subr.bf16.mxu0 0
      %3528 = vmatpush1.bf16.msra.mxu0 0
      %3529 = vmatprep.subr.bf16.mxu0 0
      %3530 = vmatpush1.bf16.msra.mxu0 0
      %3531 = vmatprep.subr.bf16.mxu0 0
      %3532 = vmatpush1.bf16.msra.mxu0 0
      %3533 = vmatprep.subr.bf16.mxu0 0
      %3534 = vmatpush1.bf16.msra.mxu0 0
      %3535 = vmatprep.subr.bf16.mxu0 0
      %3536 = vmatpush1.bf16.msra.mxu0 0
      %3537 = vmatprep.subr.bf16.mxu0 0
      %3538 = vmatpush1.bf16.msra.mxu0 0
      %3539 = vmatprep.subr.bf16.mxu0 0
      %3540 = vmatpush1.bf16.msra.mxu0 0
      %3541 = vmatprep.subr.bf16.mxu0 0
      %3542 = vmatpush1.bf16.msra.mxu0 0
      %3543 = vmatprep.mubr.bf16.mxu0 0
      %3544 = vmatmul.mubr.bf16.gmra.mrb[0].mxu0 %v3450
      %v3545 = vpop.f32.mrb[0].mxu0
      %v3546 = vadd.f32 0.0, %v3545
      %v3547 = vpop.f32.mrb[0].mxu0
      %v3548 = vadd.f32 0.0, %v3547
      %v3549 = vpop.f32.mrb[0].mxu0
      %v3550 = vpop.f32.mrb[0].mxu0
      %3551 = vdwg.mxu0
      %3552 = vmatprep.subr.bf16.mxu0 %v3468
      %3553 = vmatpush1.bf16.msra.mxu0 %v3465
      %3554 = vmatprep.subr.bf16.mxu0 0
      %3555 = vmatpush1.bf16.msra.mxu0 0
      %3556 = vmatprep.subr.bf16.mxu0 0
      %3557 = vmatpush1.bf16.msra.mxu0 0
      %3558 = vmatprep.subr.bf16.mxu0 0
      %3559 = vmatpush1.bf16.msra.mxu0 0
      %3560 = vmatprep.subr.bf16.mxu0 0
      %3561 = vmatpush1.bf16.msra.mxu0 0
      %3562 = vmatprep.subr.bf16.mxu0 0
      %3563 = vmatpush1.bf16.msra.mxu0 0
      %3564 = vmatprep.subr.bf16.mxu0 0
      %3565 = vmatpush1.bf16.msra.mxu0 0
      %3566 = vmatprep.subr.bf16.mxu0 0
      %3567 = vmatpush1.bf16.msra.mxu0 0
      %3568 = vmatprep.subr.bf16.mxu0 0
      %3569 = vmatpush1.bf16.msra.mxu0 0
      %3570 = vmatprep.subr.bf16.mxu0 0
      %3571 = vmatpush1.bf16.msra.mxu0 0
      %3572 = vmatprep.subr.bf16.mxu0 0
      %3573 = vmatpush1.bf16.msra.mxu0 0
      %3574 = vmatprep.subr.bf16.mxu0 0
      %3575 = vmatpush1.bf16.msra.mxu0 0
      %3576 = vmatprep.subr.bf16.mxu0 0
      %3577 = vmatpush1.bf16.msra.mxu0 0
      %3578 = vmatprep.subr.bf16.mxu0 0
      %3579 = vmatpush1.bf16.msra.mxu0 0
      %3580 = vmatprep.subr.bf16.mxu0 0
      %3581 = vmatpush1.bf16.msra.mxu0 0
      %3582 = vmatprep.subr.bf16.mxu0 0
      %3583 = vmatpush1.bf16.msra.mxu0 0
      %3584 = vmatprep.mubr.bf16.mxu0 0
      %3585 = vmatmul.mubr.bf16.gmra.mrb[0].mxu0 %v3450
      %v3586 = vpop.f32.mrb[0].mxu0
      %v3587 = vadd.f32 0.0, %v3586
      %v3588 = vpop.f32.mrb[0].mxu0
      %v3589 = vadd.f32 0.0, %v3588
      %v3590 = vpop.f32.mrb[0].mxu0
      %v3591 = vpop.f32.mrb[0].mxu0
      %3592 = vdwg.mxu0
      %v3593 = vadd.f32 %v3395, %v3505
      %v3594 = vadd.f32 %v3396, %v3507
      %v3595 = vadd.f32 %v3397, %v3546
      %v3596 = vadd.f32 %v3398, %v3548
      %v3597 = vadd.f32 %v3399, %v3587
      %v3598 = vadd.f32 %v3400, %v3589
      %v3599 = vld [vmem:[%s165] sm:$0xff]
      %v3600 = vld [vmem:[%s165 + $0x8] sm:$0xf]
      %s3601 = scalar_lea.vmem %s0, 72
      %v3602 = vld [vmem:[%s3601] sm:$0xf]
      %v3605 = vcombine.high %v3599, %v3599
      %v3607 = vunpack.c.l.s4 1983009808
      %v3608 = vunpack.c.0.s8 %v3607
      %v3609 = vlaneseq
      %v3610 = vshrl.u32 %v3609, 7
      %v3611 = vsub.s32 %v3608, %v3610
      %v3612 = vrot.slane %v3599, %v3611
      %v3614 = vunpack.c.l.s4 1983009808
      %v3615 = vunpack.c.0.s8 %v3614
      %v3616 = vlaneseq
      %v3617 = vshrl.u32 %v3616, 7
      %v3618 = vsub.s32 %v3615, %v3617
      %v3619 = vrot.slane %v3605, %v3618
      %v3620 = vcombine.high %v3612, %v3612
      %v3621 = vcombine.high %v3619, %v3619
      %v3623 = vunpack.c.l.s4 1983009808
      %v3624 = vunpack.c.0.s8 %v3623
      %v3625 = vlaneseq
      %v3626 = vshrl.u32 %v3625, 7
      %v3627 = vsub.s32 %v3624, %v3626
      %v3628 = vrot.slane %v3600, %v3627
      %v3629 = vcombine.high %v3628, %v3628
      %3630 = vrot.lane.b32.xlu0 %v3612, 47
      %v3631 = vpop.permute.xlu0 %3630
      %3632 = vrot.lane.b32.xlu0 %v3620, 47
      %v3633 = vpop.permute.xlu0 %3632
      %3634 = vrot.lane.b32.xlu0 %v3619, 47
      %v3635 = vpop.permute.xlu0 %3634
      %3636 = vrot.lane.b32.xlu0 %v3621, 47
      %v3637 = vpop.permute.xlu0 %3636
      %3638 = vrot.lane.b32.xlu0 %v3628, 47
      %v3639 = vpop.permute.xlu0 %3638
      %3640 = vrot.lane.b32.xlu0 %v3629, 47
      %v3641 = vpop.permute.xlu0 %3640
      %vm3642 = vcmask 384000
      %v3643 = vsel %vm3642, %v3631, %v3633
      %v3644 = vsel %vm3642, %v3633, %v3635
      %v3645 = vsel %vm3642, %v3635, %v3637
      %v3646 = vsel %vm3642, %v3637, %v3639
      %v3647 = vsel %vm3642, %v3639, %v3641
      %v3649 = vsel %vm207, %v3602, 0
      %v3652 = vsel %vm211, %v3643, 0
      %v3655 = vsel %vm211, %v3644, 0
      %v3658 = vsel %vm211, %v3645, 0
      %v3661 = vsel %vm211, %v3646, 0
      %v3664 = vsel %vm211, %v3647, 0
      %v3667 = vsel %vm211, %v3641, 0
      %3669 = vmatprep.subr.bf16.mxu0 %v3655
      %3670 = vmatpush1.bf16.msra.mxu0 %v3652
      %3671 = vmatprep.subr.bf16.mxu0 0
      %3672 = vmatpush1.bf16.msra.mxu0 0
      %3673 = vmatprep.subr.bf16.mxu0 0
      %3674 = vmatpush1.bf16.msra.mxu0 0
      %3675 = vmatprep.subr.bf16.mxu0 0
      %3676 = vmatpush1.bf16.msra.mxu0 0
      %3677 = vmatprep.subr.bf16.mxu0 0
      %3678 = vmatpush1.bf16.msra.mxu0 0
      %3679 = vmatprep.subr.bf16.mxu0 0
      %3680 = vmatpush1.bf16.msra.mxu0 0
      %3681 = vmatprep.subr.bf16.mxu0 0
      %3682 = vmatpush1.bf16.msra.mxu0 0
      %3683 = vmatprep.subr.bf16.mxu0 0
      %3684 = vmatpush1.bf16.msra.mxu0 0
      %3685 = vmatprep.subr.bf16.mxu0 0
      %3686 = vmatpush1.bf16.msra.mxu0 0
      %3687 = vmatprep.subr.bf16.mxu0 0
      %3688 = vmatpush1.bf16.msra.mxu0 0
      %3689 = vmatprep.subr.bf16.mxu0 0
      %3690 = vmatpush1.bf16.msra.mxu0 0
      %3691 = vmatprep.subr.bf16.mxu0 0
      %3692 = vmatpush1.bf16.msra.mxu0 0
      %3693 = vmatprep.subr.bf16.mxu0 0
      %3694 = vmatpush1.bf16.msra.mxu0 0
      %3695 = vmatprep.subr.bf16.mxu0 0
      %3696 = vmatpush1.bf16.msra.mxu0 0
      %3697 = vmatprep.subr.bf16.mxu0 0
      %3698 = vmatpush1.bf16.msra.mxu0 0
      %3699 = vmatprep.subr.bf16.mxu0 0
      %3700 = vmatpush1.bf16.msra.mxu0 0
      %3701 = vmatprep.mubr.bf16.mxu0 0
      %3702 = vmatmul.mubr.bf16.gmra.mrb[0].mxu0 %v3649
      %v3703 = vpop.f32.mrb[0].mxu0
      %v3704 = vadd.f32 0.0, %v3703
      %v3705 = vpop.f32.mrb[0].mxu0
      %v3706 = vadd.f32 0.0, %v3705
      %v3707 = vpop.f32.mrb[0].mxu0
      %v3708 = vpop.f32.mrb[0].mxu0
      %3709 = vdwg.mxu0
      %3710 = vmatprep.subr.bf16.mxu0 %v3661
      %3711 = vmatpush1.bf16.msra.mxu0 %v3658
      %3712 = vmatprep.subr.bf16.mxu0 0
      %3713 = vmatpush1.bf16.msra.mxu0 0
      %3714 = vmatprep.subr.bf16.mxu0 0
      %3715 = vmatpush1.bf16.msra.mxu0 0
      %3716 = vmatprep.subr.bf16.mxu0 0
      %3717 = vmatpush1.bf16.msra.mxu0 0
      %3718 = vmatprep.subr.bf16.mxu0 0
      %3719 = vmatpush1.bf16.msra.mxu0 0
      %3720 = vmatprep.subr.bf16.mxu0 0
      %3721 = vmatpush1.bf16.msra.mxu0 0
      %3722 = vmatprep.subr.bf16.mxu0 0
      %3723 = vmatpush1.bf16.msra.mxu0 0
      %3724 = vmatprep.subr.bf16.mxu0 0
      %3725 = vmatpush1.bf16.msra.mxu0 0
      %3726 = vmatprep.subr.bf16.mxu0 0
      %3727 = vmatpush1.bf16.msra.mxu0 0
      %3728 = vmatprep.subr.bf16.mxu0 0
      %3729 = vmatpush1.bf16.msra.mxu0 0
      %3730 = vmatprep.subr.bf16.mxu0 0
      %3731 = vmatpush1.bf16.msra.mxu0 0
      %3732 = vmatprep.subr.bf16.mxu0 0
      %3733 = vmatpush1.bf16.msra.mxu0 0
      %3734 = vmatprep.subr.bf16.mxu0 0
      %3735 = vmatpush1.bf16.msra.mxu0 0
      %3736 = vmatprep.subr.bf16.mxu0 0
      %3737 = vmatpush1.bf16.msra.mxu0 0
      %3738 = vmatprep.subr.bf16.mxu0 0
      %3739 = vmatpush1.bf16.msra.mxu0 0
      %3740 = vmatprep.subr.bf16.mxu0 0
      %3741 = vmatpush1.bf16.msra.mxu0 0
      %3742 = vmatprep.mubr.bf16.mxu0 0
      %3743 = vmatmul.mubr.bf16.gmra.mrb[0].mxu0 %v3649
      %v3744 = vpop.f32.mrb[0].mxu0
      %v3745 = vadd.f32 0.0, %v3744
      %v3746 = vpop.f32.mrb[0].mxu0
      %v3747 = vadd.f32 0.0, %v3746
      %v3748 = vpop.f32.mrb[0].mxu0
      %v3749 = vpop.f32.mrb[0].mxu0
      %3750 = vdwg.mxu0
      %3751 = vmatprep.subr.bf16.mxu0 %v3667
      %3752 = vmatpush1.bf16.msra.mxu0 %v3664
      %3753 = vmatprep.subr.bf16.mxu0 0
      %3754 = vmatpush1.bf16.msra.mxu0 0
      %3755 = vmatprep.subr.bf16.mxu0 0
      %3756 = vmatpush1.bf16.msra.mxu0 0
      %3757 = vmatprep.subr.bf16.mxu0 0
      %3758 = vmatpush1.bf16.msra.mxu0 0
      %3759 = vmatprep.subr.bf16.mxu0 0
      %3760 = vmatpush1.bf16.msra.mxu0 0
      %3761 = vmatprep.subr.bf16.mxu0 0
      %3762 = vmatpush1.bf16.msra.mxu0 0
      %3763 = vmatprep.subr.bf16.mxu0 0
      %3764 = vmatpush1.bf16.msra.mxu0 0
      %3765 = vmatprep.subr.bf16.mxu0 0
      %3766 = vmatpush1.bf16.msra.mxu0 0
      %3767 = vmatprep.subr.bf16.mxu0 0
      %3768 = vmatpush1.bf16.msra.mxu0 0
      %3769 = vmatprep.subr.bf16.mxu0 0
      %3770 = vmatpush1.bf16.msra.mxu0 0
      %3771 = vmatprep.subr.bf16.mxu0 0
      %3772 = vmatpush1.bf16.msra.mxu0 0
      %3773 = vmatprep.subr.bf16.mxu0 0
      %3774 = vmatpush1.bf16.msra.mxu0 0
      %3775 = vmatprep.subr.bf16.mxu0 0
      %3776 = vmatpush1.bf16.msra.mxu0 0
      %3777 = vmatprep.subr.bf16.mxu0 0
      %3778 = vmatpush1.bf16.msra.mxu0 0
      %3779 = vmatprep.subr.bf16.mxu0 0
      %3780 = vmatpush1.bf16.msra.mxu0 0
      %3781 = vmatprep.subr.bf16.mxu0 0
      %3782 = vmatpush1.bf16.msra.mxu0 0
      %3783 = vmatprep.mubr.bf16.mxu0 0
      %3784 = vmatmul.mubr.bf16.gmra.mrb[0].mxu0 %v3649
      %v3785 = vpop.f32.mrb[0].mxu0
      %v3786 = vadd.f32 0.0, %v3785
      %v3787 = vpop.f32.mrb[0].mxu0
      %v3788 = vadd.f32 0.0, %v3787
      %v3789 = vpop.f32.mrb[0].mxu0
      %v3790 = vpop.f32.mrb[0].mxu0
      %3791 = vdwg.mxu0
      %v3792 = vadd.f32 %v3593, %v3704
      %v3793 = vadd.f32 %v3594, %v3706
      %v3794 = vadd.f32 %v3595, %v3745
      %v3795 = vadd.f32 %v3596, %v3747
      %v3796 = vadd.f32 %v3597, %v3786
      %v3797 = vadd.f32 %v3598, %v3788
      %v3798 = vld [vmem:[%s175] sm:$0xff]
      %v3799 = vld [vmem:[%s175 + $0x8] sm:$0xf]
      %s3800 = scalar_lea.vmem %s0, 76
      %v3801 = vld [vmem:[%s3800] sm:$0xf]
      %v3804 = vcombine.high %v3798, %v3798
      %v3806 = vunpack.c.l.s4 1983009808
      %v3807 = vunpack.c.0.s8 %v3806
      %v3808 = vlaneseq
      %v3809 = vshrl.u32 %v3808, 7
      %v3810 = vsub.s32 %v3807, %v3809
      %v3811 = vrot.slane %v3798, %v3810
      %v3813 = vunpack.c.l.s4 1983009808
      %v3814 = vunpack.c.0.s8 %v3813
      %v3815 = vlaneseq
      %v3816 = vshrl.u32 %v3815, 7
      %v3817 = vsub.s32 %v3814, %v3816
      %v3818 = vrot.slane %v3804, %v3817
      %v3819 = vcombine.high %v3811, %v3811
      %v3820 = vcombine.high %v3818, %v3818
      %v3822 = vunpack.c.l.s4 1983009808
      %v3823 = vunpack.c.0.s8 %v3822
      %v3824 = vlaneseq
      %v3825 = vshrl.u32 %v3824, 7
      %v3826 = vsub.s32 %v3823, %v3825
      %v3827 = vrot.slane %v3799, %v3826
      %v3828 = vcombine.high %v3827, %v3827
      %3829 = vrot.lane.b32.xlu0 %v3811, 47
      %v3830 = vpop.permute.xlu0 %3829
      %3831 = vrot.lane.b32.xlu0 %v3819, 47
      %v3832 = vpop.permute.xlu0 %3831
      %3833 = vrot.lane.b32.xlu0 %v3818, 47
      %v3834 = vpop.permute.xlu0 %3833
      %3835 = vrot.lane.b32.xlu0 %v3820, 47
      %v3836 = vpop.permute.xlu0 %3835
      %3837 = vrot.lane.b32.xlu0 %v3827, 47
      %v3838 = vpop.permute.xlu0 %3837
      %3839 = vrot.lane.b32.xlu0 %v3828, 47
      %v3840 = vpop.permute.xlu0 %3839
      %v3841 = vsel %vm3642, %v3830, %v3832
      %v3842 = vsel %vm3642, %v3832, %v3834
      %v3843 = vsel %vm3642, %v3834, %v3836
      %v3844 = vsel %vm3642, %v3836, %v3838
      %v3845 = vsel %vm3642, %v3838, %v3840
      %v3847 = vsel %vm207, %v3801, 0
      %v3850 = vsel %vm211, %v3841, 0
      %v3853 = vsel %vm211, %v3842, 0
      %v3856 = vsel %vm211, %v3843, 0
      %v3859 = vsel %vm211, %v3844, 0
      %v3862 = vsel %vm211, %v3845, 0
      %v3865 = vsel %vm211, %v3840, 0
      %3867 = vmatprep.subr.bf16.mxu0 %v3853
      %3868 = vmatpush1.bf16.msra.mxu0 %v3850
      %3869 = vmatprep.subr.bf16.mxu0 0
      %3870 = vmatpush1.bf16.msra.mxu0 0
      %3871 = vmatprep.subr.bf16.mxu0 0
      %3872 = vmatpush1.bf16.msra.mxu0 0
      %3873 = vmatprep.subr.bf16.mxu0 0
      %3874 = vmatpush1.bf16.msra.mxu0 0
      %3875 = vmatprep.subr.bf16.mxu0 0
      %3876 = vmatpush1.bf16.msra.mxu0 0
      %3877 = vmatprep.subr.bf16.mxu0 0
      %3878 = vmatpush1.bf16.msra.mxu0 0
      %3879 = vmatprep.subr.bf16.mxu0 0
      %3880 = vmatpush1.bf16.msra.mxu0 0
      %3881 = vmatprep.subr.bf16.mxu0 0
      %3882 = vmatpush1.bf16.msra.mxu0 0
      %3883 = vmatprep.subr.bf16.mxu0 0
      %3884 = vmatpush1.bf16.msra.mxu0 0
      %3885 = vmatprep.subr.bf16.mxu0 0
      %3886 = vmatpush1.bf16.msra.mxu0 0
      %3887 = vmatprep.subr.bf16.mxu0 0
      %3888 = vmatpush1.bf16.msra.mxu0 0
      %3889 = vmatprep.subr.bf16.mxu0 0
      %3890 = vmatpush1.bf16.msra.mxu0 0
      %3891 = vmatprep.subr.bf16.mxu0 0
      %3892 = vmatpush1.bf16.msra.mxu0 0
      %3893 = vmatprep.subr.bf16.mxu0 0
      %3894 = vmatpush1.bf16.msra.mxu0 0
      %3895 = vmatprep.subr.bf16.mxu0 0
      %3896 = vmatpush1.bf16.msra.mxu0 0
      %3897 = vmatprep.subr.bf16.mxu0 0
      %3898 = vmatpush1.bf16.msra.mxu0 0
      %3899 = vmatprep.mubr.bf16.mxu0 0
      %3900 = vmatmul.mubr.bf16.gmra.mrb[0].mxu0 %v3847
      %v3901 = vpop.f32.mrb[0].mxu0
      %v3902 = vadd.f32 0.0, %v3901
      %v3903 = vpop.f32.mrb[0].mxu0
      %v3904 = vadd.f32 0.0, %v3903
      %v3905 = vpop.f32.mrb[0].mxu0
      %v3906 = vpop.f32.mrb[0].mxu0
      %3907 = vdwg.mxu0
      %3908 = vmatprep.subr.bf16.mxu0 %v3859
      %3909 = vmatpush1.bf16.msra.mxu0 %v3856
      %3910 = vmatprep.subr.bf16.mxu0 0
      %3911 = vmatpush1.bf16.msra.mxu0 0
      %3912 = vmatprep.subr.bf16.mxu0 0
      %3913 = vmatpush1.bf16.msra.mxu0 0
      %3914 = vmatprep.subr.bf16.mxu0 0
      %3915 = vmatpush1.bf16.msra.mxu0 0
      %3916 = vmatprep.subr.bf16.mxu0 0
      %3917 = vmatpush1.bf16.msra.mxu0 0
      %3918 = vmatprep.subr.bf16.mxu0 0
      %3919 = vmatpush1.bf16.msra.mxu0 0
      %3920 = vmatprep.subr.bf16.mxu0 0
      %3921 = vmatpush1.bf16.msra.mxu0 0
      %3922 = vmatprep.subr.bf16.mxu0 0
      %3923 = vmatpush1.bf16.msra.mxu0 0
      %3924 = vmatprep.subr.bf16.mxu0 0
      %3925 = vmatpush1.bf16.msra.mxu0 0
      %3926 = vmatprep.subr.bf16.mxu0 0
      %3927 = vmatpush1.bf16.msra.mxu0 0
      %3928 = vmatprep.subr.bf16.mxu0 0
      %3929 = vmatpush1.bf16.msra.mxu0 0
      %3930 = vmatprep.subr.bf16.mxu0 0
      %3931 = vmatpush1.bf16.msra.mxu0 0
      %3932 = vmatprep.subr.bf16.mxu0 0
      %3933 = vmatpush1.bf16.msra.mxu0 0
      %3934 = vmatprep.subr.bf16.mxu0 0
      %3935 = vmatpush1.bf16.msra.mxu0 0
      %3936 = vmatprep.subr.bf16.mxu0 0
      %3937 = vmatpush1.bf16.msra.mxu0 0
      %3938 = vmatprep.subr.bf16.mxu0 0
      %3939 = vmatpush1.bf16.msra.mxu0 0
      %3940 = vmatprep.mubr.bf16.mxu0 0
      %3941 = vmatmul.mubr.bf16.gmra.mrb[0].mxu0 %v3847
      %v3942 = vpop.f32.mrb[0].mxu0
      %v3943 = vadd.f32 0.0, %v3942
      %v3944 = vpop.f32.mrb[0].mxu0
      %v3945 = vadd.f32 0.0, %v3944
      %v3946 = vpop.f32.mrb[0].mxu0
      %v3947 = vpop.f32.mrb[0].mxu0
      %3948 = vdwg.mxu0
      %3949 = vmatprep.subr.bf16.mxu0 %v3865
      %3950 = vmatpush1.bf16.msra.mxu0 %v3862
      %3951 = vmatprep.subr.bf16.mxu0 0
      %3952 = vmatpush1.bf16.msra.mxu0 0
      %3953 = vmatprep.subr.bf16.mxu0 0
      %3954 = vmatpush1.bf16.msra.mxu0 0
      %3955 = vmatprep.subr.bf16.mxu0 0
      %3956 = vmatpush1.bf16.msra.mxu0 0
      %3957 = vmatprep.subr.bf16.mxu0 0
      %3958 = vmatpush1.bf16.msra.mxu0 0
      %3959 = vmatprep.subr.bf16.mxu0 0
      %3960 = vmatpush1.bf16.msra.mxu0 0
      %3961 = vmatprep.subr.bf16.mxu0 0
      %3962 = vmatpush1.bf16.msra.mxu0 0
      %3963 = vmatprep.subr.bf16.mxu0 0
      %3964 = vmatpush1.bf16.msra.mxu0 0
      %3965 = vmatprep.subr.bf16.mxu0 0
      %3966 = vmatpush1.bf16.msra.mxu0 0
      %3967 = vmatprep.subr.bf16.mxu0 0
      %3968 = vmatpush1.bf16.msra.mxu0 0
      %3969 = vmatprep.subr.bf16.mxu0 0
      %3970 = vmatpush1.bf16.msra.mxu0 0
      %3971 = vmatprep.subr.bf16.mxu0 0
      %3972 = vmatpush1.bf16.msra.mxu0 0
      %3973 = vmatprep.subr.bf16.mxu0 0
      %3974 = vmatpush1.bf16.msra.mxu0 0
      %3975 = vmatprep.subr.bf16.mxu0 0
      %3976 = vmatpush1.bf16.msra.mxu0 0
      %3977 = vmatprep.subr.bf16.mxu0 0
      %3978 = vmatpush1.bf16.msra.mxu0 0
      %3979 = vmatprep.subr.bf16.mxu0 0
      %3980 = vmatpush1.bf16.msra.mxu0 0
      %3981 = vmatprep.mubr.bf16.mxu0 0
      %3982 = vmatmul.mubr.bf16.gmra.mrb[0].mxu0 %v3847
      %v3983 = vpop.f32.mrb[0].mxu0
      %v3984 = vadd.f32 0.0, %v3983
      %v3985 = vpop.f32.mrb[0].mxu0
      %v3986 = vadd.f32 0.0, %v3985
      %v3987 = vpop.f32.mrb[0].mxu0
      %v3988 = vpop.f32.mrb[0].mxu0
      %3989 = vdwg.mxu0
      %v3990 = vadd.f32 %v3792, %v3902
      %v3991 = vadd.f32 %v3793, %v3904
      %v3992 = vadd.f32 %v3794, %v3943
      %v3993 = vadd.f32 %v3795, %v3945
      %v3994 = vadd.f32 %v3796, %v3984
      %v3995 = vadd.f32 %v3797, %v3986
      %v3996 = vld [vmem:[%s165] sm:$0xff]
      %v3997 = vld [vmem:[%s165 + $0x8] sm:$0xf]
      %s3998 = scalar_lea.vmem %s0, 80
      %v3999 = vld [vmem:[%s3998] sm:$0xf]
      %v4002 = vcombine.high %v3996, %v3996
      %v4004 = vunpack.c.l.s4 1983009808
      %v4005 = vunpack.c.0.s8 %v4004
      %v4006 = vlaneseq
      %v4007 = vshrl.u32 %v4006, 7
      %v4008 = vsub.s32 %v4005, %v4007
      %v4009 = vrot.slane %v3996, %v4008
      %v4011 = vunpack.c.l.s4 1983009808
      %v4012 = vunpack.c.0.s8 %v4011
      %v4013 = vlaneseq
      %v4014 = vshrl.u32 %v4013, 7
      %v4015 = vsub.s32 %v4012, %v4014
      %v4016 = vrot.slane %v4002, %v4015
      %v4017 = vcombine.high %v4009, %v4009
      %v4018 = vcombine.high %v4016, %v4016
      %v4020 = vunpack.c.l.s4 1983009808
      %v4021 = vunpack.c.0.s8 %v4020
      %v4022 = vlaneseq
      %v4023 = vshrl.u32 %v4022, 7
      %v4024 = vsub.s32 %v4021, %v4023
      %v4025 = vrot.slane %v3997, %v4024
      %v4026 = vcombine.high %v4025, %v4025
      %4027 = vrot.lane.b32.xlu0 %v4009, 46
      %v4028 = vpop.permute.xlu0 %4027
      %4029 = vrot.lane.b32.xlu0 %v4017, 46
      %v4030 = vpop.permute.xlu0 %4029
      %4031 = vrot.lane.b32.xlu0 %v4016, 46
      %v4032 = vpop.permute.xlu0 %4031
      %4033 = vrot.lane.b32.xlu0 %v4018, 46
      %v4034 = vpop.permute.xlu0 %4033
      %4035 = vrot.lane.b32.xlu0 %v4025, 46
      %v4036 = vpop.permute.xlu0 %4035
      %4037 = vrot.lane.b32.xlu0 %v4026, 46
      %v4038 = vpop.permute.xlu0 %4037
      %vm4039 = vcmask 375808
      %v4040 = vsel %vm4039, %v4028, %v4030
      %v4041 = vsel %vm4039, %v4030, %v4032
      %v4042 = vsel %vm4039, %v4032, %v4034
      %v4043 = vsel %vm4039, %v4034, %v4036
      %v4044 = vsel %vm4039, %v4036, %v4038
      %v4046 = vsel %vm207, %v3999, 0
      %v4049 = vsel %vm211, %v4040, 0
      %v4052 = vsel %vm211, %v4041, 0
      %v4055 = vsel %vm211, %v4042, 0
      %v4058 = vsel %vm211, %v4043, 0
      %v4061 = vsel %vm211, %v4044, 0
      %v4064 = vsel %vm211, %v4038, 0
      %4066 = vmatprep.subr.bf16.mxu0 %v4052
      %4067 = vmatpush1.bf16.msra.mxu0 %v4049
      %4068 = vmatprep.subr.bf16.mxu0 0
      %4069 = vmatpush1.bf16.msra.mxu0 0
      %4070 = vmatprep.subr.bf16.mxu0 0
      %4071 = vmatpush1.bf16.msra.mxu0 0
      %4072 = vmatprep.subr.bf16.mxu0 0
      %4073 = vmatpush1.bf16.msra.mxu0 0
      %4074 = vmatprep.subr.bf16.mxu0 0
      %4075 = vmatpush1.bf16.msra.mxu0 0
      %4076 = vmatprep.subr.bf16.mxu0 0
      %4077 = vmatpush1.bf16.msra.mxu0 0
      %4078 = vmatprep.subr.bf16.mxu0 0
      %4079 = vmatpush1.bf16.msra.mxu0 0
      %4080 = vmatprep.subr.bf16.mxu0 0
      %4081 = vmatpush1.bf16.msra.mxu0 0
      %4082 = vmatprep.subr.bf16.mxu0 0
      %4083 = vmatpush1.bf16.msra.mxu0 0
      %4084 = vmatprep.subr.bf16.mxu0 0
      %4085 = vmatpush1.bf16.msra.mxu0 0
      %4086 = vmatprep.subr.bf16.mxu0 0
      %4087 = vmatpush1.bf16.msra.mxu0 0
      %4088 = vmatprep.subr.bf16.mxu0 0
      %4089 = vmatpush1.bf16.msra.mxu0 0
      %4090 = vmatprep.subr.bf16.mxu0 0
      %4091 = vmatpush1.bf16.msra.mxu0 0
      %4092 = vmatprep.subr.bf16.mxu0 0
      %4093 = vmatpush1.bf16.msra.mxu0 0
      %4094 = vmatprep.subr.bf16.mxu0 0
      %4095 = vmatpush1.bf16.msra.mxu0 0
      %4096 = vmatprep.subr.bf16.mxu0 0
      %4097 = vmatpush1.bf16.msra.mxu0 0
      %4098 = vmatprep.mubr.bf16.mxu0 0
      %4099 = vmatmul.mubr.bf16.gmra.mrb[0].mxu0 %v4046
      %v4100 = vpop.f32.mrb[0].mxu0
      %v4101 = vadd.f32 0.0, %v4100
      %v4102 = vpop.f32.mrb[0].mxu0
      %v4103 = vadd.f32 0.0, %v4102
      %v4104 = vpop.f32.mrb[0].mxu0
      %v4105 = vpop.f32.mrb[0].mxu0
      %4106 = vdwg.mxu0
      %4107 = vmatprep.subr.bf16.mxu0 %v4058
      %4108 = vmatpush1.bf16.msra.mxu0 %v4055
      %4109 = vmatprep.subr.bf16.mxu0 0
      %4110 = vmatpush1.bf16.msra.mxu0 0
      %4111 = vmatprep.subr.bf16.mxu0 0
      %4112 = vmatpush1.bf16.msra.mxu0 0
      %4113 = vmatprep.subr.bf16.mxu0 0
      %4114 = vmatpush1.bf16.msra.mxu0 0
      %4115 = vmatprep.subr.bf16.mxu0 0
      %4116 = vmatpush1.bf16.msra.mxu0 0
      %4117 = vmatprep.subr.bf16.mxu0 0
      %4118 = vmatpush1.bf16.msra.mxu0 0
      %4119 = vmatprep.subr.bf16.mxu0 0
      %4120 = vmatpush1.bf16.msra.mxu0 0
      %4121 = vmatprep.subr.bf16.mxu0 0
      %4122 = vmatpush1.bf16.msra.mxu0 0
      %4123 = vmatprep.subr.bf16.mxu0 0
      %4124 = vmatpush1.bf16.msra.mxu0 0
      %4125 = vmatprep.subr.bf16.mxu0 0
      %4126 = vmatpush1.bf16.msra.mxu0 0
      %4127 = vmatprep.subr.bf16.mxu0 0
      %4128 = vmatpush1.bf16.msra.mxu0 0
      %4129 = vmatprep.subr.bf16.mxu0 0
      %4130 = vmatpush1.bf16.msra.mxu0 0
      %4131 = vmatprep.subr.bf16.mxu0 0
      %4132 = vmatpush1.bf16.msra.mxu0 0
      %4133 = vmatprep.subr.bf16.mxu0 0
      %4134 = vmatpush1.bf16.msra.mxu0 0
      %4135 = vmatprep.subr.bf16.mxu0 0
      %4136 = vmatpush1.bf16.msra.mxu0 0
      %4137 = vmatprep.subr.bf16.mxu0 0
      %4138 = vmatpush1.bf16.msra.mxu0 0
      %4139 = vmatprep.mubr.bf16.mxu0 0
      %4140 = vmatmul.mubr.bf16.gmra.mrb[0].mxu0 %v4046
      %v4141 = vpop.f32.mrb[0].mxu0
      %v4142 = vadd.f32 0.0, %v4141
      %v4143 = vpop.f32.mrb[0].mxu0
      %v4144 = vadd.f32 0.0, %v4143
      %v4145 = vpop.f32.mrb[0].mxu0
      %v4146 = vpop.f32.mrb[0].mxu0
      %4147 = vdwg.mxu0
      %4148 = vmatprep.subr.bf16.mxu0 %v4064
      %4149 = vmatpush1.bf16.msra.mxu0 %v4061
      %4150 = vmatprep.subr.bf16.mxu0 0
      %4151 = vmatpush1.bf16.msra.mxu0 0
      %4152 = vmatprep.subr.bf16.mxu0 0
      %4153 = vmatpush1.bf16.msra.mxu0 0
      %4154 = vmatprep.subr.bf16.mxu0 0
      %4155 = vmatpush1.bf16.msra.mxu0 0
      %4156 = vmatprep.subr.bf16.mxu0 0
      %4157 = vmatpush1.bf16.msra.mxu0 0
      %4158 = vmatprep.subr.bf16.mxu0 0
      %4159 = vmatpush1.bf16.msra.mxu0 0
      %4160 = vmatprep.subr.bf16.mxu0 0
      %4161 = vmatpush1.bf16.msra.mxu0 0
      %4162 = vmatprep.subr.bf16.mxu0 0
      %4163 = vmatpush1.bf16.msra.mxu0 0
      %4164 = vmatprep.subr.bf16.mxu0 0
      %4165 = vmatpush1.bf16.msra.mxu0 0
      %4166 = vmatprep.subr.bf16.mxu0 0
      %4167 = vmatpush1.bf16.msra.mxu0 0
      %4168 = vmatprep.subr.bf16.mxu0 0
      %4169 = vmatpush1.bf16.msra.mxu0 0
      %4170 = vmatprep.subr.bf16.mxu0 0
      %4171 = vmatpush1.bf16.msra.mxu0 0
      %4172 = vmatprep.subr.bf16.mxu0 0
      %4173 = vmatpush1.bf16.msra.mxu0 0
      %4174 = vmatprep.subr.bf16.mxu0 0
      %4175 = vmatpush1.bf16.msra.mxu0 0
      %4176 = vmatprep.subr.bf16.mxu0 0
      %4177 = vmatpush1.bf16.msra.mxu0 0
      %4178 = vmatprep.subr.bf16.mxu0 0
      %4179 = vmatpush1.bf16.msra.mxu0 0
      %4180 = vmatprep.mubr.bf16.mxu0 0
      %4181 = vmatmul.mubr.bf16.gmra.mrb[0].mxu0 %v4046
      %v4182 = vpop.f32.mrb[0].mxu0
      %v4183 = vadd.f32 0.0, %v4182
      %v4184 = vpop.f32.mrb[0].mxu0
      %v4185 = vadd.f32 0.0, %v4184
      %v4186 = vpop.f32.mrb[0].mxu0
      %v4187 = vpop.f32.mrb[0].mxu0
      %4188 = vdwg.mxu0
      %v4189 = vadd.f32 %v3990, %v4101
      %v4190 = vadd.f32 %v3991, %v4103
      %v4191 = vadd.f32 %v3992, %v4142
      %v4192 = vadd.f32 %v3993, %v4144
      %v4193 = vadd.f32 %v3994, %v4183
      %v4194 = vadd.f32 %v3995, %v4185
      %v4195 = vld [vmem:[%s723] sm:$0xff]
      %v4196 = vld [vmem:[%s723 + $0x8] sm:$0xf]
      %s4197 = scalar_lea.vmem %s0, 84
      %v4198 = vld [vmem:[%s4197] sm:$0xf]
      %v4201 = vcombine.high %v4195, %v4195
      %v4203 = vunpack.c.l.s4 1983009808
      %v4204 = vunpack.c.0.s8 %v4203
      %v4205 = vlaneseq
      %v4206 = vshrl.u32 %v4205, 7
      %v4207 = vsub.s32 %v4204, %v4206
      %v4208 = vrot.slane %v4195, %v4207
      %v4210 = vunpack.c.l.s4 1983009808
      %v4211 = vunpack.c.0.s8 %v4210
      %v4212 = vlaneseq
      %v4213 = vshrl.u32 %v4212, 7
      %v4214 = vsub.s32 %v4211, %v4213
      %v4215 = vrot.slane %v4201, %v4214
      %v4216 = vcombine.high %v4208, %v4208
      %v4217 = vcombine.high %v4215, %v4215
      %v4219 = vunpack.c.l.s4 1983009808
      %v4220 = vunpack.c.0.s8 %v4219
      %v4221 = vlaneseq
      %v4222 = vshrl.u32 %v4221, 7
      %v4223 = vsub.s32 %v4220, %v4222
      %v4224 = vrot.slane %v4196, %v4223
      %v4225 = vcombine.high %v4224, %v4224
      %4226 = vrot.lane.b32.xlu0 %v4208, 47
      %v4227 = vpop.permute.xlu0 %4226
      %4228 = vrot.lane.b32.xlu0 %v4216, 47
      %v4229 = vpop.permute.xlu0 %4228
      %4230 = vrot.lane.b32.xlu0 %v4215, 47
      %v4231 = vpop.permute.xlu0 %4230
      %4232 = vrot.lane.b32.xlu0 %v4217, 47
      %v4233 = vpop.permute.xlu0 %4232
      %4234 = vrot.lane.b32.xlu0 %v4224, 47
      %v4235 = vpop.permute.xlu0 %4234
      %4236 = vrot.lane.b32.xlu0 %v4225, 47
      %v4237 = vpop.permute.xlu0 %4236
      %v4238 = vsel %vm3642, %v4227, %v4229
      %v4239 = vsel %vm3642, %v4229, %v4231
      %v4240 = vsel %vm3642, %v4231, %v4233
      %v4241 = vsel %vm3642, %v4233, %v4235
      %v4242 = vsel %vm3642, %v4235, %v4237
      %v4244 = vsel %vm207, %v4198, 0
      %v4247 = vsel %vm211, %v4238, 0
      %v4250 = vsel %vm211, %v4239, 0
      %v4253 = vsel %vm211, %v4240, 0
      %v4256 = vsel %vm211, %v4241, 0
      %v4259 = vsel %vm211, %v4242, 0
      %v4262 = vsel %vm211, %v4237, 0
      %4264 = vmatprep.subr.bf16.mxu0 %v4250
      %4265 = vmatpush1.bf16.msra.mxu0 %v4247
      %4266 = vmatprep.subr.bf16.mxu0 0
      %4267 = vmatpush1.bf16.msra.mxu0 0
      %4268 = vmatprep.subr.bf16.mxu0 0
      %4269 = vmatpush1.bf16.msra.mxu0 0
      %4270 = vmatprep.subr.bf16.mxu0 0
      %4271 = vmatpush1.bf16.msra.mxu0 0
      %4272 = vmatprep.subr.bf16.mxu0 0
      %4273 = vmatpush1.bf16.msra.mxu0 0
      %4274 = vmatprep.subr.bf16.mxu0 0
      %4275 = vmatpush1.bf16.msra.mxu0 0
      %4276 = vmatprep.subr.bf16.mxu0 0
      %4277 = vmatpush1.bf16.msra.mxu0 0
      %4278 = vmatprep.subr.bf16.mxu0 0
      %4279 = vmatpush1.bf16.msra.mxu0 0
      %4280 = vmatprep.subr.bf16.mxu0 0
      %4281 = vmatpush1.bf16.msra.mxu0 0
      %4282 = vmatprep.subr.bf16.mxu0 0
      %4283 = vmatpush1.bf16.msra.mxu0 0
      %4284 = vmatprep.subr.bf16.mxu0 0
      %4285 = vmatpush1.bf16.msra.mxu0 0
      %4286 = vmatprep.subr.bf16.mxu0 0
      %4287 = vmatpush1.bf16.msra.mxu0 0
      %4288 = vmatprep.subr.bf16.mxu0 0
      %4289 = vmatpush1.bf16.msra.mxu0 0
      %4290 = vmatprep.subr.bf16.mxu0 0
      %4291 = vmatpush1.bf16.msra.mxu0 0
      %4292 = vmatprep.subr.bf16.mxu0 0
      %4293 = vmatpush1.bf16.msra.mxu0 0
      %4294 = vmatprep.subr.bf16.mxu0 0
      %4295 = vmatpush1.bf16.msra.mxu0 0
      %4296 = vmatprep.mubr.bf16.mxu0 0
      %4297 = vmatmul.mubr.bf16.gmra.mrb[0].mxu0 %v4244
      %v4298 = vpop.f32.mrb[0].mxu0
      %v4299 = vadd.f32 0.0, %v4298
      %v4300 = vpop.f32.mrb[0].mxu0
      %v4301 = vadd.f32 0.0, %v4300
      %v4302 = vpop.f32.mrb[0].mxu0
      %v4303 = vpop.f32.mrb[0].mxu0
      %4304 = vdwg.mxu0
      %4305 = vmatprep.subr.bf16.mxu0 %v4256
      %4306 = vmatpush1.bf16.msra.mxu0 %v4253
      %4307 = vmatprep.subr.bf16.mxu0 0
      %4308 = vmatpush1.bf16.msra.mxu0 0
      %4309 = vmatprep.subr.bf16.mxu0 0
      %4310 = vmatpush1.bf16.msra.mxu0 0
      %4311 = vmatprep.subr.bf16.mxu0 0
      %4312 = vmatpush1.bf16.msra.mxu0 0
      %4313 = vmatprep.subr.bf16.mxu0 0
      %4314 = vmatpush1.bf16.msra.mxu0 0
      %4315 = vmatprep.subr.bf16.mxu0 0
      %4316 = vmatpush1.bf16.msra.mxu0 0
      %4317 = vmatprep.subr.bf16.mxu0 0
      %4318 = vmatpush1.bf16.msra.mxu0 0
      %4319 = vmatprep.subr.bf16.mxu0 0
      %4320 = vmatpush1.bf16.msra.mxu0 0
      %4321 = vmatprep.subr.bf16.mxu0 0
      %4322 = vmatpush1.bf16.msra.mxu0 0
      %4323 = vmatprep.subr.bf16.mxu0 0
      %4324 = vmatpush1.bf16.msra.mxu0 0
      %4325 = vmatprep.subr.bf16.mxu0 0
      %4326 = vmatpush1.bf16.msra.mxu0 0
      %4327 = vmatprep.subr.bf16.mxu0 0
      %4328 = vmatpush1.bf16.msra.mxu0 0
      %4329 = vmatprep.subr.bf16.mxu0 0
      %4330 = vmatpush1.bf16.msra.mxu0 0
      %4331 = vmatprep.subr.bf16.mxu0 0
      %4332 = vmatpush1.bf16.msra.mxu0 0
      %4333 = vmatprep.subr.bf16.mxu0 0
      %4334 = vmatpush1.bf16.msra.mxu0 0
      %4335 = vmatprep.subr.bf16.mxu0 0
      %4336 = vmatpush1.bf16.msra.mxu0 0
      %4337 = vmatprep.mubr.bf16.mxu0 0
      %4338 = vmatmul.mubr.bf16.gmra.mrb[0].mxu0 %v4244
      %v4339 = vpop.f32.mrb[0].mxu0
      %v4340 = vadd.f32 0.0, %v4339
      %v4341 = vpop.f32.mrb[0].mxu0
      %v4342 = vadd.f32 0.0, %v4341
      %v4343 = vpop.f32.mrb[0].mxu0
      %v4344 = vpop.f32.mrb[0].mxu0
      %4345 = vdwg.mxu0
      %4346 = vmatprep.subr.bf16.mxu0 %v4262
      %4347 = vmatpush1.bf16.msra.mxu0 %v4259
      %4348 = vmatprep.subr.bf16.mxu0 0
      %4349 = vmatpush1.bf16.msra.mxu0 0
      %4350 = vmatprep.subr.bf16.mxu0 0
      %4351 = vmatpush1.bf16.msra.mxu0 0
      %4352 = vmatprep.subr.bf16.mxu0 0
      %4353 = vmatpush1.bf16.msra.mxu0 0
      %4354 = vmatprep.subr.bf16.mxu0 0
      %4355 = vmatpush1.bf16.msra.mxu0 0
      %4356 = vmatprep.subr.bf16.mxu0 0
      %4357 = vmatpush1.bf16.msra.mxu0 0
      %4358 = vmatprep.subr.bf16.mxu0 0
      %4359 = vmatpush1.bf16.msra.mxu0 0
      %4360 = vmatprep.subr.bf16.mxu0 0
      %4361 = vmatpush1.bf16.msra.mxu0 0
      %4362 = vmatprep.subr.bf16.mxu0 0
      %4363 = vmatpush1.bf16.msra.mxu0 0
      %4364 = vmatprep.subr.bf16.mxu0 0
      %4365 = vmatpush1.bf16.msra.mxu0 0
      %4366 = vmatprep.subr.bf16.mxu0 0
      %4367 = vmatpush1.bf16.msra.mxu0 0
      %4368 = vmatprep.subr.bf16.mxu0 0
      %4369 = vmatpush1.bf16.msra.mxu0 0
      %4370 = vmatprep.subr.bf16.mxu0 0
      %4371 = vmatpush1.bf16.msra.mxu0 0
      %4372 = vmatprep.subr.bf16.mxu0 0
      %4373 = vmatpush1.bf16.msra.mxu0 0
      %4374 = vmatprep.subr.bf16.mxu0 0
      %4375 = vmatpush1.bf16.msra.mxu0 0
      %4376 = vmatprep.subr.bf16.mxu0 0
      %4377 = vmatpush1.bf16.msra.mxu0 0
      %4378 = vmatprep.mubr.bf16.mxu0 0
      %4379 = vmatmul.mubr.bf16.gmra.mrb[0].mxu0 %v4244
      %v4380 = vpop.f32.mrb[0].mxu0
      %v4381 = vadd.f32 0.0, %v4380
      %v4382 = vpop.f32.mrb[0].mxu0
      %v4383 = vadd.f32 0.0, %v4382
      %v4384 = vpop.f32.mrb[0].mxu0
      %v4385 = vpop.f32.mrb[0].mxu0
      %4386 = vdwg.mxu0
      %v4387 = vadd.f32 %v4189, %v4299
      %v4388 = vadd.f32 %v4190, %v4301
      %v4389 = vadd.f32 %v4191, %v4340
      %v4390 = vadd.f32 %v4192, %v4342
      %v4391 = vadd.f32 %v4193, %v4381
      %v4392 = vadd.f32 %v4194, %v4383
      %v4393 = vld [vmem:[%s905] sm:$0xff]
      %v4394 = vld [vmem:[%s905 + $0x8] sm:$0xf]
      %s4395 = scalar_lea.vmem %s0, 88
      %v4396 = vld [vmem:[%s4395] sm:$0xf]
      %v4399 = vcombine.high %v4393, %v4393
      %v4401 = vunpack.c.l.s4 1983009808
      %v4402 = vunpack.c.0.s8 %v4401
      %v4403 = vlaneseq
      %v4404 = vshrl.u32 %v4403, 7
      %v4405 = vsub.s32 %v4402, %v4404
      %v4406 = vrot.slane %v4393, %v4405
      %v4408 = vunpack.c.l.s4 1983009808
      %v4409 = vunpack.c.0.s8 %v4408
      %v4410 = vlaneseq
      %v4411 = vshrl.u32 %v4410, 7
      %v4412 = vsub.s32 %v4409, %v4411
      %v4413 = vrot.slane %v4399, %v4412
      %v4414 = vcombine.high %v4406, %v4406
      %v4415 = vcombine.high %v4413, %v4413
      %v4417 = vunpack.c.l.s4 1983009808
      %v4418 = vunpack.c.0.s8 %v4417
      %v4419 = vlaneseq
      %v4420 = vshrl.u32 %v4419, 7
      %v4421 = vsub.s32 %v4418, %v4420
      %v4422 = vrot.slane %v4394, %v4421
      %v4423 = vcombine.high %v4422, %v4422
      %4424 = vrot.lane.b32.xlu0 %v4406, 47
      %v4425 = vpop.permute.xlu0 %4424
      %4426 = vrot.lane.b32.xlu0 %v4414, 47
      %v4427 = vpop.permute.xlu0 %4426
      %4428 = vrot.lane.b32.xlu0 %v4413, 47
      %v4429 = vpop.permute.xlu0 %4428
      %4430 = vrot.lane.b32.xlu0 %v4415, 47
      %v4431 = vpop.permute.xlu0 %4430
      %4432 = vrot.lane.b32.xlu0 %v4422, 47
      %v4433 = vpop.permute.xlu0 %4432
      %4434 = vrot.lane.b32.xlu0 %v4423, 47
      %v4435 = vpop.permute.xlu0 %4434
      %v4436 = vsel %vm3642, %v4425, %v4427
      %v4437 = vsel %vm3642, %v4427, %v4429
      %v4438 = vsel %vm3642, %v4429, %v4431
      %v4439 = vsel %vm3642, %v4431, %v4433
      %v4440 = vsel %vm3642, %v4433, %v4435
      %v4442 = vsel %vm207, %v4396, 0
      %v4445 = vsel %vm211, %v4436, 0
      %v4448 = vsel %vm211, %v4437, 0
      %v4451 = vsel %vm211, %v4438, 0
      %v4454 = vsel %vm211, %v4439, 0
      %v4457 = vsel %vm211, %v4440, 0
      %v4460 = vsel %vm211, %v4435, 0
      %4462 = vmatprep.subr.bf16.mxu0 %v4448
      %4463 = vmatpush1.bf16.msra.mxu0 %v4445
      %4464 = vmatprep.subr.bf16.mxu0 0
      %4465 = vmatpush1.bf16.msra.mxu0 0
      %4466 = vmatprep.subr.bf16.mxu0 0
      %4467 = vmatpush1.bf16.msra.mxu0 0
      %4468 = vmatprep.subr.bf16.mxu0 0
      %4469 = vmatpush1.bf16.msra.mxu0 0
      %4470 = vmatprep.subr.bf16.mxu0 0
      %4471 = vmatpush1.bf16.msra.mxu0 0
      %4472 = vmatprep.subr.bf16.mxu0 0
      %4473 = vmatpush1.bf16.msra.mxu0 0
      %4474 = vmatprep.subr.bf16.mxu0 0
      %4475 = vmatpush1.bf16.msra.mxu0 0
      %4476 = vmatprep.subr.bf16.mxu0 0
      %4477 = vmatpush1.bf16.msra.mxu0 0
      %4478 = vmatprep.subr.bf16.mxu0 0
      %4479 = vmatpush1.bf16.msra.mxu0 0
      %4480 = vmatprep.subr.bf16.mxu0 0
      %4481 = vmatpush1.bf16.msra.mxu0 0
      %4482 = vmatprep.subr.bf16.mxu0 0
      %4483 = vmatpush1.bf16.msra.mxu0 0
      %4484 = vmatprep.subr.bf16.mxu0 0
      %4485 = vmatpush1.bf16.msra.mxu0 0
      %4486 = vmatprep.subr.bf16.mxu0 0
      %4487 = vmatpush1.bf16.msra.mxu0 0
      %4488 = vmatprep.subr.bf16.mxu0 0
      %4489 = vmatpush1.bf16.msra.mxu0 0
      %4490 = vmatprep.subr.bf16.mxu0 0
      %4491 = vmatpush1.bf16.msra.mxu0 0
      %4492 = vmatprep.subr.bf16.mxu0 0
      %4493 = vmatpush1.bf16.msra.mxu0 0
      %4494 = vmatprep.mubr.bf16.mxu0 0
      %4495 = vmatmul.mubr.bf16.gmra.mrb[0].mxu0 %v4442
      %v4496 = vpop.f32.mrb[0].mxu0
      %v4497 = vadd.f32 0.0, %v4496
      %v4498 = vpop.f32.mrb[0].mxu0
      %v4499 = vadd.f32 0.0, %v4498
      %v4500 = vpop.f32.mrb[0].mxu0
      %v4501 = vpop.f32.mrb[0].mxu0
      %4502 = vdwg.mxu0
      %4503 = vmatprep.subr.bf16.mxu0 %v4454
      %4504 = vmatpush1.bf16.msra.mxu0 %v4451
      %4505 = vmatprep.subr.bf16.mxu0 0
      %4506 = vmatpush1.bf16.msra.mxu0 0
      %4507 = vmatprep.subr.bf16.mxu0 0
      %4508 = vmatpush1.bf16.msra.mxu0 0
      %4509 = vmatprep.subr.bf16.mxu0 0
      %4510 = vmatpush1.bf16.msra.mxu0 0
      %4511 = vmatprep.subr.bf16.mxu0 0
      %4512 = vmatpush1.bf16.msra.mxu0 0
      %4513 = vmatprep.subr.bf16.mxu0 0
      %4514 = vmatpush1.bf16.msra.mxu0 0
      %4515 = vmatprep.subr.bf16.mxu0 0
      %4516 = vmatpush1.bf16.msra.mxu0 0
      %4517 = vmatprep.subr.bf16.mxu0 0
      %4518 = vmatpush1.bf16.msra.mxu0 0
      %4519 = vmatprep.subr.bf16.mxu0 0
      %4520 = vmatpush1.bf16.msra.mxu0 0
      %4521 = vmatprep.subr.bf16.mxu0 0
      %4522 = vmatpush1.bf16.msra.mxu0 0
      %4523 = vmatprep.subr.bf16.mxu0 0
      %4524 = vmatpush1.bf16.msra.mxu0 0
      %4525 = vmatprep.subr.bf16.mxu0 0
      %4526 = vmatpush1.bf16.msra.mxu0 0
      %4527 = vmatprep.subr.bf16.mxu0 0
      %4528 = vmatpush1.bf16.msra.mxu0 0
      %4529 = vmatprep.subr.bf16.mxu0 0
      %4530 = vmatpush1.bf16.msra.mxu0 0
      %4531 = vmatprep.subr.bf16.mxu0 0
      %4532 = vmatpush1.bf16.msra.mxu0 0
      %4533 = vmatprep.subr.bf16.mxu0 0
      %4534 = vmatpush1.bf16.msra.mxu0 0
      %4535 = vmatprep.mubr.bf16.mxu0 0
      %4536 = vmatmul.mubr.bf16.gmra.mrb[0].mxu0 %v4442
      %v4537 = vpop.f32.mrb[0].mxu0
      %v4538 = vadd.f32 0.0, %v4537
      %v4539 = vpop.f32.mrb[0].mxu0
      %v4540 = vadd.f32 0.0, %v4539
      %v4541 = vpop.f32.mrb[0].mxu0
      %v4542 = vpop.f32.mrb[0].mxu0
      %4543 = vdwg.mxu0
      %4544 = vmatprep.subr.bf16.mxu0 %v4460
      %4545 = vmatpush1.bf16.msra.mxu0 %v4457
      %4546 = vmatprep.subr.bf16.mxu0 0
      %4547 = vmatpush1.bf16.msra.mxu0 0
      %4548 = vmatprep.subr.bf16.mxu0 0
      %4549 = vmatpush1.bf16.msra.mxu0 0
      %4550 = vmatprep.subr.bf16.mxu0 0
      %4551 = vmatpush1.bf16.msra.mxu0 0
      %4552 = vmatprep.subr.bf16.mxu0 0
      %4553 = vmatpush1.bf16.msra.mxu0 0
      %4554 = vmatprep.subr.bf16.mxu0 0
      %4555 = vmatpush1.bf16.msra.mxu0 0
      %4556 = vmatprep.subr.bf16.mxu0 0
      %4557 = vmatpush1.bf16.msra.mxu0 0
      %4558 = vmatprep.subr.bf16.mxu0 0
      %4559 = vmatpush1.bf16.msra.mxu0 0
      %4560 = vmatprep.subr.bf16.mxu0 0
      %4561 = vmatpush1.bf16.msra.mxu0 0
      %4562 = vmatprep.subr.bf16.mxu0 0
      %4563 = vmatpush1.bf16.msra.mxu0 0
      %4564 = vmatprep.subr.bf16.mxu0 0
      %4565 = vmatpush1.bf16.msra.mxu0 0
      %4566 = vmatprep.subr.bf16.mxu0 0
      %4567 = vmatpush1.bf16.msra.mxu0 0
      %4568 = vmatprep.subr.bf16.mxu0 0
      %4569 = vmatpush1.bf16.msra.mxu0 0
      %4570 = vmatprep.subr.bf16.mxu0 0
      %4571 = vmatpush1.bf16.msra.mxu0 0
      %4572 = vmatprep.subr.bf16.mxu0 0
      %4573 = vmatpush1.bf16.msra.mxu0 0
      %4574 = vmatprep.subr.bf16.mxu0 0
      %4575 = vmatpush1.bf16.msra.mxu0 0
      %4576 = vmatprep.mubr.bf16.mxu0 0
      %4577 = vmatmul.mubr.bf16.gmra.mrb[0].mxu0 %v4442
      %v4578 = vpop.f32.mrb[0].mxu0
      %v4579 = vadd.f32 0.0, %v4578
      %v4580 = vpop.f32.mrb[0].mxu0
      %v4581 = vadd.f32 0.0, %v4580
      %v4582 = vpop.f32.mrb[0].mxu0
      %v4583 = vpop.f32.mrb[0].mxu0
      %4584 = vdwg.mxu0
      %v4585 = vadd.f32 %v4387, %v4497
      %v4586 = vadd.f32 %v4388, %v4499
      %v4587 = vadd.f32 %v4389, %v4538
      %v4588 = vadd.f32 %v4390, %v4540
      %v4589 = vadd.f32 %v4391, %v4579
      %v4590 = vadd.f32 %v4392, %v4581
      %v4591 = vld [vmem:[%s723] sm:$0xff]
      %v4592 = vld [vmem:[%s723 + $0x8] sm:$0xf]
      %s4593 = scalar_lea.vmem %s0, 92
      %v4594 = vld [vmem:[%s4593] sm:$0xf]
      %v4597 = vcombine.high %v4591, %v4591
      %v4599 = vunpack.c.l.s4 1983009808
      %v4600 = vunpack.c.0.s8 %v4599
      %v4601 = vlaneseq
      %v4602 = vshrl.u32 %v4601, 7
      %v4603 = vsub.s32 %v4600, %v4602
      %v4604 = vrot.slane %v4591, %v4603
      %v4606 = vunpack.c.l.s4 1983009808
      %v4607 = vunpack.c.0.s8 %v4606
      %v4608 = vlaneseq
      %v4609 = vshrl.u32 %v4608, 7
      %v4610 = vsub.s32 %v4607, %v4609
      %v4611 = vrot.slane %v4597, %v4610
      %v4612 = vcombine.high %v4604, %v4604
      %v4613 = vcombine.high %v4611, %v4611
      %v4615 = vunpack.c.l.s4 1983009808
      %v4616 = vunpack.c.0.s8 %v4615
      %v4617 = vlaneseq
      %v4618 = vshrl.u32 %v4617, 7
      %v4619 = vsub.s32 %v4616, %v4618
      %v4620 = vrot.slane %v4592, %v4619
      %v4621 = vcombine.high %v4620, %v4620
      %4622 = vrot.lane.b32.xlu0 %v4604, 46
      %v4623 = vpop.permute.xlu0 %4622
      %4624 = vrot.lane.b32.xlu0 %v4612, 46
      %v4625 = vpop.permute.xlu0 %4624
      %4626 = vrot.lane.b32.xlu0 %v4611, 46
      %v4627 = vpop.permute.xlu0 %4626
      %4628 = vrot.lane.b32.xlu0 %v4613, 46
      %v4629 = vpop.permute.xlu0 %4628
      %4630 = vrot.lane.b32.xlu0 %v4620, 46
      %v4631 = vpop.permute.xlu0 %4630
      %4632 = vrot.lane.b32.xlu0 %v4621, 46
      %v4633 = vpop.permute.xlu0 %4632
      %v4634 = vsel %vm4039, %v4623, %v4625
      %v4635 = vsel %vm4039, %v4625, %v4627
      %v4636 = vsel %vm4039, %v4627, %v4629
      %v4637 = vsel %vm4039, %v4629, %v4631
      %v4638 = vsel %vm4039, %v4631, %v4633
      %v4640 = vsel %vm207, %v4594, 0
      %v4643 = vsel %vm211, %v4634, 0
      %v4646 = vsel %vm211, %v4635, 0
      %v4649 = vsel %vm211, %v4636, 0
      %v4652 = vsel %vm211, %v4637, 0
      %v4655 = vsel %vm211, %v4638, 0
      %v4658 = vsel %vm211, %v4633, 0
      %4660 = vmatprep.subr.bf16.mxu0 %v4646
      %4661 = vmatpush1.bf16.msra.mxu0 %v4643
      %4662 = vmatprep.subr.bf16.mxu0 0
      %4663 = vmatpush1.bf16.msra.mxu0 0
      %4664 = vmatprep.subr.bf16.mxu0 0
      %4665 = vmatpush1.bf16.msra.mxu0 0
      %4666 = vmatprep.subr.bf16.mxu0 0
      %4667 = vmatpush1.bf16.msra.mxu0 0
      %4668 = vmatprep.subr.bf16.mxu0 0
      %4669 = vmatpush1.bf16.msra.mxu0 0
      %4670 = vmatprep.subr.bf16.mxu0 0
      %4671 = vmatpush1.bf16.msra.mxu0 0
      %4672 = vmatprep.subr.bf16.mxu0 0
      %4673 = vmatpush1.bf16.msra.mxu0 0
      %4674 = vmatprep.subr.bf16.mxu0 0
      %4675 = vmatpush1.bf16.msra.mxu0 0
      %4676 = vmatprep.subr.bf16.mxu0 0
      %4677 = vmatpush1.bf16.msra.mxu0 0
      %4678 = vmatprep.subr.bf16.mxu0 0
      %4679 = vmatpush1.bf16.msra.mxu0 0
      %4680 = vmatprep.subr.bf16.mxu0 0
      %4681 = vmatpush1.bf16.msra.mxu0 0
      %4682 = vmatprep.subr.bf16.mxu0 0
      %4683 = vmatpush1.bf16.msra.mxu0 0
      %4684 = vmatprep.subr.bf16.mxu0 0
      %4685 = vmatpush1.bf16.msra.mxu0 0
      %4686 = vmatprep.subr.bf16.mxu0 0
      %4687 = vmatpush1.bf16.msra.mxu0 0
      %4688 = vmatprep.subr.bf16.mxu0 0
      %4689 = vmatpush1.bf16.msra.mxu0 0
      %4690 = vmatprep.subr.bf16.mxu0 0
      %4691 = vmatpush1.bf16.msra.mxu0 0
      %4692 = vmatprep.mubr.bf16.mxu0 0
      %4693 = vmatmul.mubr.bf16.gmra.mrb[0].mxu0 %v4640
      %v4694 = vpop.f32.mrb[0].mxu0
      %v4695 = vadd.f32 0.0, %v4694
      %v4696 = vpop.f32.mrb[0].mxu0
      %v4697 = vadd.f32 0.0, %v4696
      %v4698 = vpop.f32.mrb[0].mxu0
      %v4699 = vpop.f32.mrb[0].mxu0
      %4700 = vdwg.mxu0
      %4701 = vmatprep.subr.bf16.mxu0 %v4652
      %4702 = vmatpush1.bf16.msra.mxu0 %v4649
      %4703 = vmatprep.subr.bf16.mxu0 0
      %4704 = vmatpush1.bf16.msra.mxu0 0
      %4705 = vmatprep.subr.bf16.mxu0 0
      %4706 = vmatpush1.bf16.msra.mxu0 0
      %4707 = vmatprep.subr.bf16.mxu0 0
      %4708 = vmatpush1.bf16.msra.mxu0 0
      %4709 = vmatprep.subr.bf16.mxu0 0
      %4710 = vmatpush1.bf16.msra.mxu0 0
      %4711 = vmatprep.subr.bf16.mxu0 0
      %4712 = vmatpush1.bf16.msra.mxu0 0
      %4713 = vmatprep.subr.bf16.mxu0 0
      %4714 = vmatpush1.bf16.msra.mxu0 0
      %4715 = vmatprep.subr.bf16.mxu0 0
      %4716 = vmatpush1.bf16.msra.mxu0 0
      %4717 = vmatprep.subr.bf16.mxu0 0
      %4718 = vmatpush1.bf16.msra.mxu0 0
      %4719 = vmatprep.subr.bf16.mxu0 0
      %4720 = vmatpush1.bf16.msra.mxu0 0
      %4721 = vmatprep.subr.bf16.mxu0 0
      %4722 = vmatpush1.bf16.msra.mxu0 0
      %4723 = vmatprep.subr.bf16.mxu0 0
      %4724 = vmatpush1.bf16.msra.mxu0 0
      %4725 = vmatprep.subr.bf16.mxu0 0
      %4726 = vmatpush1.bf16.msra.mxu0 0
      %4727 = vmatprep.subr.bf16.mxu0 0
      %4728 = vmatpush1.bf16.msra.mxu0 0
      %4729 = vmatprep.subr.bf16.mxu0 0
      %4730 = vmatpush1.bf16.msra.mxu0 0
      %4731 = vmatprep.subr.bf16.mxu0 0
      %4732 = vmatpush1.bf16.msra.mxu0 0
      %4733 = vmatprep.mubr.bf16.mxu0 0
      %4734 = vmatmul.mubr.bf16.gmra.mrb[0].mxu0 %v4640
      %v4735 = vpop.f32.mrb[0].mxu0
      %v4736 = vadd.f32 0.0, %v4735
      %v4737 = vpop.f32.mrb[0].mxu0
      %v4738 = vadd.f32 0.0, %v4737
      %v4739 = vpop.f32.mrb[0].mxu0
      %v4740 = vpop.f32.mrb[0].mxu0
      %4741 = vdwg.mxu0
      %4742 = vmatprep.subr.bf16.mxu0 %v4658
      %4743 = vmatpush1.bf16.msra.mxu0 %v4655
      %4744 = vmatprep.subr.bf16.mxu0 0
      %4745 = vmatpush1.bf16.msra.mxu0 0
      %4746 = vmatprep.subr.bf16.mxu0 0
      %4747 = vmatpush1.bf16.msra.mxu0 0
      %4748 = vmatprep.subr.bf16.mxu0 0
      %4749 = vmatpush1.bf16.msra.mxu0 0
      %4750 = vmatprep.subr.bf16.mxu0 0
      %4751 = vmatpush1.bf16.msra.mxu0 0
      %4752 = vmatprep.subr.bf16.mxu0 0
      %4753 = vmatpush1.bf16.msra.mxu0 0
      %4754 = vmatprep.subr.bf16.mxu0 0
      %4755 = vmatpush1.bf16.msra.mxu0 0
      %4756 = vmatprep.subr.bf16.mxu0 0
      %4757 = vmatpush1.bf16.msra.mxu0 0
      %4758 = vmatprep.subr.bf16.mxu0 0
      %4759 = vmatpush1.bf16.msra.mxu0 0
      %4760 = vmatprep.subr.bf16.mxu0 0
      %4761 = vmatpush1.bf16.msra.mxu0 0
      %4762 = vmatprep.subr.bf16.mxu0 0
      %4763 = vmatpush1.bf16.msra.mxu0 0
      %4764 = vmatprep.subr.bf16.mxu0 0
      %4765 = vmatpush1.bf16.msra.mxu0 0
      %4766 = vmatprep.subr.bf16.mxu0 0
      %4767 = vmatpush1.bf16.msra.mxu0 0
      %4768 = vmatprep.subr.bf16.mxu0 0
      %4769 = vmatpush1.bf16.msra.mxu0 0
      %4770 = vmatprep.subr.bf16.mxu0 0
      %4771 = vmatpush1.bf16.msra.mxu0 0
      %4772 = vmatprep.subr.bf16.mxu0 0
      %4773 = vmatpush1.bf16.msra.mxu0 0
      %4774 = vmatprep.mubr.bf16.mxu0 0
      %4775 = vmatmul.mubr.bf16.gmra.mrb[0].mxu0 %v4640
      %v4776 = vpop.f32.mrb[0].mxu0
      %v4777 = vadd.f32 0.0, %v4776
      %v4778 = vpop.f32.mrb[0].mxu0
      %v4779 = vadd.f32 0.0, %v4778
      %v4780 = vpop.f32.mrb[0].mxu0
      %v4781 = vpop.f32.mrb[0].mxu0
      %4782 = vdwg.mxu0
      %v4783 = vadd.f32 %v4585, %v4695
      %v4784 = vadd.f32 %v4586, %v4697
      %v4785 = vadd.f32 %v4587, %v4736
      %v4786 = vadd.f32 %v4588, %v4738
      %v4787 = vadd.f32 %v4589, %v4777
      %v4788 = vadd.f32 %v4590, %v4779
      %v4789 = vld [vmem:[%s165] sm:$0xff]
      %v4790 = vld [vmem:[%s165 + $0x8] sm:$0xf]
      %s4791 = scalar_lea.vmem %s0, 96
      %v4792 = vld [vmem:[%s4791] sm:$0xf]
      %v4795 = vcombine.high %v4789, %v4789
      %v4797 = vunpack.c.l.s4 1983009808
      %v4798 = vunpack.c.0.s8 %v4797
      %v4799 = vlaneseq
      %v4800 = vshrl.u32 %v4799, 7
      %v4801 = vsub.s32 %v4798, %v4800
      %v4802 = vrot.slane %v4789, %v4801
      %v4804 = vunpack.c.l.s4 1983009808
      %v4805 = vunpack.c.0.s8 %v4804
      %v4806 = vlaneseq
      %v4807 = vshrl.u32 %v4806, 7
      %v4808 = vsub.s32 %v4805, %v4807
      %v4809 = vrot.slane %v4795, %v4808
      %v4810 = vcombine.high %v4802, %v4802
      %v4811 = vcombine.high %v4809, %v4809
      %v4813 = vunpack.c.l.s4 1983009808
      %v4814 = vunpack.c.0.s8 %v4813
      %v4815 = vlaneseq
      %v4816 = vshrl.u32 %v4815, 7
      %v4817 = vsub.s32 %v4814, %v4816
      %v4818 = vrot.slane %v4790, %v4817
      %v4819 = vcombine.high %v4818, %v4818
      %4820 = vrot.lane.b32.xlu0 %v4802, 38
      %v4821 = vpop.permute.xlu0 %4820
      %4822 = vrot.lane.b32.xlu0 %v4810, 38
      %v4823 = vpop.permute.xlu0 %4822
      %4824 = vrot.lane.b32.xlu0 %v4809, 38
      %v4825 = vpop.permute.xlu0 %4824
      %4826 = vrot.lane.b32.xlu0 %v4811, 38
      %v4827 = vpop.permute.xlu0 %4826
      %4828 = vrot.lane.b32.xlu0 %v4818, 38
      %v4829 = vpop.permute.xlu0 %4828
      %4830 = vrot.lane.b32.xlu0 %v4819, 38
      %v4831 = vpop.permute.xlu0 %4830
      %vm4832 = vcmask 310272
      %v4833 = vsel %vm4832, %v4821, %v4823
      %v4834 = vsel %vm4832, %v4823, %v4825
      %v4835 = vsel %vm4832, %v4825, %v4827
      %v4836 = vsel %vm4832, %v4827, %v4829
      %v4837 = vsel %vm4832, %v4829, %v4831
      %v4839 = vsel %vm207, %v4792, 0
      %v4842 = vsel %vm211, %v4833, 0
      %v4845 = vsel %vm211, %v4834, 0
      %v4848 = vsel %vm211, %v4835, 0
      %v4851 = vsel %vm211, %v4836, 0
      %v4854 = vsel %vm211, %v4837, 0
      %v4857 = vsel %vm211, %v4831, 0
      %4859 = vmatprep.subr.bf16.mxu0 %v4845
      %4860 = vmatpush1.bf16.msra.mxu0 %v4842
      %4861 = vmatprep.subr.bf16.mxu0 0
      %4862 = vmatpush1.bf16.msra.mxu0 0
      %4863 = vmatprep.subr.bf16.mxu0 0
      %4864 = vmatpush1.bf16.msra.mxu0 0
      %4865 = vmatprep.subr.bf16.mxu0 0
      %4866 = vmatpush1.bf16.msra.mxu0 0
      %4867 = vmatprep.subr.bf16.mxu0 0
      %4868 = vmatpush1.bf16.msra.mxu0 0
      %4869 = vmatprep.subr.bf16.mxu0 0
      %4870 = vmatpush1.bf16.msra.mxu0 0
      %4871 = vmatprep.subr.bf16.mxu0 0
      %4872 = vmatpush1.bf16.msra.mxu0 0
      %4873 = vmatprep.subr.bf16.mxu0 0
      %4874 = vmatpush1.bf16.msra.mxu0 0
      %4875 = vmatprep.subr.bf16.mxu0 0
      %4876 = vmatpush1.bf16.msra.mxu0 0
      %4877 = vmatprep.subr.bf16.mxu0 0
      %4878 = vmatpush1.bf16.msra.mxu0 0
      %4879 = vmatprep.subr.bf16.mxu0 0
      %4880 = vmatpush1.bf16.msra.mxu0 0
      %4881 = vmatprep.subr.bf16.mxu0 0
      %4882 = vmatpush1.bf16.msra.mxu0 0
      %4883 = vmatprep.subr.bf16.mxu0 0
      %4884 = vmatpush1.bf16.msra.mxu0 0
      %4885 = vmatprep.subr.bf16.mxu0 0
      %4886 = vmatpush1.bf16.msra.mxu0 0
      %4887 = vmatprep.subr.bf16.mxu0 0
      %4888 = vmatpush1.bf16.msra.mxu0 0
      %4889 = vmatprep.subr.bf16.mxu0 0
      %4890 = vmatpush1.bf16.msra.mxu0 0
      %4891 = vmatprep.mubr.bf16.mxu0 0
      %4892 = vmatmul.mubr.bf16.gmra.mrb[0].mxu0 %v4839
      %v4893 = vpop.f32.mrb[0].mxu0
      %v4894 = vadd.f32 0.0, %v4893
      %v4895 = vpop.f32.mrb[0].mxu0
      %v4896 = vadd.f32 0.0, %v4895
      %v4897 = vpop.f32.mrb[0].mxu0
      %v4898 = vpop.f32.mrb[0].mxu0
      %4899 = vdwg.mxu0
      %4900 = vmatprep.subr.bf16.mxu0 %v4851
      %4901 = vmatpush1.bf16.msra.mxu0 %v4848
      %4902 = vmatprep.subr.bf16.mxu0 0
      %4903 = vmatpush1.bf16.msra.mxu0 0
      %4904 = vmatprep.subr.bf16.mxu0 0
      %4905 = vmatpush1.bf16.msra.mxu0 0
      %4906 = vmatprep.subr.bf16.mxu0 0
      %4907 = vmatpush1.bf16.msra.mxu0 0
      %4908 = vmatprep.subr.bf16.mxu0 0
      %4909 = vmatpush1.bf16.msra.mxu0 0
      %4910 = vmatprep.subr.bf16.mxu0 0
      %4911 = vmatpush1.bf16.msra.mxu0 0
      %4912 = vmatprep.subr.bf16.mxu0 0
      %4913 = vmatpush1.bf16.msra.mxu0 0
      %4914 = vmatprep.subr.bf16.mxu0 0
      %4915 = vmatpush1.bf16.msra.mxu0 0
      %4916 = vmatprep.subr.bf16.mxu0 0
      %4917 = vmatpush1.bf16.msra.mxu0 0
      %4918 = vmatprep.subr.bf16.mxu0 0
      %4919 = vmatpush1.bf16.msra.mxu0 0
      %4920 = vmatprep.subr.bf16.mxu0 0
      %4921 = vmatpush1.bf16.msra.mxu0 0
      %4922 = vmatprep.subr.bf16.mxu0 0
      %4923 = vmatpush1.bf16.msra.mxu0 0
      %4924 = vmatprep.subr.bf16.mxu0 0
      %4925 = vmatpush1.bf16.msra.mxu0 0
      %4926 = vmatprep.subr.bf16.mxu0 0
      %4927 = vmatpush1.bf16.msra.mxu0 0
      %4928 = vmatprep.subr.bf16.mxu0 0
      %4929 = vmatpush1.bf16.msra.mxu0 0
      %4930 = vmatprep.subr.bf16.mxu0 0
      %4931 = vmatpush1.bf16.msra.mxu0 0
      %4932 = vmatprep.mubr.bf16.mxu0 0
      %4933 = vmatmul.mubr.bf16.gmra.mrb[0].mxu0 %v4839
      %v4934 = vpop.f32.mrb[0].mxu0
      %v4935 = vadd.f32 0.0, %v4934
      %v4936 = vpop.f32.mrb[0].mxu0
      %v4937 = vadd.f32 0.0, %v4936
      %v4938 = vpop.f32.mrb[0].mxu0
      %v4939 = vpop.f32.mrb[0].mxu0
      %4940 = vdwg.mxu0
      %4941 = vmatprep.subr.bf16.mxu0 %v4857
      %4942 = vmatpush1.bf16.msra.mxu0 %v4854
      %4943 = vmatprep.subr.bf16.mxu0 0
      %4944 = vmatpush1.bf16.msra.mxu0 0
      %4945 = vmatprep.subr.bf16.mxu0 0
      %4946 = vmatpush1.bf16.msra.mxu0 0
      %4947 = vmatprep.subr.bf16.mxu0 0
      %4948 = vmatpush1.bf16.msra.mxu0 0
      %4949 = vmatprep.subr.bf16.mxu0 0
      %4950 = vmatpush1.bf16.msra.mxu0 0
      %4951 = vmatprep.subr.bf16.mxu0 0
      %4952 = vmatpush1.bf16.msra.mxu0 0
      %4953 = vmatprep.subr.bf16.mxu0 0
      %4954 = vmatpush1.bf16.msra.mxu0 0
      %4955 = vmatprep.subr.bf16.mxu0 0
      %4956 = vmatpush1.bf16.msra.mxu0 0
      %4957 = vmatprep.subr.bf16.mxu0 0
      %4958 = vmatpush1.bf16.msra.mxu0 0
      %4959 = vmatprep.subr.bf16.mxu0 0
      %4960 = vmatpush1.bf16.msra.mxu0 0
      %4961 = vmatprep.subr.bf16.mxu0 0
      %4962 = vmatpush1.bf16.msra.mxu0 0
      %4963 = vmatprep.subr.bf16.mxu0 0
      %4964 = vmatpush1.bf16.msra.mxu0 0
      %4965 = vmatprep.subr.bf16.mxu0 0
      %4966 = vmatpush1.bf16.msra.mxu0 0
      %4967 = vmatprep.subr.bf16.mxu0 0
      %4968 = vmatpush1.bf16.msra.mxu0 0
      %4969 = vmatprep.subr.bf16.mxu0 0
      %4970 = vmatpush1.bf16.msra.mxu0 0
      %4971 = vmatprep.subr.bf16.mxu0 0
      %4972 = vmatpush1.bf16.msra.mxu0 0
      %4973 = vmatprep.mubr.bf16.mxu0 0
      %4974 = vmatmul.mubr.bf16.gmra.mrb[0].mxu0 %v4839
      %v4975 = vpop.f32.mrb[0].mxu0
      %v4976 = vadd.f32 0.0, %v4975
      %v4977 = vpop.f32.mrb[0].mxu0
      %v4978 = vadd.f32 0.0, %v4977
      %v4979 = vpop.f32.mrb[0].mxu0
      %v4980 = vpop.f32.mrb[0].mxu0
      %4981 = vdwg.mxu0
      %v4982 = vadd.f32 %v4783, %v4894
      %v4983 = vadd.f32 %v4784, %v4896
      %v4984 = vadd.f32 %v4785, %v4935
      %v4985 = vadd.f32 %v4786, %v4937
      %v4986 = vadd.f32 %v4787, %v4976
      %v4987 = vadd.f32 %v4788, %v4978
      %v4988 = vld [vmem:[%s175] sm:$0xff]
      %v4989 = vld [vmem:[%s175 + $0x8] sm:$0xf]
      %s4990 = scalar_lea.vmem %s0, 100
      %v4991 = vld [vmem:[%s4990] sm:$0xf]
      %v4994 = vcombine.high %v4988, %v4988
      %v4996 = vunpack.c.l.s4 1983009808
      %v4997 = vunpack.c.0.s8 %v4996
      %v4998 = vlaneseq
      %v4999 = vshrl.u32 %v4998, 7
      %v5000 = vsub.s32 %v4997, %v4999
      %v5001 = vrot.slane %v4988, %v5000
      %v5003 = vunpack.c.l.s4 1983009808
      %v5004 = vunpack.c.0.s8 %v5003
      %v5005 = vlaneseq
      %v5006 = vshrl.u32 %v5005, 7
      %v5007 = vsub.s32 %v5004, %v5006
      %v5008 = vrot.slane %v4994, %v5007
      %v5009 = vcombine.high %v5001, %v5001
      %v5010 = vcombine.high %v5008, %v5008
      %v5012 = vunpack.c.l.s4 1983009808
      %v5013 = vunpack.c.0.s8 %v5012
      %v5014 = vlaneseq
      %v5015 = vshrl.u32 %v5014, 7
      %v5016 = vsub.s32 %v5013, %v5015
      %v5017 = vrot.slane %v4989, %v5016
      %v5018 = vcombine.high %v5017, %v5017
      %5019 = vrot.lane.b32.xlu0 %v5001, 38
      %v5020 = vpop.permute.xlu0 %5019
      %5021 = vrot.lane.b32.xlu0 %v5009, 38
      %v5022 = vpop.permute.xlu0 %5021
      %5023 = vrot.lane.b32.xlu0 %v5008, 38
      %v5024 = vpop.permute.xlu0 %5023
      %5025 = vrot.lane.b32.xlu0 %v5010, 38
      %v5026 = vpop.permute.xlu0 %5025
      %5027 = vrot.lane.b32.xlu0 %v5017, 38
      %v5028 = vpop.permute.xlu0 %5027
      %5029 = vrot.lane.b32.xlu0 %v5018, 38
      %v5030 = vpop.permute.xlu0 %5029
      %v5031 = vsel %vm4832, %v5020, %v5022
      %v5032 = vsel %vm4832, %v5022, %v5024
      %v5033 = vsel %vm4832, %v5024, %v5026
      %v5034 = vsel %vm4832, %v5026, %v5028
      %v5035 = vsel %vm4832, %v5028, %v5030
      %v5037 = vsel %vm207, %v4991, 0
      %v5040 = vsel %vm211, %v5031, 0
      %v5043 = vsel %vm211, %v5032, 0
      %v5046 = vsel %vm211, %v5033, 0
      %v5049 = vsel %vm211, %v5034, 0
      %v5052 = vsel %vm211, %v5035, 0
      %v5055 = vsel %vm211, %v5030, 0
      %5057 = vmatprep.subr.bf16.mxu0 %v5043
      %5058 = vmatpush1.bf16.msra.mxu0 %v5040
      %5059 = vmatprep.subr.bf16.mxu0 0
      %5060 = vmatpush1.bf16.msra.mxu0 0
      %5061 = vmatprep.subr.bf16.mxu0 0
      %5062 = vmatpush1.bf16.msra.mxu0 0
      %5063 = vmatprep.subr.bf16.mxu0 0
      %5064 = vmatpush1.bf16.msra.mxu0 0
      %5065 = vmatprep.subr.bf16.mxu0 0
      %5066 = vmatpush1.bf16.msra.mxu0 0
      %5067 = vmatprep.subr.bf16.mxu0 0
      %5068 = vmatpush1.bf16.msra.mxu0 0
      %5069 = vmatprep.subr.bf16.mxu0 0
      %5070 = vmatpush1.bf16.msra.mxu0 0
      %5071 = vmatprep.subr.bf16.mxu0 0
      %5072 = vmatpush1.bf16.msra.mxu0 0
      %5073 = vmatprep.subr.bf16.mxu0 0
      %5074 = vmatpush1.bf16.msra.mxu0 0
      %5075 = vmatprep.subr.bf16.mxu0 0
      %5076 = vmatpush1.bf16.msra.mxu0 0
      %5077 = vmatprep.subr.bf16.mxu0 0
      %5078 = vmatpush1.bf16.msra.mxu0 0
      %5079 = vmatprep.subr.bf16.mxu0 0
      %5080 = vmatpush1.bf16.msra.mxu0 0
      %5081 = vmatprep.subr.bf16.mxu0 0
      %5082 = vmatpush1.bf16.msra.mxu0 0
      %5083 = vmatprep.subr.bf16.mxu0 0
      %5084 = vmatpush1.bf16.msra.mxu0 0
      %5085 = vmatprep.subr.bf16.mxu0 0
      %5086 = vmatpush1.bf16.msra.mxu0 0
      %5087 = vmatprep.subr.bf16.mxu0 0
      %5088 = vmatpush1.bf16.msra.mxu0 0
      %5089 = vmatprep.mubr.bf16.mxu0 0
      %5090 = vmatmul.mubr.bf16.gmra.mrb[0].mxu0 %v5037
      %v5091 = vpop.f32.mrb[0].mxu0
      %v5092 = vadd.f32 0.0, %v5091
      %v5093 = vpop.f32.mrb[0].mxu0
      %v5094 = vadd.f32 0.0, %v5093
      %v5095 = vpop.f32.mrb[0].mxu0
      %v5096 = vpop.f32.mrb[0].mxu0
      %5097 = vdwg.mxu0
      %5098 = vmatprep.subr.bf16.mxu0 %v5049
      %5099 = vmatpush1.bf16.msra.mxu0 %v5046
      %5100 = vmatprep.subr.bf16.mxu0 0
      %5101 = vmatpush1.bf16.msra.mxu0 0
      %5102 = vmatprep.subr.bf16.mxu0 0
      %5103 = vmatpush1.bf16.msra.mxu0 0
      %5104 = vmatprep.subr.bf16.mxu0 0
      %5105 = vmatpush1.bf16.msra.mxu0 0
      %5106 = vmatprep.subr.bf16.mxu0 0
      %5107 = vmatpush1.bf16.msra.mxu0 0
      %5108 = vmatprep.subr.bf16.mxu0 0
      %5109 = vmatpush1.bf16.msra.mxu0 0
      %5110 = vmatprep.subr.bf16.mxu0 0
      %5111 = vmatpush1.bf16.msra.mxu0 0
      %5112 = vmatprep.subr.bf16.mxu0 0
      %5113 = vmatpush1.bf16.msra.mxu0 0
      %5114 = vmatprep.subr.bf16.mxu0 0
      %5115 = vmatpush1.bf16.msra.mxu0 0
      %5116 = vmatprep.subr.bf16.mxu0 0
      %5117 = vmatpush1.bf16.msra.mxu0 0
      %5118 = vmatprep.subr.bf16.mxu0 0
      %5119 = vmatpush1.bf16.msra.mxu0 0
      %5120 = vmatprep.subr.bf16.mxu0 0
      %5121 = vmatpush1.bf16.msra.mxu0 0
      %5122 = vmatprep.subr.bf16.mxu0 0
      %5123 = vmatpush1.bf16.msra.mxu0 0
      %5124 = vmatprep.subr.bf16.mxu0 0
      %5125 = vmatpush1.bf16.msra.mxu0 0
      %5126 = vmatprep.subr.bf16.mxu0 0
      %5127 = vmatpush1.bf16.msra.mxu0 0
      %5128 = vmatprep.subr.bf16.mxu0 0
      %5129 = vmatpush1.bf16.msra.mxu0 0
      %5130 = vmatprep.mubr.bf16.mxu0 0
      %5131 = vmatmul.mubr.bf16.gmra.mrb[0].mxu0 %v5037
      %v5132 = vpop.f32.mrb[0].mxu0
      %v5133 = vadd.f32 0.0, %v5132
      %v5134 = vpop.f32.mrb[0].mxu0
      %v5135 = vadd.f32 0.0, %v5134
      %v5136 = vpop.f32.mrb[0].mxu0
      %v5137 = vpop.f32.mrb[0].mxu0
      %5138 = vdwg.mxu0
      %5139 = vmatprep.subr.bf16.mxu0 %v5055
      %5140 = vmatpush1.bf16.msra.mxu0 %v5052
      %5141 = vmatprep.subr.bf16.mxu0 0
      %5142 = vmatpush1.bf16.msra.mxu0 0
      %5143 = vmatprep.subr.bf16.mxu0 0
      %5144 = vmatpush1.bf16.msra.mxu0 0
      %5145 = vmatprep.subr.bf16.mxu0 0
      %5146 = vmatpush1.bf16.msra.mxu0 0
      %5147 = vmatprep.subr.bf16.mxu0 0
      %5148 = vmatpush1.bf16.msra.mxu0 0
      %5149 = vmatprep.subr.bf16.mxu0 0
      %5150 = vmatpush1.bf16.msra.mxu0 0
      %5151 = vmatprep.subr.bf16.mxu0 0
      %5152 = vmatpush1.bf16.msra.mxu0 0
      %5153 = vmatprep.subr.bf16.mxu0 0
      %5154 = vmatpush1.bf16.msra.mxu0 0
      %5155 = vmatprep.subr.bf16.mxu0 0
      %5156 = vmatpush1.bf16.msra.mxu0 0
      %5157 = vmatprep.subr.bf16.mxu0 0
      %5158 = vmatpush1.bf16.msra.mxu0 0
      %5159 = vmatprep.subr.bf16.mxu0 0
      %5160 = vmatpush1.bf16.msra.mxu0 0
      %5161 = vmatprep.subr.bf16.mxu0 0
      %5162 = vmatpush1.bf16.msra.mxu0 0
      %5163 = vmatprep.subr.bf16.mxu0 0
      %5164 = vmatpush1.bf16.msra.mxu0 0
      %5165 = vmatprep.subr.bf16.mxu0 0
      %5166 = vmatpush1.bf16.msra.mxu0 0
      %5167 = vmatprep.subr.bf16.mxu0 0
      %5168 = vmatpush1.bf16.msra.mxu0 0
      %5169 = vmatprep.subr.bf16.mxu0 0
      %5170 = vmatpush1.bf16.msra.mxu0 0
      %5171 = vmatprep.mubr.bf16.mxu0 0
      %5172 = vmatmul.mubr.bf16.gmra.mrb[0].mxu0 %v5037
      %v5173 = vpop.f32.mrb[0].mxu0
      %v5174 = vadd.f32 0.0, %v5173
      %v5175 = vpop.f32.mrb[0].mxu0
      %v5176 = vadd.f32 0.0, %v5175
      %v5177 = vpop.f32.mrb[0].mxu0
      %v5178 = vpop.f32.mrb[0].mxu0
      %5179 = vdwg.mxu0
      %v5180 = vadd.f32 %v4982, %v5092
      %v5181 = vadd.f32 %v4983, %v5094
      %v5182 = vadd.f32 %v4984, %v5133
      %v5183 = vadd.f32 %v4985, %v5135
      %v5184 = vadd.f32 %v4986, %v5174
      %v5185 = vadd.f32 %v4987, %v5176
      %v5186 = vld [vmem:[%s165] sm:$0xff]
      %v5187 = vld [vmem:[%s165 + $0x8] sm:$0xf]
      %s5188 = scalar_lea.vmem %s0, 104
      %v5189 = vld [vmem:[%s5188] sm:$0xf]
      %v5192 = vcombine.high %v5186, %v5186
      %v5194 = vunpack.c.l.s4 1983009808
      %v5195 = vunpack.c.0.s8 %v5194
      %v5196 = vlaneseq
      %v5197 = vshrl.u32 %v5196, 7
      %v5198 = vsub.s32 %v5195, %v5197
      %v5199 = vrot.slane %v5186, %v5198
      %v5201 = vunpack.c.l.s4 1983009808
      %v5202 = vunpack.c.0.s8 %v5201
      %v5203 = vlaneseq
      %v5204 = vshrl.u32 %v5203, 7
      %v5205 = vsub.s32 %v5202, %v5204
      %v5206 = vrot.slane %v5192, %v5205
      %v5207 = vcombine.high %v5199, %v5199
      %v5208 = vcombine.high %v5206, %v5206
      %v5210 = vunpack.c.l.s4 1983009808
      %v5211 = vunpack.c.0.s8 %v5210
      %v5212 = vlaneseq
      %v5213 = vshrl.u32 %v5212, 7
      %v5214 = vsub.s32 %v5211, %v5213
      %v5215 = vrot.slane %v5187, %v5214
      %v5216 = vcombine.high %v5215, %v5215
      %5217 = vrot.lane.b32.xlu0 %v5199, 37
      %v5218 = vpop.permute.xlu0 %5217
      %5219 = vrot.lane.b32.xlu0 %v5207, 37
      %v5220 = vpop.permute.xlu0 %5219
      %5221 = vrot.lane.b32.xlu0 %v5206, 37
      %v5222 = vpop.permute.xlu0 %5221
      %5223 = vrot.lane.b32.xlu0 %v5208, 37
      %v5224 = vpop.permute.xlu0 %5223
      %5225 = vrot.lane.b32.xlu0 %v5215, 37
      %v5226 = vpop.permute.xlu0 %5225
      %5227 = vrot.lane.b32.xlu0 %v5216, 37
      %v5228 = vpop.permute.xlu0 %5227
      %vm5229 = vcmask 302080
      %v5230 = vsel %vm5229, %v5218, %v5220
      %v5231 = vsel %vm5229, %v5220, %v5222
      %v5232 = vsel %vm5229, %v5222, %v5224
      %v5233 = vsel %vm5229, %v5224, %v5226
      %v5234 = vsel %vm5229, %v5226, %v5228
      %v5236 = vsel %vm207, %v5189, 0
      %v5239 = vsel %vm211, %v5230, 0
      %v5242 = vsel %vm211, %v5231, 0
      %v5245 = vsel %vm211, %v5232, 0
      %v5248 = vsel %vm211, %v5233, 0
      %v5251 = vsel %vm211, %v5234, 0
      %v5254 = vsel %vm211, %v5228, 0
      %5256 = vmatprep.subr.bf16.mxu0 %v5242
      %5257 = vmatpush1.bf16.msra.mxu0 %v5239
      %5258 = vmatprep.subr.bf16.mxu0 0
      %5259 = vmatpush1.bf16.msra.mxu0 0
      %5260 = vmatprep.subr.bf16.mxu0 0
      %5261 = vmatpush1.bf16.msra.mxu0 0
      %5262 = vmatprep.subr.bf16.mxu0 0
      %5263 = vmatpush1.bf16.msra.mxu0 0
      %5264 = vmatprep.subr.bf16.mxu0 0
      %5265 = vmatpush1.bf16.msra.mxu0 0
      %5266 = vmatprep.subr.bf16.mxu0 0
      %5267 = vmatpush1.bf16.msra.mxu0 0
      %5268 = vmatprep.subr.bf16.mxu0 0
      %5269 = vmatpush1.bf16.msra.mxu0 0
      %5270 = vmatprep.subr.bf16.mxu0 0
      %5271 = vmatpush1.bf16.msra.mxu0 0
      %5272 = vmatprep.subr.bf16.mxu0 0
      %5273 = vmatpush1.bf16.msra.mxu0 0
      %5274 = vmatprep.subr.bf16.mxu0 0
      %5275 = vmatpush1.bf16.msra.mxu0 0
      %5276 = vmatprep.subr.bf16.mxu0 0
      %5277 = vmatpush1.bf16.msra.mxu0 0
      %5278 = vmatprep.subr.bf16.mxu0 0
      %5279 = vmatpush1.bf16.msra.mxu0 0
      %5280 = vmatprep.subr.bf16.mxu0 0
      %5281 = vmatpush1.bf16.msra.mxu0 0
      %5282 = vmatprep.subr.bf16.mxu0 0
      %5283 = vmatpush1.bf16.msra.mxu0 0
      %5284 = vmatprep.subr.bf16.mxu0 0
      %5285 = vmatpush1.bf16.msra.mxu0 0
      %5286 = vmatprep.subr.bf16.mxu0 0
      %5287 = vmatpush1.bf16.msra.mxu0 0
      %5288 = vmatprep.mubr.bf16.mxu0 0
      %5289 = vmatmul.mubr.bf16.gmra.mrb[0].mxu0 %v5236
      %v5290 = vpop.f32.mrb[0].mxu0
      %v5291 = vadd.f32 0.0, %v5290
      %v5292 = vpop.f32.mrb[0].mxu0
      %v5293 = vadd.f32 0.0, %v5292
      %v5294 = vpop.f32.mrb[0].mxu0
      %v5295 = vpop.f32.mrb[0].mxu0
      %5296 = vdwg.mxu0
      %5297 = vmatprep.subr.bf16.mxu0 %v5248
      %5298 = vmatpush1.bf16.msra.mxu0 %v5245
      %5299 = vmatprep.subr.bf16.mxu0 0
      %5300 = vmatpush1.bf16.msra.mxu0 0
      %5301 = vmatprep.subr.bf16.mxu0 0
      %5302 = vmatpush1.bf16.msra.mxu0 0
      %5303 = vmatprep.subr.bf16.mxu0 0
      %5304 = vmatpush1.bf16.msra.mxu0 0
      %5305 = vmatprep.subr.bf16.mxu0 0
      %5306 = vmatpush1.bf16.msra.mxu0 0
      %5307 = vmatprep.subr.bf16.mxu0 0
      %5308 = vmatpush1.bf16.msra.mxu0 0
      %5309 = vmatprep.subr.bf16.mxu0 0
      %5310 = vmatpush1.bf16.msra.mxu0 0
      %5311 = vmatprep.subr.bf16.mxu0 0
      %5312 = vmatpush1.bf16.msra.mxu0 0
      %5313 = vmatprep.subr.bf16.mxu0 0
      %5314 = vmatpush1.bf16.msra.mxu0 0
      %5315 = vmatprep.subr.bf16.mxu0 0
      %5316 = vmatpush1.bf16.msra.mxu0 0
      %5317 = vmatprep.subr.bf16.mxu0 0
      %5318 = vmatpush1.bf16.msra.mxu0 0
      %5319 = vmatprep.subr.bf16.mxu0 0
      %5320 = vmatpush1.bf16.msra.mxu0 0
      %5321 = vmatprep.subr.bf16.mxu0 0
      %5322 = vmatpush1.bf16.msra.mxu0 0
      %5323 = vmatprep.subr.bf16.mxu0 0
      %5324 = vmatpush1.bf16.msra.mxu0 0
      %5325 = vmatprep.subr.bf16.mxu0 0
      %5326 = vmatpush1.bf16.msra.mxu0 0
      %5327 = vmatprep.subr.bf16.mxu0 0
      %5328 = vmatpush1.bf16.msra.mxu0 0
      %5329 = vmatprep.mubr.bf16.mxu0 0
      %5330 = vmatmul.mubr.bf16.gmra.mrb[0].mxu0 %v5236
      %v5331 = vpop.f32.mrb[0].mxu0
      %v5332 = vadd.f32 0.0, %v5331
      %v5333 = vpop.f32.mrb[0].mxu0
      %v5334 = vadd.f32 0.0, %v5333
      %v5335 = vpop.f32.mrb[0].mxu0
      %v5336 = vpop.f32.mrb[0].mxu0
      %5337 = vdwg.mxu0
      %5338 = vmatprep.subr.bf16.mxu0 %v5254
      %5339 = vmatpush1.bf16.msra.mxu0 %v5251
      %5340 = vmatprep.subr.bf16.mxu0 0
      %5341 = vmatpush1.bf16.msra.mxu0 0
      %5342 = vmatprep.subr.bf16.mxu0 0
      %5343 = vmatpush1.bf16.msra.mxu0 0
      %5344 = vmatprep.subr.bf16.mxu0 0
      %5345 = vmatpush1.bf16.msra.mxu0 0
      %5346 = vmatprep.subr.bf16.mxu0 0
      %5347 = vmatpush1.bf16.msra.mxu0 0
      %5348 = vmatprep.subr.bf16.mxu0 0
      %5349 = vmatpush1.bf16.msra.mxu0 0
      %5350 = vmatprep.subr.bf16.mxu0 0
      %5351 = vmatpush1.bf16.msra.mxu0 0
      %5352 = vmatprep.subr.bf16.mxu0 0
      %5353 = vmatpush1.bf16.msra.mxu0 0
      %5354 = vmatprep.subr.bf16.mxu0 0
      %5355 = vmatpush1.bf16.msra.mxu0 0
      %5356 = vmatprep.subr.bf16.mxu0 0
      %5357 = vmatpush1.bf16.msra.mxu0 0
      %5358 = vmatprep.subr.bf16.mxu0 0
      %5359 = vmatpush1.bf16.msra.mxu0 0
      %5360 = vmatprep.subr.bf16.mxu0 0
      %5361 = vmatpush1.bf16.msra.mxu0 0
      %5362 = vmatprep.subr.bf16.mxu0 0
      %5363 = vmatpush1.bf16.msra.mxu0 0
      %5364 = vmatprep.subr.bf16.mxu0 0
      %5365 = vmatpush1.bf16.msra.mxu0 0
      %5366 = vmatprep.subr.bf16.mxu0 0
      %5367 = vmatpush1.bf16.msra.mxu0 0
      %5368 = vmatprep.subr.bf16.mxu0 0
      %5369 = vmatpush1.bf16.msra.mxu0 0
      %5370 = vmatprep.mubr.bf16.mxu0 0
      %5371 = vmatmul.mubr.bf16.gmra.mrb[0].mxu0 %v5236
      %v5372 = vpop.f32.mrb[0].mxu0
      %v5373 = vadd.f32 0.0, %v5372
      %v5374 = vpop.f32.mrb[0].mxu0
      %v5375 = vadd.f32 0.0, %v5374
      %v5376 = vpop.f32.mrb[0].mxu0
      %v5377 = vpop.f32.mrb[0].mxu0
      %5378 = vdwg.mxu0
      %v5379 = vadd.f32 %v5180, %v5291
      %v5380 = vadd.f32 %v5181, %v5293
      %v5381 = vadd.f32 %v5182, %v5332
      %v5382 = vadd.f32 %v5183, %v5334
      %v5383 = vadd.f32 %v5184, %v5373
      %v5384 = vadd.f32 %v5185, %v5375
      %v5385 = vld [vmem:[%s1] sm:$0xff]
      %5387 = vset.pattern.permute.xlu0 0
      %5388 = vperm.xlu0 %5387, %v5385
      %v5389 = vpop.permute.xlu0 %5388
      %v5391 = vadd.f32 %v5379, %v5389
      %v5392 = vadd.f32 %v5380, %v5389
      %v5393 = vadd.f32 %v5381, %v5389
      %v5394 = vadd.f32 %v5382, %v5389
      %v5395 = vadd.f32 %v5383, %v5389
      %v5396 = vadd.f32 %v5384, %v5389
      %5397 = vst [vmem:[%s170] sm:$0xff] %v5391
      %5398 = vst [vmem:[%s170 + $0x8] sm:$0xff] %v5392
      %5399 = vst [vmem:[%s170 + $0x10] sm:$0xff] %v5393
      %5400 = vst [vmem:[%s170 + $0x18] sm:$0xff] %v5394
      %5401 = vst [vmem:[%s170 + $0x20] sm:$0xff] %v5395
      %vm5402 = vcmask 64512
      %5403 = vst.msk [vmem:[%s170 + $0x28] sm:$0xff] %vm5402, %v5396
      %p5404 = scmp.lt.s32.totalorder %s14, 1
      %s5405 = scalar_select %p5404, %s14, 1
      %s5406 = smul.addr %s5405, 6
      %s5407 = smul.addr %s5406, 8
      %s5408 = scalar_lea.vmem %s3, %s5407
      // Predicated region
      $region33: #{endown_forward.1} parent=31 // pred_check
        %p5409 = pneg %p100
      $region34: #{endown_forward.1} parent=31 // pred_check_branch
        %5411 = sbr.rel (%p5409) target = $region36
      $region35: #{endown_forward.1} parent=31 // pred_region
        _
      $region36: #{endown_forward.1} parent=31 // pred_fallthru
        _
    $region32: #{endown_forward.1} parent=5 // pred_fallthru
      _
    %p5412 = scmp.le.s32.totalorder 2, %s9
    // Predicated region
    $region37: #{endown_forward.1} parent=5 // pred_check
      %p5413 = pneg %p5412
    $region38: #{endown_forward.1} parent=5 // pred_check_branch
      %5415 = sbr.rel (%p5413) target = $region40
    $region39: #{endown_forward.1} parent=5 // pred_region
      %s5416 = ssub.s32 %s9, 2
      // Predicated region
      $region41: #{endown_forward.1} parent=39 // pred_check
        %p5417 = pneg %p106
      $region42: #{endown_forward.1} parent=39 // pred_check_branch
        %5419 = sbr.rel (%p5417) target = $region44
      $region43: #{endown_forward.1} parent=39 // pred_region
        %p5420 = scmp.lt.s32.totalorder %s15, 1
        %s5421 = scalar_select %p5420, %s15, 1
        %s5422 = smul.addr %s5421, 6
        %s5423 = smul.addr %s5422, 8
        %s5424 = scalar_lea.vmem %s3, %s5423
      $region44: #{endown_forward.1} parent=39 // pred_fallthru
        _
    $region40: #{endown_forward.1} parent=5 // pred_fallthru
      _
  $region6: #{endown_forward.1} parent=0 // loop_footer
    %s13 = sadd.s32 1, %s9
  $region7: #{endown_forward.1} parent=0 // loop_footer_branch
    %8 = sbr.rel target = $region3
  $region8: #{endown_forward.1} parent=0 // loop_exit
    _

</llo_original>
